<compile_context>
chip_gen: v7x
topology: tpu7x:2x2x1
jax: 0.10.0
libtpu: 0.0.40
codegen_flags: <defaults>
</compile_context>

<pallas_src>
import functools

import numpy as np

import jax
import jax.numpy as jnp
from jax.experimental import pallas as pl
from jax.experimental.pallas import tpu as pltpu


# ---------------------------------------------------------------------------
# Static per-tap metadata: a 3x3 'same' conv as shift + mask + matmul taps.
# ---------------------------------------------------------------------------
def _tap_plan(H, W, dil):
    """Returns (shifts, fulls, kept_tap_ids, masks) for a 3x3 stride-1 conv.

    out[:, p] = sum_t  W_t @ (mask_t * x[:, (p + shift_t) mod HW]),  p = h*W + w.
    mask_t zeroes positions whose tap lands in the zero padding; taps that never
    hit a valid pixel are dropped (exact).
    """
    hh = np.arange(H)[:, None]
    ww = np.arange(W)[None, :]
    shifts, fulls, masks, kept = [], [], [], []
    for kh in range(3):
        for kw in range(3):
            dh, dw = (kh - 1) * dil, (kw - 1) * dil
            valid = ((hh + dh >= 0) & (hh + dh < H) &
                     (ww + dw >= 0) & (ww + dw < W))
            if not valid.any():
                continue                        # tap contributes nothing (exact)
            kept.append(kh * 3 + kw)
            shifts.append(dh * W + dw)
            fulls.append(bool(valid.all()))
            masks.append(valid.reshape(-1).astype(np.float32))
    mask_arr = jnp.asarray(np.stack(masks), dtype=jnp.bfloat16)   # 0/1 exact
    return tuple(shifts), tuple(fulls), tuple(kept), mask_arr


def _w_taps(w_oihw, kept):
    """(Cout, Cin, 3, 3) -> (T, Cout, Cin) bf16, taps ordered (kh, kw) per `kept`."""
    c_out, c_in, kh, kw = w_oihw.shape
    w = jnp.transpose(w_oihw, (2, 3, 0, 1)).reshape(kh * kw, c_out, c_in)
    return w[np.asarray(kept)].astype(jnp.bfloat16)


# ---------------------------------------------------------------------------
# In-kernel helpers.
# ---------------------------------------------------------------------------
def _conv_accum(v, w_ref, b_ref, mask_ref, shifts, fulls):
    """3x3 'same' conv of v:(Cin, HW) bf16 -> (Cout, HW) f32 (bias included).

    Per tap: static lane shift (jnp.roll -> two lane slices + concat; pltpu.roll
    could be substituted for an XLU rotate), multiplicative 0/1 mask for the
    zero-padded positions, then an MXU dot accumulated in f32.
    """
    hw = v.shape[-1]
    acc = None
    for t, (d, full) in enumerate(zip(shifts, fulls)):
        s = (-d) % hw
        vt = v if s == 0 else jnp.roll(v, s, axis=1)    # vt[:, p] = v[:, (p+d)%hw]
        if not full:
            vt = vt * mask_ref[t:t + 1, :]              # zero padded taps exactly
        c = jnp.dot(w_ref[t], vt, preferred_element_type=jnp.float32)
        acc = c if acc is None else acc + c
    return acc + b_ref[...]


def _store_bn_stats(st_ref, y_f32):
    """Per-image [sum, sum_of_squares] per channel -> (1, C, 2) block (direct stores)."""
    st_ref[0, :, 0:1] = jnp.sum(y_f32, axis=1, keepdims=True)
    st_ref[0, :, 1:2] = jnp.sum(y_f32 * y_f32, axis=1, keepdims=True)


# ---------------------------------------------------------------------------
# Kernels (one image per grid step, channel-first (C, H*W) blocks).
# ---------------------------------------------------------------------------
def _fusion_conv1_kernel(x_ref, wf_ref, bf_ref, w1_ref, b1_ref, mf_ref, m1_ref,
                         y1_ref, st_ref, *, shifts_f, fulls_f, shifts_1, fulls_1):
    """fusion conv (3x3, dil=21, 'same') -> conv1 (3x3, pad=1) -> ReLU, + BN1 stats.

    The fusion output never leaves VMEM/vregs (no z0 HBM round trip).
    """
    x = x_ref[0]                                               # (Cin, HW) bf16
    z = _conv_accum(x, wf_ref, bf_ref, mf_ref, shifts_f, fulls_f)
    z = z.astype(jnp.bfloat16)                                 # (3, HW)
    a = _conv_accum(z, w1_ref, b1_ref, m1_ref, shifts_1, fulls_1)
    a = jnp.maximum(a, 0.0)                                    # ReLU (f32)
    y = a.astype(jnp.bfloat16)
    y1_ref[0] = y
    # Stats of the *stored* (bf16) tensor so BN normalizes exactly what it sees.
    _store_bn_stats(st_ref, y.astype(jnp.float32))


def _conv2_kernel(y1_ref, bn_ref, w2_ref, b2_ref, m_ref, y2_ref, st_ref, *,
                  shifts, fulls):
    """BN1 affine (prologue, pre-'padding') -> conv2 (3x3, pad=1) -> ReLU, + BN2 stats."""
    y = y1_ref[0].astype(jnp.float32)                          # (32, HW)
    y = y * bn_ref[:, 0:1] + bn_ref[:, 1:2]                    # exact BN1 affine
    y = y.astype(jnp.bfloat16)
    a = _conv_accum(y, w2_ref, b2_ref, m_ref, shifts, fulls)
    a = jnp.maximum(a, 0.0)
    out = a.astype(jnp.bfloat16)
    y2_ref[0] = out
    _store_bn_stats(st_ref, out.astype(jnp.float32))


def _final_kernel(y2_ref, w_ref, b_ref, o_ref):
    """1x1 conv_final (BN2 pre-folded into w/b); lane-dense (Cout, HW) store."""
    a = jnp.dot(w_ref[...], y2_ref[0], preferred_element_type=jnp.float32)
    o_ref[0] = (a + b_ref[...]).astype(o_ref.dtype)


# ---------------------------------------------------------------------------
# BatchNorm (training-mode batch stats, gamma=1, beta=0) as scale/shift.
# ---------------------------------------------------------------------------
def _bn_scale_shift(sums, m, eps=1e-5):
    mean = sums[:, 0] / m
    var = jnp.maximum(sums[:, 1] / m - mean * mean, 0.0)       # biased variance
    scale = jax.lax.rsqrt(var + eps)
    return scale, -mean * scale


# ---------------------------------------------------------------------------
# Parameters (xavier_uniform conv weights, zero biases, identity BN affine).
# ---------------------------------------------------------------------------
def _xavier_uniform(key, cout, cin, kh, kw):
    fan_in = cin * kh * kw
    fan_out = cout * kh * kw
    bound = (6.0 / (fan_in + fan_out)) ** 0.5
    return jax.random.uniform(key, (cout, cin, kh, kw), jnp.float32, -bound, bound)


def init_unet_params(key, in_channels=3, out_channels=2, start_filters=32):
    keys = jax.random.split(key, 4)
    sf = start_filters
    return {
        "fusion_w": _xavier_uniform(keys[0], 3, in_channels, 3, 3),
        "fusion_b": jnp.zeros((3,), jnp.float32),
        "d0_c1_w": _xavier_uniform(keys[1], sf, 3, 3, 3),
        "d0_c1_b": jnp.zeros((sf,), jnp.float32),
        "d0_c2_w": _xavier_uniform(keys[2], sf, sf, 3, 3),
        "d0_c2_b": jnp.zeros((sf,), jnp.float32),
        "final_w": _xavier_uniform(keys[3], out_channels, sf, 1, 1),
        "final_b": jnp.zeros((out_channels,), jnp.float32),
    }


# ---------------------------------------------------------------------------
# Forward pass.
# ---------------------------------------------------------------------------
def unet_forward(x_nchw, params, *, eps=1e-5):
    N, c_in, H, W = x_nchw.shape
    HW = H * W
    m = N * HW

    # Channel-first activations (N, C, H*W): H*W is the lane dimension, so all
    # Pallas activation blocks are lane-dense.  NCHW -> this layout is a free
    # reshape (no transpose, no data movement).
    x = x_nchw.reshape(N, c_in, HW).astype(jnp.bfloat16)

    shifts_f, fulls_f, kept_f, mask_f = _tap_plan(H, W, dil=21)
    shifts_1, fulls_1, kept_1, mask_1 = _tap_plan(H, W, dil=1)

    wf = _w_taps(params["fusion_w"], kept_f)      # (Tf, 3, c_in)  bf16
    w1 = _w_taps(params["d0_c1_w"], kept_1)       # (T1, 32, 3)    bf16
    w2 = _w_taps(params["d0_c2_w"], kept_1)       # (T1, 32, 32)   bf16
    bf = params["fusion_b"].reshape(-1, 1).astype(jnp.float32)
    b1 = params["d0_c1_b"].reshape(-1, 1).astype(jnp.float32)
    b2 = params["d0_c2_b"].reshape(-1, 1).astype(jnp.float32)
    sf = w1.shape[1]

    cparams = pltpu.CompilerParams(
        dimension_semantics=("parallel",),         # images shard across TCs (v7x)
        vmem_limit_bytes=48 * 1024 * 1024)

    def res(a):                                    # resident block (same every step)
        nd = a.ndim
        return pl.BlockSpec(a.shape, lambda n, _nd=nd: (0,) * _nd)

    def per_image(c):                              # (1, C, HW) block of a (N, C, HW) array
        return pl.BlockSpec((1, c, HW), lambda n: (n, 0, 0))

    stats_spec = pl.BlockSpec((1, sf, 2), lambda n: (n, 0, 0))
    stats_shape = jax.ShapeDtypeStruct((N, sf, 2), jnp.float32)
    act_shape = jax.ShapeDtypeStruct((N, sf, HW), jnp.bfloat16)

    # --- kernel A: fusion conv + conv1 + ReLU (+ per-image BN1 stats) --------
    y1, st1 = pl.pallas_call(
        functools.partial(_fusion_conv1_kernel, shifts_f=shifts_f, fulls_f=fulls_f,
                          shifts_1=shifts_1, fulls_1=fulls_1),
        grid=(N,),
        in_specs=[per_image(c_in), res(wf), res(bf), res(w1), res(b1),
                  res(mask_f), res(mask_1)],
        out_specs=(per_image(sf), stats_spec),
        out_shape=(act_shape, stats_shape),
        compiler_params=cparams,
    )(x, wf, bf, w1, b1, mask_f, mask_1)

    s1, t1 = _bn_scale_shift(jnp.sum(st1, axis=0), m, eps)
    bn1 = jnp.stack([s1, t1], axis=1)              # (32, 2) f32

    # --- kernel B: BN1 affine + conv2 + ReLU (+ per-image BN2 stats) ---------
    y2, st2 = pl.pallas_call(
        functools.partial(_conv2_kernel, shifts=shifts_1, fulls=fulls_1),
        grid=(N,),
        in_specs=[per_image(sf), res(bn1), res(w2), res(b2), res(mask_1)],
        out_specs=(per_image(sf), stats_spec),
        out_shape=(act_shape, stats_shape),
        compiler_params=cparams,
    )(y1, bn1, w2, b2, mask_1)

    s2, t2 = _bn_scale_shift(jnp.sum(st2, axis=0), m, eps)

    # --- kernel C: 1x1 conv_final with BN2 folded EXACTLY into its weights ---
    # (training-mode BN2 needs global stats first, so y2 is unavoidably re-read)
    c_out = params["final_w"].shape[0]
    w_fin = params["final_w"].reshape(c_out, sf)                 # (2, 32) f32
    w_fold = (w_fin * s2[None, :]).astype(jnp.bfloat16)
    b_fold = (params["final_b"] + w_fin @ t2).reshape(-1, 1).astype(jnp.float32)

    out = pl.pallas_call(
        _final_kernel,
        grid=(N,),
        in_specs=[per_image(sf), res(w_fold), res(b_fold)],
        out_specs=per_image(c_out),
        out_shape=jax.ShapeDtypeStruct((N, c_out, HW), jnp.float32),
        compiler_params=cparams,
    )(y2, w_fold, b_fold)

    return out.reshape(N, c_out, H, W)             # already NCHW


if __name__ == "__main__":
    key = jax.random.PRNGKey(0)
    kx, kp = jax.random.split(key)

    # NCHW input matching the module defaults: (batch=2, C=3, H=16, W=16).
    x = jax.random.normal(kx, (2, 3, 16, 16), jnp.float32)
    params = init_unet_params(kp)

    out = jax.block_until_ready(jax.jit(unet_forward)(x, params))
    assert out.shape == (2, 2, 16, 16), out.shape
    assert bool(jnp.all(jnp.isfinite(out)))
    print("KERNEL_OK")
</pallas_src>

<mosaic_0001>
module attributes {stable_mosaic.version = 11 : i64} {
  func.func @_fusion_conv1_kernel(%arg0: i32, %arg1: memref<1x3x256xbf16, #tpu.memory_space<vmem>>, %arg2: memref<1x3x3xbf16, #tpu.memory_space<vmem>>, %arg3: memref<3x1xf32, #tpu.memory_space<vmem>>, %arg4: memref<9x32x3xbf16, #tpu.memory_space<vmem>>, %arg5: memref<32x1xf32, #tpu.memory_space<vmem>>, %arg6: memref<1x256xbf16, #tpu.memory_space<vmem>>, %arg7: memref<9x256xbf16, #tpu.memory_space<vmem>>, %arg8: memref<1x32x256xbf16, #tpu.memory_space<vmem>>, %arg9: memref<1x32x2xf32, #tpu.memory_space<vmem>>) attributes {dimension_semantics = [#tpu.dimension_semantics<parallel>], iteration_bounds = array<i64: 2>, scalar_prefetch = 0 : i64, scratch_operands = 0 : i64, tpu.core_type = #tpu.core_type<tc>, window_params = [{transform_indices = @transform_0, window_bounds = array<i64: 1, 3, 256>}, {pipeline_mode = #tpu.pipeline_mode<synchronous>, transform_indices = @transform_1, window_bounds = array<i64: 1, 3, 3>}, {pipeline_mode = #tpu.pipeline_mode<synchronous>, transform_indices = @transform_2, window_bounds = array<i64: 3, 1>}, {pipeline_mode = #tpu.pipeline_mode<synchronous>, transform_indices = @transform_3, window_bounds = array<i64: 9, 32, 3>}, {pipeline_mode = #tpu.pipeline_mode<synchronous>, transform_indices = @transform_4, window_bounds = array<i64: 32, 1>}, {pipeline_mode = #tpu.pipeline_mode<synchronous>, transform_indices = @transform_5, window_bounds = array<i64: 1, 256>}, {pipeline_mode = #tpu.pipeline_mode<synchronous>, transform_indices = @transform_6, window_bounds = array<i64: 9, 256>}, {transform_indices = @transform_7, window_bounds = array<i64: 1, 32, 256>}, {transform_indices = @transform_8, window_bounds = array<i64: 1, 32, 2>}]} {
    %c0 = arith.constant 0 : index
    %c0_0 = arith.constant 0 : index
    %c0_1 = arith.constant 0 : index
    %0 = vector.load %arg1[%c0, %c0_0, %c0_1] : memref<1x3x256xbf16, #tpu.memory_space<vmem>>, vector<1x3x256xbf16>
    %1 = vector.shape_cast %0 : vector<1x3x256xbf16> to vector<3x256xbf16>
    %c0_2 = arith.constant 0 : index
    %c0_3 = arith.constant 0 : index
    %c0_4 = arith.constant 0 : index
    %2 = vector.load %arg2[%c0_2, %c0_3, %c0_4] : memref<1x3x3xbf16, #tpu.memory_space<vmem>>, vector<1x3x3xbf16>
    %3 = vector.shape_cast %2 : vector<1x3x3xbf16> to vector<3x3xbf16>
    %cst = arith.constant dense<0.000000e+00> : vector<3x256xf32>
    %4 = tpu.matmul %3, %1, %cst {dimension_numbers = #tpu.dot_dimension_numbers<[1], [0], [0], [1], [0, 0, 1, 1], [], []>} : vector<3x3xbf16>, vector<3x256xbf16>, vector<3x256xf32> -> vector<3x256xf32>
    %c0_5 = arith.constant 0 : index
    %c0_6 = arith.constant 0 : index
    %5 = vector.load %arg3[%c0_5, %c0_6] : memref<3x1xf32, #tpu.memory_space<vmem>>, vector<3x1xf32>
    %6 = vector.broadcast %5 : vector<3x1xf32> to vector<3x256xf32>
    %7 = arith.addf %4, %6 : vector<3x256xf32>
    %8 = arith.truncf %7 : vector<3x256xf32> to vector<3x256xbf16>
    %9 = vector.extract_strided_slice %8 {offsets = [0, 239], sizes = [3, 17], strides = [1, 1]} : vector<3x256xbf16> to vector<3x17xbf16>
    %10 = vector.extract_strided_slice %8 {offsets = [0, 0], sizes = [3, 239], strides = [1, 1]} : vector<3x256xbf16> to vector<3x239xbf16>
    %11 = tpu.concatenate %9, %10 in 1 : vector<3x17xbf16>, vector<3x239xbf16> -> vector<3x256xbf16>
    %c0_7 = arith.constant 0 : index
    %c0_8 = arith.constant 0 : index
    %12 = vector.load %arg7[%c0_7, %c0_8] : memref<9x256xbf16, #tpu.memory_space<vmem>>, vector<1x256xbf16>
    %13 = vector.broadcast %12 : vector<1x256xbf16> to vector<3x256xbf16>
    %14 = arith.mulf %11, %13 : vector<3x256xbf16>
    %c0_9 = arith.constant 0 : index
    %c0_10 = arith.constant 0 : index
    %c0_11 = arith.constant 0 : index
    %15 = vector.load %arg4[%c0_9, %c0_10, %c0_11] : memref<9x32x3xbf16, #tpu.memory_space<vmem>>, vector<1x32x3xbf16>
    %16 = vector.shape_cast %15 : vector<1x32x3xbf16> to vector<32x3xbf16>
    %cst_12 = arith.constant dense<0.000000e+00> : vector<32x256xf32>
    %17 = tpu.matmul %16, %14, %cst_12 {dimension_numbers = #tpu.dot_dimension_numbers<[1], [0], [0], [1], [0, 0, 1, 1], [], []>} : vector<32x3xbf16>, vector<3x256xbf16>, vector<32x256xf32> -> vector<32x256xf32>
    %18 = vector.extract_strided_slice %8 {offsets = [0, 240], sizes = [3, 16], strides = [1, 1]} : vector<3x256xbf16> to vector<3x16xbf16>
    %19 = vector.extract_strided_slice %8 {offsets = [0, 0], sizes = [3, 240], strides = [1, 1]} : vector<3x256xbf16> to vector<3x240xbf16>
    %20 = tpu.concatenate %18, %19 in 1 : vector<3x16xbf16>, vector<3x240xbf16> -> vector<3x256xbf16>
    %c1 = arith.constant 1 : index
    %c0_13 = arith.constant 0 : index
    %21 = vector.load %arg7[%c1, %c0_13] : memref<9x256xbf16, #tpu.memory_space<vmem>>, vector<1x256xbf16>
    %22 = vector.broadcast %21 : vector<1x256xbf16> to vector<3x256xbf16>
    %23 = arith.mulf %20, %22 : vector<3x256xbf16>
    %c1_14 = arith.constant 1 : index
    %c0_15 = arith.constant 0 : index
    %c0_16 = arith.constant 0 : index
    %24 = vector.load %arg4[%c1_14, %c0_15, %c0_16] : memref<9x32x3xbf16, #tpu.memory_space<vmem>>, vector<1x32x3xbf16>
    %25 = vector.shape_cast %24 : vector<1x32x3xbf16> to vector<32x3xbf16>
    %cst_17 = arith.constant dense<0.000000e+00> : vector<32x256xf32>
    %26 = tpu.matmul %25, %23, %cst_17 {dimension_numbers = #tpu.dot_dimension_numbers<[1], [0], [0], [1], [0, 0, 1, 1], [], []>} : vector<32x3xbf16>, vector<3x256xbf16>, vector<32x256xf32> -> vector<32x256xf32>
    %27 = arith.addf %17, %26 : vector<32x256xf32>
    %28 = vector.extract_strided_slice %8 {offsets = [0, 241], sizes = [3, 15], strides = [1, 1]} : vector<3x256xbf16> to vector<3x15xbf16>
    %29 = vector.extract_strided_slice %8 {offsets = [0, 0], sizes = [3, 241], strides = [1, 1]} : vector<3x256xbf16> to vector<3x241xbf16>
    %30 = tpu.concatenate %28, %29 in 1 : vector<3x15xbf16>, vector<3x241xbf16> -> vector<3x256xbf16>
    %c2 = arith.constant 2 : index
    %c0_18 = arith.constant 0 : index
    %31 = vector.load %arg7[%c2, %c0_18] : memref<9x256xbf16, #tpu.memory_space<vmem>>, vector<1x256xbf16>
    %32 = vector.broadcast %31 : vector<1x256xbf16> to vector<3x256xbf16>
    %33 = arith.mulf %30, %32 : vector<3x256xbf16>
    %c2_19 = arith.constant 2 : index
    %c0_20 = arith.constant 0 : index
    %c0_21 = arith.constant 0 : index
    %34 = vector.load %arg4[%c2_19, %c0_20, %c0_21] : memref<9x32x3xbf16, #tpu.memory_space<vmem>>, vector<1x32x3xbf16>
    %35 = vector.shape_cast %34 : vector<1x32x3xbf16> to vector<32x3xbf16>
    %cst_22 = arith.constant dense<0.000000e+00> : vector<32x256xf32>
    %36 = tpu.matmul %35, %33, %cst_22 {dimension_numbers = #tpu.dot_dimension_numbers<[1], [0], [0], [1], [0, 0, 1, 1], [], []>} : vector<32x3xbf16>, vector<3x256xbf16>, vector<32x256xf32> -> vector<32x256xf32>
    %37 = arith.addf %27, %36 : vector<32x256xf32>
    %38 = vector.extract_strided_slice %8 {offsets = [0, 255], sizes = [3, 1], strides = [1, 1]} : vector<3x256xbf16> to vector<3x1xbf16>
    %39 = vector.extract_strided_slice %8 {offsets = [0, 0], sizes = [3, 255], strides = [1, 1]} : vector<3x256xbf16> to vector<3x255xbf16>
    %40 = tpu.concatenate %38, %39 in 1 : vector<3x1xbf16>, vector<3x255xbf16> -> vector<3x256xbf16>
    %c3 = arith.constant 3 : index
    %c0_23 = arith.constant 0 : index
    %41 = vector.load %arg7[%c3, %c0_23] : memref<9x256xbf16, #tpu.memory_space<vmem>>, vector<1x256xbf16>
    %42 = vector.broadcast %41 : vector<1x256xbf16> to vector<3x256xbf16>
    %43 = arith.mulf %40, %42 : vector<3x256xbf16>
    %c3_24 = arith.constant 3 : index
    %c0_25 = arith.constant 0 : index
    %c0_26 = arith.constant 0 : index
    %44 = vector.load %arg4[%c3_24, %c0_25, %c0_26] : memref<9x32x3xbf16, #tpu.memory_space<vmem>>, vector<1x32x3xbf16>
    %45 = vector.shape_cast %44 : vector<1x32x3xbf16> to vector<32x3xbf16>
    %cst_27 = arith.constant dense<0.000000e+00> : vector<32x256xf32>
    %46 = tpu.matmul %45, %43, %cst_27 {dimension_numbers = #tpu.dot_dimension_numbers<[1], [0], [0], [1], [0, 0, 1, 1], [], []>} : vector<32x3xbf16>, vector<3x256xbf16>, vector<32x256xf32> -> vector<32x256xf32>
    %47 = arith.addf %37, %46 : vector<32x256xf32>
    %c4 = arith.constant 4 : index
    %c0_28 = arith.constant 0 : index
    %c0_29 = arith.constant 0 : index
    %48 = vector.load %arg4[%c4, %c0_28, %c0_29] : memref<9x32x3xbf16, #tpu.memory_space<vmem>>, vector<1x32x3xbf16>
    %49 = vector.shape_cast %48 : vector<1x32x3xbf16> to vector<32x3xbf16>
    %cst_30 = arith.constant dense<0.000000e+00> : vector<32x256xf32>
    %50 = tpu.matmul %49, %8, %cst_30 {dimension_numbers = #tpu.dot_dimension_numbers<[1], [0], [0], [1], [0, 0, 1, 1], [], []>} : vector<32x3xbf16>, vector<3x256xbf16>, vector<32x256xf32> -> vector<32x256xf32>
    %51 = arith.addf %47, %50 : vector<32x256xf32>
    %52 = vector.extract_strided_slice %8 {offsets = [0, 1], sizes = [3, 255], strides = [1, 1]} : vector<3x256xbf16> to vector<3x255xbf16>
    %53 = vector.extract_strided_slice %8 {offsets = [0, 0], sizes = [3, 1], strides = [1, 1]} : vector<3x256xbf16> to vector<3x1xbf16>
    %54 = tpu.concatenate %52, %53 in 1 : vector<3x255xbf16>, vector<3x1xbf16> -> vector<3x256xbf16>
    %c5 = arith.constant 5 : index
    %c0_31 = arith.constant 0 : index
    %55 = vector.load %arg7[%c5, %c0_31] : memref<9x256xbf16, #tpu.memory_space<vmem>>, vector<1x256xbf16>
    %56 = vector.broadcast %55 : vector<1x256xbf16> to vector<3x256xbf16>
    %57 = arith.mulf %54, %56 : vector<3x256xbf16>
    %c5_32 = arith.constant 5 : index
    %c0_33 = arith.constant 0 : index
    %c0_34 = arith.constant 0 : index
    %58 = vector.load %arg4[%c5_32, %c0_33, %c0_34] : memref<9x32x3xbf16, #tpu.memory_space<vmem>>, vector<1x32x3xbf16>
    %59 = vector.shape_cast %58 : vector<1x32x3xbf16> to vector<32x3xbf16>
    %cst_35 = arith.constant dense<0.000000e+00> : vector<32x256xf32>
    %60 = tpu.matmul %59, %57, %cst_35 {dimension_numbers = #tpu.dot_dimension_numbers<[1], [0], [0], [1], [0, 0, 1, 1], [], []>} : vector<32x3xbf16>, vector<3x256xbf16>, vector<32x256xf32> -> vector<32x256xf32>
    %61 = arith.addf %51, %60 : vector<32x256xf32>
    %62 = vector.extract_strided_slice %8 {offsets = [0, 15], sizes = [3, 241], strides = [1, 1]} : vector<3x256xbf16> to vector<3x241xbf16>
    %63 = vector.extract_strided_slice %8 {offsets = [0, 0], sizes = [3, 15], strides = [1, 1]} : vector<3x256xbf16> to vector<3x15xbf16>
    %64 = tpu.concatenate %62, %63 in 1 : vector<3x241xbf16>, vector<3x15xbf16> -> vector<3x256xbf16>
    %c6 = arith.constant 6 : index
    %c0_36 = arith.constant 0 : index
    %65 = vector.load %arg7[%c6, %c0_36] : memref<9x256xbf16, #tpu.memory_space<vmem>>, vector<1x256xbf16>
    %66 = vector.broadcast %65 : vector<1x256xbf16> to vector<3x256xbf16>
    %67 = arith.mulf %64, %66 : vector<3x256xbf16>
    %c6_37 = arith.constant 6 : index
    %c0_38 = arith.constant 0 : index
    %c0_39 = arith.constant 0 : index
    %68 = vector.load %arg4[%c6_37, %c0_38, %c0_39] : memref<9x32x3xbf16, #tpu.memory_space<vmem>>, vector<1x32x3xbf16>
    %69 = vector.shape_cast %68 : vector<1x32x3xbf16> to vector<32x3xbf16>
    %cst_40 = arith.constant dense<0.000000e+00> : vector<32x256xf32>
    %70 = tpu.matmul %69, %67, %cst_40 {dimension_numbers = #tpu.dot_dimension_numbers<[1], [0], [0], [1], [0, 0, 1, 1], [], []>} : vector<32x3xbf16>, vector<3x256xbf16>, vector<32x256xf32> -> vector<32x256xf32>
    %71 = arith.addf %61, %70 : vector<32x256xf32>
    %72 = vector.extract_strided_slice %8 {offsets = [0, 16], sizes = [3, 240], strides = [1, 1]} : vector<3x256xbf16> to vector<3x240xbf16>
    %73 = vector.extract_strided_slice %8 {offsets = [0, 0], sizes = [3, 16], strides = [1, 1]} : vector<3x256xbf16> to vector<3x16xbf16>
    %74 = tpu.concatenate %72, %73 in 1 : vector<3x240xbf16>, vector<3x16xbf16> -> vector<3x256xbf16>
    %c7 = arith.constant 7 : index
    %c0_41 = arith.constant 0 : index
    %75 = vector.load %arg7[%c7, %c0_41] : memref<9x256xbf16, #tpu.memory_space<vmem>>, vector<1x256xbf16>
    %76 = vector.broadcast %75 : vector<1x256xbf16> to vector<3x256xbf16>
    %77 = arith.mulf %74, %76 : vector<3x256xbf16>
    %c7_42 = arith.constant 7 : index
    %c0_43 = arith.constant 0 : index
    %c0_44 = arith.constant 0 : index
    %78 = vector.load %arg4[%c7_42, %c0_43, %c0_44] : memref<9x32x3xbf16, #tpu.memory_space<vmem>>, vector<1x32x3xbf16>
    %79 = vector.shape_cast %78 : vector<1x32x3xbf16> to vector<32x3xbf16>
    %cst_45 = arith.constant dense<0.000000e+00> : vector<32x256xf32>
    %80 = tpu.matmul %79, %77, %cst_45 {dimension_numbers = #tpu.dot_dimension_numbers<[1], [0], [0], [1], [0, 0, 1, 1], [], []>} : vector<32x3xbf16>, vector<3x256xbf16>, vector<32x256xf32> -> vector<32x256xf32>
    %81 = arith.addf %71, %80 : vector<32x256xf32>
    %82 = vector.extract_strided_slice %8 {offsets = [0, 17], sizes = [3, 239], strides = [1, 1]} : vector<3x256xbf16> to vector<3x239xbf16>
    %83 = vector.extract_strided_slice %8 {offsets = [0, 0], sizes = [3, 17], strides = [1, 1]} : vector<3x256xbf16> to vector<3x17xbf16>
    %84 = tpu.concatenate %82, %83 in 1 : vector<3x239xbf16>, vector<3x17xbf16> -> vector<3x256xbf16>
    %c8 = arith.constant 8 : index
    %c0_46 = arith.constant 0 : index
    %85 = vector.load %arg7[%c8, %c0_46] : memref<9x256xbf16, #tpu.memory_space<vmem>>, vector<1x256xbf16>
    %86 = vector.broadcast %85 : vector<1x256xbf16> to vector<3x256xbf16>
    %87 = arith.mulf %84, %86 : vector<3x256xbf16>
    %c8_47 = arith.constant 8 : index
    %c0_48 = arith.constant 0 : index
    %c0_49 = arith.constant 0 : index
    %88 = vector.load %arg4[%c8_47, %c0_48, %c0_49] : memref<9x32x3xbf16, #tpu.memory_space<vmem>>, vector<1x32x3xbf16>
    %89 = vector.shape_cast %88 : vector<1x32x3xbf16> to vector<32x3xbf16>
    %cst_50 = arith.constant dense<0.000000e+00> : vector<32x256xf32>
    %90 = tpu.matmul %89, %87, %cst_50 {dimension_numbers = #tpu.dot_dimension_numbers<[1], [0], [0], [1], [0, 0, 1, 1], [], []>} : vector<32x3xbf16>, vector<3x256xbf16>, vector<32x256xf32> -> vector<32x256xf32>
    %91 = arith.addf %81, %90 : vector<32x256xf32>
    %c0_51 = arith.constant 0 : index
    %c0_52 = arith.constant 0 : index
    %92 = vector.load %arg5[%c0_51, %c0_52] : memref<32x1xf32, #tpu.memory_space<vmem>>, vector<32x1xf32>
    %93 = vector.broadcast %92 : vector<32x1xf32> to vector<32x256xf32>
    %94 = arith.addf %91, %93 : vector<32x256xf32>
    %cst_53 = arith.constant 0.000000e+00 : f32
    %95 = vector.broadcast %cst_53 : f32 to vector<32x256xf32>
    %96 = arith.maximumf %94, %95 : vector<32x256xf32>
    %97 = arith.truncf %96 : vector<32x256xf32> to vector<32x256xbf16>
    %c0_54 = arith.constant 0 : index
    %c0_55 = arith.constant 0 : index
    %c0_56 = arith.constant 0 : index
    %98 = vector.load %arg8[%c0_54, %c0_55, %c0_56] : memref<1x32x256xbf16, #tpu.memory_space<vmem>>, vector<1x32x256xbf16>
    %99 = vector.shape_cast %98 : vector<1x32x256xbf16> to vector<32x256xbf16>
    %100 = vector.shape_cast %97 : vector<32x256xbf16> to vector<1x32x256xbf16>
    tpu.vector_store %arg8[%c0_54, %c0_55, %c0_56], %100 {strides = array<i32>} : memref<1x32x256xbf16, #tpu.memory_space<vmem>>, vector<1x32x256xbf16>,
    %101 = arith.extf %97 : vector<32x256xbf16> to vector<32x256xf32>
    %cst_57 = arith.constant dense<0.000000e+00> : vector<32xf32>
    %102 = vector.multi_reduction <add>, %101, %cst_57 [1] : vector<32x256xf32> to vector<32xf32>
    %103 = vector.shape_cast %102 : vector<32xf32> to vector<32x1xf32>
    %c0_58 = arith.constant 0 : index
    %c0_59 = arith.constant 0 : index
    %c0_60 = arith.constant 0 : index
    %104 = vector.load %arg9[%c0_58, %c0_59, %c0_60] : memref<1x32x2xf32, #tpu.memory_space<vmem>>, vector<1x32x1xf32>
    %105 = vector.shape_cast %104 : vector<1x32x1xf32> to vector<32x1xf32>
    %106 = vector.shape_cast %103 : vector<32x1xf32> to vector<1x32x1xf32>
    tpu.vector_store %arg9[%c0_58, %c0_59, %c0_60], %106 {strides = array<i32>} : memref<1x32x2xf32, #tpu.memory_space<vmem>>, vector<1x32x1xf32>,
    %107 = arith.mulf %101, %101 : vector<32x256xf32>
    %cst_61 = arith.constant dense<0.000000e+00> : vector<32xf32>
    %108 = vector.multi_reduction <add>, %107, %cst_61 [1] : vector<32x256xf32> to vector<32xf32>
    %109 = vector.shape_cast %108 : vector<32xf32> to vector<32x1xf32>
    %c0_62 = arith.constant 0 : index
    %c0_63 = arith.constant 0 : index
    %c1_64 = arith.constant 1 : index
    %110 = vector.load %arg9[%c0_62, %c0_63, %c1_64] : memref<1x32x2xf32, #tpu.memory_space<vmem>>, vector<1x32x1xf32>
    %111 = vector.shape_cast %110 : vector<1x32x1xf32> to vector<32x1xf32>
    %112 = vector.shape_cast %109 : vector<32x1xf32> to vector<1x32x1xf32>
    tpu.vector_store %arg9[%c0_62, %c0_63, %c1_64], %112 {strides = array<i32>} : memref<1x32x2xf32, #tpu.memory_space<vmem>>, vector<1x32x1xf32>,
    return
  }
  func.func @transform_0(%arg0: i32) -> (i32, i32, i32) {
    %c0_i32 = arith.constant 0 : i32
    %c0_i32_0 = arith.constant 0 : i32
    %c0_i32_1 = arith.constant 0 : i32
    return %arg0, %c0_i32, %c0_i32_0 : i32, i32, i32
  }
  func.func @transform_1(%arg0: i32) -> (i32, i32, i32) {
    %c0_i32 = arith.constant 0 : i32
    %c0_i32_0 = arith.constant 0 : i32
    %c0_i32_1 = arith.constant 0 : i32
    %c0_i32_2 = arith.constant 0 : i32
    return %c0_i32, %c0_i32_0, %c0_i32_1 : i32, i32, i32
  }
  func.func @transform_2(%arg0: i32) -> (i32, i32) {
    %c0_i32 = arith.constant 0 : i32
    %c0_i32_0 = arith.constant 0 : i32
    %c0_i32_1 = arith.constant 0 : i32
    return %c0_i32, %c0_i32_0 : i32, i32
  }
  func.func @transform_3(%arg0: i32) -> (i32, i32, i32) {
    %c0_i32 = arith.constant 0 : i32
    %c0_i32_0 = arith.constant 0 : i32
    %c0_i32_1 = arith.constant 0 : i32
    %c0_i32_2 = arith.constant 0 : i32
    return %c0_i32, %c0_i32_0, %c0_i32_1 : i32, i32, i32
  }
  func.func @transform_4(%arg0: i32) -> (i32, i32) {
    %c0_i32 = arith.constant 0 : i32
    %c0_i32_0 = arith.constant 0 : i32
    %c0_i32_1 = arith.constant 0 : i32
    return %c0_i32, %c0_i32_0 : i32, i32
  }
  func.func @transform_5(%arg0: i32) -> (i32, i32) {
    %c0_i32 = arith.constant 0 : i32
    %c0_i32_0 = arith.constant 0 : i32
    %c0_i32_1 = arith.constant 0 : i32
    return %c0_i32, %c0_i32_0 : i32, i32
  }
  func.func @transform_6(%arg0: i32) -> (i32, i32) {
    %c0_i32 = arith.constant 0 : i32
    %c0_i32_0 = arith.constant 0 : i32
    %c0_i32_1 = arith.constant 0 : i32
    return %c0_i32, %c0_i32_0 : i32, i32
  }
  func.func @transform_7(%arg0: i32) -> (i32, i32, i32) {
    %c0_i32 = arith.constant 0 : i32
    %c0_i32_0 = arith.constant 0 : i32
    %c0_i32_1 = arith.constant 0 : i32
    return %arg0, %c0_i32, %c0_i32_0 : i32, i32, i32
  }
  func.func @transform_8(%arg0: i32) -> (i32, i32, i32) {
    %c0_i32 = arith.constant 0 : i32
    %c0_i32_0 = arith.constant 0 : i32
    %c0_i32_1 = arith.constant 0 : i32
    return %arg0, %c0_i32, %c0_i32_0 : i32, i32, i32
  }
}

module attributes {stable_mosaic.version = 11 : i64} {
  func.func @_conv2_kernel(%arg0: i32, %arg1: memref<1x32x256xbf16, #tpu.memory_space<vmem>>, %arg2: memref<32x2xf32, #tpu.memory_space<vmem>>, %arg3: memref<9x32x32xbf16, #tpu.memory_space<vmem>>, %arg4: memref<32x1xf32, #tpu.memory_space<vmem>>, %arg5: memref<9x256xbf16, #tpu.memory_space<vmem>>, %arg6: memref<1x32x256xbf16, #tpu.memory_space<vmem>>, %arg7: memref<1x32x2xf32, #tpu.memory_space<vmem>>) attributes {dimension_semantics = [#tpu.dimension_semantics<parallel>], iteration_bounds = array<i64: 2>, scalar_prefetch = 0 : i64, scratch_operands = 0 : i64, tpu.core_type = #tpu.core_type<tc>, window_params = [{transform_indices = @transform_0, window_bounds = array<i64: 1, 32, 256>}, {pipeline_mode = #tpu.pipeline_mode<synchronous>, transform_indices = @transform_1, window_bounds = array<i64: 32, 2>}, {pipeline_mode = #tpu.pipeline_mode<synchronous>, transform_indices = @transform_2, window_bounds = array<i64: 9, 32, 32>}, {pipeline_mode = #tpu.pipeline_mode<synchronous>, transform_indices = @transform_3, window_bounds = array<i64: 32, 1>}, {pipeline_mode = #tpu.pipeline_mode<synchronous>, transform_indices = @transform_4, window_bounds = array<i64: 9, 256>}, {transform_indices = @transform_5, window_bounds = array<i64: 1, 32, 256>}, {transform_indices = @transform_6, window_bounds = array<i64: 1, 32, 2>}]} {
    %c0 = arith.constant 0 : index
    %c0_0 = arith.constant 0 : index
    %c0_1 = arith.constant 0 : index
    %0 = vector.load %arg1[%c0, %c0_0, %c0_1] : memref<1x32x256xbf16, #tpu.memory_space<vmem>>, vector<1x32x256xbf16>
    %1 = vector.shape_cast %0 : vector<1x32x256xbf16> to vector<32x256xbf16>
    %2 = arith.extf %1 : vector<32x256xbf16> to vector<32x256xf32>
    %c0_2 = arith.constant 0 : index
    %c0_3 = arith.constant 0 : index
    %3 = vector.load %arg2[%c0_2, %c0_3] : memref<32x2xf32, #tpu.memory_space<vmem>>, vector<32x1xf32>
    %4 = vector.broadcast %3 : vector<32x1xf32> to vector<32x256xf32>
    %5 = arith.mulf %2, %4 : vector<32x256xf32>
    %c0_4 = arith.constant 0 : index
    %c1 = arith.constant 1 : index
    %6 = vector.load %arg2[%c0_4, %c1] : memref<32x2xf32, #tpu.memory_space<vmem>>, vector<32x1xf32>
    %7 = vector.broadcast %6 : vector<32x1xf32> to vector<32x256xf32>
    %8 = arith.addf %5, %7 : vector<32x256xf32>
    %9 = arith.truncf %8 : vector<32x256xf32> to vector<32x256xbf16>
    %10 = vector.extract_strided_slice %9 {offsets = [0, 239], sizes = [32, 17], strides = [1, 1]} : vector<32x256xbf16> to vector<32x17xbf16>
    %11 = vector.extract_strided_slice %9 {offsets = [0, 0], sizes = [32, 239], strides = [1, 1]} : vector<32x256xbf16> to vector<32x239xbf16>
    %12 = tpu.concatenate %10, %11 in 1 : vector<32x17xbf16>, vector<32x239xbf16> -> vector<32x256xbf16>
    %c0_5 = arith.constant 0 : index
    %c0_6 = arith.constant 0 : index
    %13 = vector.load %arg5[%c0_5, %c0_6] : memref<9x256xbf16, #tpu.memory_space<vmem>>, vector<1x256xbf16>
    %14 = vector.broadcast %13 : vector<1x256xbf16> to vector<32x256xbf16>
    %15 = arith.mulf %12, %14 : vector<32x256xbf16>
    %c0_7 = arith.constant 0 : index
    %c0_8 = arith.constant 0 : index
    %c0_9 = arith.constant 0 : index
    %16 = vector.load %arg3[%c0_7, %c0_8, %c0_9] : memref<9x32x32xbf16, #tpu.memory_space<vmem>>, vector<1x32x32xbf16>
    %17 = vector.shape_cast %16 : vector<1x32x32xbf16> to vector<32x32xbf16>
    %cst = arith.constant dense<0.000000e+00> : vector<32x256xf32>
    %18 = tpu.matmul %17, %15, %cst {dimension_numbers = #tpu.dot_dimension_numbers<[1], [0], [0], [1], [0, 0, 1, 1], [], []>} : vector<32x32xbf16>, vector<32x256xbf16>, vector<32x256xf32> -> vector<32x256xf32>
    %19 = vector.extract_strided_slice %9 {offsets = [0, 240], sizes = [32, 16], strides = [1, 1]} : vector<32x256xbf16> to vector<32x16xbf16>
    %20 = vector.extract_strided_slice %9 {offsets = [0, 0], sizes = [32, 240], strides = [1, 1]} : vector<32x256xbf16> to vector<32x240xbf16>
    %21 = tpu.concatenate %19, %20 in 1 : vector<32x16xbf16>, vector<32x240xbf16> -> vector<32x256xbf16>
    %c1_10 = arith.constant 1 : index
    %c0_11 = arith.constant 0 : index
    %22 = vector.load %arg5[%c1_10, %c0_11] : memref<9x256xbf16, #tpu.memory_space<vmem>>, vector<1x256xbf16>
    %23 = vector.broadcast %22 : vector<1x256xbf16> to vector<32x256xbf16>
    %24 = arith.mulf %21, %23 : vector<32x256xbf16>
    %c1_12 = arith.constant 1 : index
    %c0_13 = arith.constant 0 : index
    %c0_14 = arith.constant 0 : index
    %25 = vector.load %arg3[%c1_12, %c0_13, %c0_14] : memref<9x32x32xbf16, #tpu.memory_space<vmem>>, vector<1x32x32xbf16>
    %26 = vector.shape_cast %25 : vector<1x32x32xbf16> to vector<32x32xbf16>
    %cst_15 = arith.constant dense<0.000000e+00> : vector<32x256xf32>
    %27 = tpu.matmul %26, %24, %cst_15 {dimension_numbers = #tpu.dot_dimension_numbers<[1], [0], [0], [1], [0, 0, 1, 1], [], []>} : vector<32x32xbf16>, vector<32x256xbf16>, vector<32x256xf32> -> vector<32x256xf32>
    %28 = arith.addf %18, %27 : vector<32x256xf32>
    %29 = vector.extract_strided_slice %9 {offsets = [0, 241], sizes = [32, 15], strides = [1, 1]} : vector<32x256xbf16> to vector<32x15xbf16>
    %30 = vector.extract_strided_slice %9 {offsets = [0, 0], sizes = [32, 241], strides = [1, 1]} : vector<32x256xbf16> to vector<32x241xbf16>
    %31 = tpu.concatenate %29, %30 in 1 : vector<32x15xbf16>, vector<32x241xbf16> -> vector<32x256xbf16>
    %c2 = arith.constant 2 : index
    %c0_16 = arith.constant 0 : index
    %32 = vector.load %arg5[%c2, %c0_16] : memref<9x256xbf16, #tpu.memory_space<vmem>>, vector<1x256xbf16>
    %33 = vector.broadcast %32 : vector<1x256xbf16> to vector<32x256xbf16>
    %34 = arith.mulf %31, %33 : vector<32x256xbf16>
    %c2_17 = arith.constant 2 : index
    %c0_18 = arith.constant 0 : index
    %c0_19 = arith.constant 0 : index
    %35 = vector.load %arg3[%c2_17, %c0_18, %c0_19] : memref<9x32x32xbf16, #tpu.memory_space<vmem>>, vector<1x32x32xbf16>
    %36 = vector.shape_cast %35 : vector<1x32x32xbf16> to vector<32x32xbf16>
    %cst_20 = arith.constant dense<0.000000e+00> : vector<32x256xf32>
    %37 = tpu.matmul %36, %34, %cst_20 {dimension_numbers = #tpu.dot_dimension_numbers<[1], [0], [0], [1], [0, 0, 1, 1], [], []>} : vector<32x32xbf16>, vector<32x256xbf16>, vector<32x256xf32> -> vector<32x256xf32>
    %38 = arith.addf %28, %37 : vector<32x256xf32>
    %39 = vector.extract_strided_slice %9 {offsets = [0, 255], sizes = [32, 1], strides = [1, 1]} : vector<32x256xbf16> to vector<32x1xbf16>
    %40 = vector.extract_strided_slice %9 {offsets = [0, 0], sizes = [32, 255], strides = [1, 1]} : vector<32x256xbf16> to vector<32x255xbf16>
    %41 = tpu.concatenate %39, %40 in 1 : vector<32x1xbf16>, vector<32x255xbf16> -> vector<32x256xbf16>
    %c3 = arith.constant 3 : index
    %c0_21 = arith.constant 0 : index
    %42 = vector.load %arg5[%c3, %c0_21] : memref<9x256xbf16, #tpu.memory_space<vmem>>, vector<1x256xbf16>
    %43 = vector.broadcast %42 : vector<1x256xbf16> to vector<32x256xbf16>
    %44 = arith.mulf %41, %43 : vector<32x256xbf16>
    %c3_22 = arith.constant 3 : index
    %c0_23 = arith.constant 0 : index
    %c0_24 = arith.constant 0 : index
    %45 = vector.load %arg3[%c3_22, %c0_23, %c0_24] : memref<9x32x32xbf16, #tpu.memory_space<vmem>>, vector<1x32x32xbf16>
    %46 = vector.shape_cast %45 : vector<1x32x32xbf16> to vector<32x32xbf16>
    %cst_25 = arith.constant dense<0.000000e+00> : vector<32x256xf32>
    %47 = tpu.matmul %46, %44, %cst_25 {dimension_numbers = #tpu.dot_dimension_numbers<[1], [0], [0], [1], [0, 0, 1, 1], [], []>} : vector<32x32xbf16>, vector<32x256xbf16>, vector<32x256xf32> -> vector<32x256xf32>
    %48 = arith.addf %38, %47 : vector<32x256xf32>
    %c4 = arith.constant 4 : index
    %c0_26 = arith.constant 0 : index
    %c0_27 = arith.constant 0 : index
    %49 = vector.load %arg3[%c4, %c0_26, %c0_27] : memref<9x32x32xbf16, #tpu.memory_space<vmem>>, vector<1x32x32xbf16>
    %50 = vector.shape_cast %49 : vector<1x32x32xbf16> to vector<32x32xbf16>
    %cst_28 = arith.constant dense<0.000000e+00> : vector<32x256xf32>
    %51 = tpu.matmul %50, %9, %cst_28 {dimension_numbers = #tpu.dot_dimension_numbers<[1], [0], [0], [1], [0, 0, 1, 1], [], []>} : vector<32x32xbf16>, vector<32x256xbf16>, vector<32x256xf32> -> vector<32x256xf32>
    %52 = arith.addf %48, %51 : vector<32x256xf32>
    %53 = vector.extract_strided_slice %9 {offsets = [0, 1], sizes = [32, 255], strides = [1, 1]} : vector<32x256xbf16> to vector<32x255xbf16>
    %54 = vector.extract_strided_slice %9 {offsets = [0, 0], sizes = [32, 1], strides = [1, 1]} : vector<32x256xbf16> to vector<32x1xbf16>
    %55 = tpu.concatenate %53, %54 in 1 : vector<32x255xbf16>, vector<32x1xbf16> -> vector<32x256xbf16>
    %c5 = arith.constant 5 : index
    %c0_29 = arith.constant 0 : index
    %56 = vector.load %arg5[%c5, %c0_29] : memref<9x256xbf16, #tpu.memory_space<vmem>>, vector<1x256xbf16>
    %57 = vector.broadcast %56 : vector<1x256xbf16> to vector<32x256xbf16>
    %58 = arith.mulf %55, %57 : vector<32x256xbf16>
    %c5_30 = arith.constant 5 : index
    %c0_31 = arith.constant 0 : index
    %c0_32 = arith.constant 0 : index
    %59 = vector.load %arg3[%c5_30, %c0_31, %c0_32] : memref<9x32x32xbf16, #tpu.memory_space<vmem>>, vector<1x32x32xbf16>
    %60 = vector.shape_cast %59 : vector<1x32x32xbf16> to vector<32x32xbf16>
    %cst_33 = arith.constant dense<0.000000e+00> : vector<32x256xf32>
    %61 = tpu.matmul %60, %58, %cst_33 {dimension_numbers = #tpu.dot_dimension_numbers<[1], [0], [0], [1], [0, 0, 1, 1], [], []>} : vector<32x32xbf16>, vector<32x256xbf16>, vector<32x256xf32> -> vector<32x256xf32>
    %62 = arith.addf %52, %61 : vector<32x256xf32>
    %63 = vector.extract_strided_slice %9 {offsets = [0, 15], sizes = [32, 241], strides = [1, 1]} : vector<32x256xbf16> to vector<32x241xbf16>
    %64 = vector.extract_strided_slice %9 {offsets = [0, 0], sizes = [32, 15], strides = [1, 1]} : vector<32x256xbf16> to vector<32x15xbf16>
    %65 = tpu.concatenate %63, %64 in 1 : vector<32x241xbf16>, vector<32x15xbf16> -> vector<32x256xbf16>
    %c6 = arith.constant 6 : index
    %c0_34 = arith.constant 0 : index
    %66 = vector.load %arg5[%c6, %c0_34] : memref<9x256xbf16, #tpu.memory_space<vmem>>, vector<1x256xbf16>
    %67 = vector.broadcast %66 : vector<1x256xbf16> to vector<32x256xbf16>
    %68 = arith.mulf %65, %67 : vector<32x256xbf16>
    %c6_35 = arith.constant 6 : index
    %c0_36 = arith.constant 0 : index
    %c0_37 = arith.constant 0 : index
    %69 = vector.load %arg3[%c6_35, %c0_36, %c0_37] : memref<9x32x32xbf16, #tpu.memory_space<vmem>>, vector<1x32x32xbf16>
    %70 = vector.shape_cast %69 : vector<1x32x32xbf16> to vector<32x32xbf16>
    %cst_38 = arith.constant dense<0.000000e+00> : vector<32x256xf32>
    %71 = tpu.matmul %70, %68, %cst_38 {dimension_numbers = #tpu.dot_dimension_numbers<[1], [0], [0], [1], [0, 0, 1, 1], [], []>} : vector<32x32xbf16>, vector<32x256xbf16>, vector<32x256xf32> -> vector<32x256xf32>
    %72 = arith.addf %62, %71 : vector<32x256xf32>
    %73 = vector.extract_strided_slice %9 {offsets = [0, 16], sizes = [32, 240], strides = [1, 1]} : vector<32x256xbf16> to vector<32x240xbf16>
    %74 = vector.extract_strided_slice %9 {offsets = [0, 0], sizes = [32, 16], strides = [1, 1]} : vector<32x256xbf16> to vector<32x16xbf16>
    %75 = tpu.concatenate %73, %74 in 1 : vector<32x240xbf16>, vector<32x16xbf16> -> vector<32x256xbf16>
    %c7 = arith.constant 7 : index
    %c0_39 = arith.constant 0 : index
    %76 = vector.load %arg5[%c7, %c0_39] : memref<9x256xbf16, #tpu.memory_space<vmem>>, vector<1x256xbf16>
    %77 = vector.broadcast %76 : vector<1x256xbf16> to vector<32x256xbf16>
    %78 = arith.mulf %75, %77 : vector<32x256xbf16>
    %c7_40 = arith.constant 7 : index
    %c0_41 = arith.constant 0 : index
    %c0_42 = arith.constant 0 : index
    %79 = vector.load %arg3[%c7_40, %c0_41, %c0_42] : memref<9x32x32xbf16, #tpu.memory_space<vmem>>, vector<1x32x32xbf16>
    %80 = vector.shape_cast %79 : vector<1x32x32xbf16> to vector<32x32xbf16>
    %cst_43 = arith.constant dense<0.000000e+00> : vector<32x256xf32>
    %81 = tpu.matmul %80, %78, %cst_43 {dimension_numbers = #tpu.dot_dimension_numbers<[1], [0], [0], [1], [0, 0, 1, 1], [], []>} : vector<32x32xbf16>, vector<32x256xbf16>, vector<32x256xf32> -> vector<32x256xf32>
    %82 = arith.addf %72, %81 : vector<32x256xf32>
    %83 = vector.extract_strided_slice %9 {offsets = [0, 17], sizes = [32, 239], strides = [1, 1]} : vector<32x256xbf16> to vector<32x239xbf16>
    %84 = vector.extract_strided_slice %9 {offsets = [0, 0], sizes = [32, 17], strides = [1, 1]} : vector<32x256xbf16> to vector<32x17xbf16>
    %85 = tpu.concatenate %83, %84 in 1 : vector<32x239xbf16>, vector<32x17xbf16> -> vector<32x256xbf16>
    %c8 = arith.constant 8 : index
    %c0_44 = arith.constant 0 : index
    %86 = vector.load %arg5[%c8, %c0_44] : memref<9x256xbf16, #tpu.memory_space<vmem>>, vector<1x256xbf16>
    %87 = vector.broadcast %86 : vector<1x256xbf16> to vector<32x256xbf16>
    %88 = arith.mulf %85, %87 : vector<32x256xbf16>
    %c8_45 = arith.constant 8 : index
    %c0_46 = arith.constant 0 : index
    %c0_47 = arith.constant 0 : index
    %89 = vector.load %arg3[%c8_45, %c0_46, %c0_47] : memref<9x32x32xbf16, #tpu.memory_space<vmem>>, vector<1x32x32xbf16>
    %90 = vector.shape_cast %89 : vector<1x32x32xbf16> to vector<32x32xbf16>
    %cst_48 = arith.constant dense<0.000000e+00> : vector<32x256xf32>
    %91 = tpu.matmul %90, %88, %cst_48 {dimension_numbers = #tpu.dot_dimension_numbers<[1], [0], [0], [1], [0, 0, 1, 1], [], []>} : vector<32x32xbf16>, vector<32x256xbf16>, vector<32x256xf32> -> vector<32x256xf32>
    %92 = arith.addf %82, %91 : vector<32x256xf32>
    %c0_49 = arith.constant 0 : index
    %c0_50 = arith.constant 0 : index
    %93 = vector.load %arg4[%c0_49, %c0_50] : memref<32x1xf32, #tpu.memory_space<vmem>>, vector<32x1xf32>
    %94 = vector.broadcast %93 : vector<32x1xf32> to vector<32x256xf32>
    %95 = arith.addf %92, %94 : vector<32x256xf32>
    %cst_51 = arith.constant 0.000000e+00 : f32
    %96 = vector.broadcast %cst_51 : f32 to vector<32x256xf32>
    %97 = arith.maximumf %95, %96 : vector<32x256xf32>
    %98 = arith.truncf %97 : vector<32x256xf32> to vector<32x256xbf16>
    %c0_52 = arith.constant 0 : index
    %c0_53 = arith.constant 0 : index
    %c0_54 = arith.constant 0 : index
    %99 = vector.load %arg6[%c0_52, %c0_53, %c0_54] : memref<1x32x256xbf16, #tpu.memory_space<vmem>>, vector<1x32x256xbf16>
    %100 = vector.shape_cast %99 : vector<1x32x256xbf16> to vector<32x256xbf16>
    %101 = vector.shape_cast %98 : vector<32x256xbf16> to vector<1x32x256xbf16>
    tpu.vector_store %arg6[%c0_52, %c0_53, %c0_54], %101 {strides = array<i32>} : memref<1x32x256xbf16, #tpu.memory_space<vmem>>, vector<1x32x256xbf16>,
    %102 = arith.extf %98 : vector<32x256xbf16> to vector<32x256xf32>
    %cst_55 = arith.constant dense<0.000000e+00> : vector<32xf32>
    %103 = vector.multi_reduction <add>, %102, %cst_55 [1] : vector<32x256xf32> to vector<32xf32>
    %104 = vector.shape_cast %103 : vector<32xf32> to vector<32x1xf32>
    %c0_56 = arith.constant 0 : index
    %c0_57 = arith.constant 0 : index
    %c0_58 = arith.constant 0 : index
    %105 = vector.load %arg7[%c0_56, %c0_57, %c0_58] : memref<1x32x2xf32, #tpu.memory_space<vmem>>, vector<1x32x1xf32>
    %106 = vector.shape_cast %105 : vector<1x32x1xf32> to vector<32x1xf32>
    %107 = vector.shape_cast %104 : vector<32x1xf32> to vector<1x32x1xf32>
    tpu.vector_store %arg7[%c0_56, %c0_57, %c0_58], %107 {strides = array<i32>} : memref<1x32x2xf32, #tpu.memory_space<vmem>>, vector<1x32x1xf32>,
    %108 = arith.mulf %102, %102 : vector<32x256xf32>
    %cst_59 = arith.constant dense<0.000000e+00> : vector<32xf32>
    %109 = vector.multi_reduction <add>, %108, %cst_59 [1] : vector<32x256xf32> to vector<32xf32>
    %110 = vector.shape_cast %109 : vector<32xf32> to vector<32x1xf32>
    %c0_60 = arith.constant 0 : index
    %c0_61 = arith.constant 0 : index
    %c1_62 = arith.constant 1 : index
    %111 = vector.load %arg7[%c0_60, %c0_61, %c1_62] : memref<1x32x2xf32, #tpu.memory_space<vmem>>, vector<1x32x1xf32>
    %112 = vector.shape_cast %111 : vector<1x32x1xf32> to vector<32x1xf32>
    %113 = vector.shape_cast %110 : vector<32x1xf32> to vector<1x32x1xf32>
    tpu.vector_store %arg7[%c0_60, %c0_61, %c1_62], %113 {strides = array<i32>} : memref<1x32x2xf32, #tpu.memory_space<vmem>>, vector<1x32x1xf32>,
    return
  }
  func.func @transform_0(%arg0: i32) -> (i32, i32, i32) {
    %c0_i32 = arith.constant 0 : i32
    %c0_i32_0 = arith.constant 0 : i32
    %c0_i32_1 = arith.constant 0 : i32
    return %arg0, %c0_i32, %c0_i32_0 : i32, i32, i32
  }
  func.func @transform_1(%arg0: i32) -> (i32, i32) {
    %c0_i32 = arith.constant 0 : i32
    %c0_i32_0 = arith.constant 0 : i32
    %c0_i32_1 = arith.constant 0 : i32
    return %c0_i32, %c0_i32_0 : i32, i32
  }
  func.func @transform_2(%arg0: i32) -> (i32, i32, i32) {
    %c0_i32 = arith.constant 0 : i32
    %c0_i32_0 = arith.constant 0 : i32
    %c0_i32_1 = arith.constant 0 : i32
    %c0_i32_2 = arith.constant 0 : i32
    return %c0_i32, %c0_i32_0, %c0_i32_1 : i32, i32, i32
  }
  func.func @transform_3(%arg0: i32) -> (i32, i32) {
    %c0_i32 = arith.constant 0 : i32
    %c0_i32_0 = arith.constant 0 : i32
    %c0_i32_1 = arith.constant 0 : i32
    return %c0_i32, %c0_i32_0 : i32, i32
  }
  func.func @transform_4(%arg0: i32) -> (i32, i32) {
    %c0_i32 = arith.constant 0 : i32
    %c0_i32_0 = arith.constant 0 : i32
    %c0_i32_1 = arith.constant 0 : i32
    return %c0_i32, %c0_i32_0 : i32, i32
  }
  func.func @transform_5(%arg0: i32) -> (i32, i32, i32) {
    %c0_i32 = arith.constant 0 : i32
    %c0_i32_0 = arith.constant 0 : i32
    %c0_i32_1 = arith.constant 0 : i32
    return %arg0, %c0_i32, %c0_i32_0 : i32, i32, i32
  }
  func.func @transform_6(%arg0: i32) -> (i32, i32, i32) {
    %c0_i32 = arith.constant 0 : i32
    %c0_i32_0 = arith.constant 0 : i32
    %c0_i32_1 = arith.constant 0 : i32
    return %arg0, %c0_i32, %c0_i32_0 : i32, i32, i32
  }
}

module attributes {stable_mosaic.version = 11 : i64} {
  func.func @_final_kernel(%arg0: i32, %arg1: memref<1x32x256xbf16, #tpu.memory_space<vmem>>, %arg2: memref<2x32xbf16, #tpu.memory_space<vmem>>, %arg3: memref<2x1xf32, #tpu.memory_space<vmem>>, %arg4: memref<1x2x256xf32, #tpu.memory_space<vmem>>) attributes {dimension_semantics = [#tpu.dimension_semantics<parallel>], iteration_bounds = array<i64: 2>, scalar_prefetch = 0 : i64, scratch_operands = 0 : i64, tpu.core_type = #tpu.core_type<tc>, window_params = [{transform_indices = @transform_0, window_bounds = array<i64: 1, 32, 256>}, {pipeline_mode = #tpu.pipeline_mode<synchronous>, transform_indices = @transform_1, window_bounds = array<i64: 2, 32>}, {pipeline_mode = #tpu.pipeline_mode<synchronous>, transform_indices = @transform_2, window_bounds = array<i64: 2, 1>}, {transform_indices = @transform_3, window_bounds = array<i64: 1, 2, 256>}]} {
    %c0 = arith.constant 0 : index
    %c0_0 = arith.constant 0 : index
    %0 = vector.load %arg2[%c0, %c0_0] : memref<2x32xbf16, #tpu.memory_space<vmem>>, vector<2x32xbf16>
    %c0_1 = arith.constant 0 : index
    %c0_2 = arith.constant 0 : index
    %c0_3 = arith.constant 0 : index
    %1 = vector.load %arg1[%c0_1, %c0_2, %c0_3] : memref<1x32x256xbf16, #tpu.memory_space<vmem>>, vector<1x32x256xbf16>
    %2 = vector.shape_cast %1 : vector<1x32x256xbf16> to vector<32x256xbf16>
    %cst = arith.constant dense<0.000000e+00> : vector<2x256xf32>
    %3 = tpu.matmul %0, %2, %cst {dimension_numbers = #tpu.dot_dimension_numbers<[1], [0], [0], [1], [0, 0, 1, 1], [], []>} : vector<2x32xbf16>, vector<32x256xbf16>, vector<2x256xf32> -> vector<2x256xf32>
    %c0_4 = arith.constant 0 : index
    %c0_5 = arith.constant 0 : index
    %4 = vector.load %arg3[%c0_4, %c0_5] : memref<2x1xf32, #tpu.memory_space<vmem>>, vector<2x1xf32>
    %5 = vector.broadcast %4 : vector<2x1xf32> to vector<2x256xf32>
    %6 = arith.addf %3, %5 : vector<2x256xf32>
    %c0_6 = arith.constant 0 : index
    %c0_7 = arith.constant 0 : index
    %c0_8 = arith.constant 0 : index
    %7 = vector.load %arg4[%c0_6, %c0_7, %c0_8] : memref<1x2x256xf32, #tpu.memory_space<vmem>>, vector<1x2x256xf32>
    %8 = vector.shape_cast %7 : vector<1x2x256xf32> to vector<2x256xf32>
    %9 = vector.shape_cast %6 : vector<2x256xf32> to vector<1x2x256xf32>
    tpu.vector_store %arg4[%c0_6, %c0_7, %c0_8], %9 {strides = array<i32>} : memref<1x2x256xf32, #tpu.memory_space<vmem>>, vector<1x2x256xf32>,
    return
  }
  func.func @transform_0(%arg0: i32) -> (i32, i32, i32) {
    %c0_i32 = arith.constant 0 : i32
    %c0_i32_0 = arith.constant 0 : i32
    %c0_i32_1 = arith.constant 0 : i32
    return %arg0, %c0_i32, %c0_i32_0 : i32, i32, i32
  }
  func.func @transform_1(%arg0: i32) -> (i32, i32) {
    %c0_i32 = arith.constant 0 : i32
    %c0_i32_0 = arith.constant 0 : i32
    %c0_i32_1 = arith.constant 0 : i32
    return %c0_i32, %c0_i32_0 : i32, i32
  }
  func.func @transform_2(%arg0: i32) -> (i32, i32) {
    %c0_i32 = arith.constant 0 : i32
    %c0_i32_0 = arith.constant 0 : i32
    %c0_i32_1 = arith.constant 0 : i32
    return %c0_i32, %c0_i32_0 : i32, i32
  }
  func.func @transform_3(%arg0: i32) -> (i32, i32, i32) {
    %c0_i32 = arith.constant 0 : i32
    %c0_i32_0 = arith.constant 0 : i32
    %c0_i32_1 = arith.constant 0 : i32
    return %arg0, %c0_i32, %c0_i32_0 : i32, i32, i32
  }
}

</mosaic_0001>

<llo_original>
// kernel: mul.11
$region0: #{mul.11}
  #allocation0 [shape = 's32[1]{0}', space=sflag, size = 0x4, scoped, tag = 'scoped memory for mul.11']
  %s0 = inlined_call_operand.vmem [shape: f32[32], index: 0, kind: input, shape index: {}]
  %s1 = inlined_call_operand.vmem [shape: f32[32], index: 1, kind: input, shape index: {}]
  %s2 = inlined_call_operand.vmem [shape: f32[32], index: 2, kind: output, shape index: {}]
  %v3 = vld [vmem:[%s0] sm:$0x1]
  %v4 = vld [vmem:[%s1] sm:$0x1]
  %5 = xla_tuple %v3, %v4
  %6 = xla_tuple %5
  %v7 = vmul.f32 %v3, %v4
  %8 = xla_tuple %v7
  %9 = vst [vmem:[%s2] sm:$0x1] %v7

// kernel: unet_forward.5
$region0: #{unet_forward.5}
  #allocation0 [shape = 'u32[]', space=smem, size = 0x4, offset = 0x4, fixed_abs, tag = 'smem constant byte address 0x4 - core index']
  #allocation1 [shape = 'u32[144,128]{1,0:T(1,128)}', space=vmem, size = 0x12000, scoped, tag = 'internal scratch']
  %s0 = inlined_call_operand.vmem [shape: bf16[2,32,256], index: 0, kind: input, shape index: {}]
  %s1 = inlined_call_operand.vmem [shape: bf16[2,32], index: 1, kind: input, shape index: {}]
  %s2 = inlined_call_operand.vmem [shape: f32[2,1], index: 2, kind: input, shape index: {}]
  %s3 = inlined_call_operand.vmem [shape: f32[2,2,256], index: 3, kind: output, shape index: {}]
  %s4 = sld [smem:[#allocation0]]
  $region45: #{unet_forward.5} parent=0
    _
  %s6 = ssub.s32 1, %s4
  %s7 = scalar_select 0, %s6, %s4
  loop: start=0, step=1, limit=4
  $region2: #{unet_forward.5} parent=0 // loop_pre_header
    _
  $region3: #{unet_forward.5} parent=0 // loop_header
    %s9 = sphi 0, %s13
    %p10 = scmp.ge.s32.totalorder %s9, 4
    %s19 = sphi 0, %s21
    %s22 = sphi 0, %s19
    %s23 = sphi 0, %s22
    %s39 = sphi 0, %s23
    %s43 = sphi 0, %s43
    %s45 = sphi 0, %s43
    %s46 = sphi 0, %s45
    %s60 = sphi 0, %s46
    %s64 = sphi 0, %s64
    %s66 = sphi 0, %s64
    %s67 = sphi 0, %s66
    %s81 = sphi 0, %s67
    %s87 = sphi 0, %s89
    %s90 = sphi 0, %s87
    %s91 = sphi 0, %s90
    %s107 = sphi 0, %s91
  $region4: #{unet_forward.5} parent=0 // loop_header_branch
    %12 = sbr.rel (%p10) target = $region8
  $region5: #{unet_forward.5} parent=0 // loop_body
    %s14 = ssub.s32 %s9, 1
    %s15 = ssub.s32 %s9, 2
    %s16 = sadd.s32 %s9, 1
    %s17 = ssub.s32 %s9, %s16
    %p18 = scmp.eq.s32.totalorder %s17, 0
    %s20 = sadd.s32 %s19, 1
    %s21 = scalar_select %p18, %s19, %s20
    %p24 = pneg %p18
    %p25 = scmp.eq.s32.totalorder %s9, 1
    %p26 = por %p24, %p25
    %p27 = scmp.ne.s32.totalorder %s19, %s22
    %p28 = scmp.eq.s32.totalorder %s9, 0
    %p29 = por %p27, %p28
    %p30 = scmp.ne.s32.totalorder %s19, %s22
    %p31 = scmp.eq.s32.totalorder %s14, 1
    %p32 = por %p30, %p31
    %p33 = scmp.ne.s32.totalorder %s22, %s23
    %p34 = scmp.eq.s32.totalorder %s14, 0
    %p35 = por %p33, %p34
    %p36 = scmp.ne.s32.totalorder %s22, %s23
    %p37 = scmp.eq.s32.totalorder %s15, 1
    %p38 = por %p36, %p37
    %p40 = scmp.ne.s32.totalorder %s23, %s39
    %p41 = scmp.eq.s32.totalorder %s15, 0
    %p42 = por %p40, %p41
    %s44 = sadd.s32 %s43, 1
    %p47 = scmp.eq.s32.totalorder %s9, 1
    %p48 = scmp.ne.s32.totalorder %s43, %s45
    %p49 = scmp.eq.s32.totalorder %s9, 0
    %p50 = por %p48, %p49
    %p51 = scmp.ne.s32.totalorder %s43, %s45
    %p52 = scmp.eq.s32.totalorder %s14, 1
    %p53 = por %p51, %p52
    %p54 = scmp.ne.s32.totalorder %s45, %s46
    %p55 = scmp.eq.s32.totalorder %s14, 0
    %p56 = por %p54, %p55
    %p57 = scmp.ne.s32.totalorder %s45, %s46
    %p58 = scmp.eq.s32.totalorder %s15, 1
    %p59 = por %p57, %p58
    %p61 = scmp.ne.s32.totalorder %s46, %s60
    %p62 = scmp.eq.s32.totalorder %s15, 0
    %p63 = por %p61, %p62
    %s65 = sadd.s32 %s64, 1
    %p68 = scmp.eq.s32.totalorder %s9, 1
    %p69 = scmp.ne.s32.totalorder %s64, %s66
    %p70 = scmp.eq.s32.totalorder %s9, 0
    %p71 = por %p69, %p70
    %p72 = scmp.ne.s32.totalorder %s64, %s66
    %p73 = scmp.eq.s32.totalorder %s14, 1
    %p74 = por %p72, %p73
    %p75 = scmp.ne.s32.totalorder %s66, %s67
    %p76 = scmp.eq.s32.totalorder %s14, 0
    %p77 = por %p75, %p76
    %p78 = scmp.ne.s32.totalorder %s66, %s67
    %p79 = scmp.eq.s32.totalorder %s15, 1
    %p80 = por %p78, %p79
    %p82 = scmp.ne.s32.totalorder %s67, %s81
    %p83 = scmp.eq.s32.totalorder %s15, 0
    %p84 = por %p82, %p83
    %s85 = ssub.s32 %s9, %s16
    %p86 = scmp.eq.s32.totalorder %s85, 0
    %s88 = sadd.s32 %s87, 1
    %s89 = scalar_select %p86, %s87, %s88
    %p92 = pneg %p86
    %p93 = scmp.eq.s32.totalorder %s9, 1
    %p94 = por %p92, %p93
    %p95 = scmp.ne.s32.totalorder %s87, %s90
    %p96 = scmp.eq.s32.totalorder %s9, 0
    %p97 = por %p95, %p96
    %p98 = scmp.ne.s32.totalorder %s87, %s90
    %p99 = scmp.eq.s32.totalorder %s14, 1
    %p100 = por %p98, %p99
    %p101 = scmp.ne.s32.totalorder %s90, %s91
    %p102 = scmp.eq.s32.totalorder %s14, 0
    %p103 = por %p101, %p102
    %p104 = scmp.ne.s32.totalorder %s90, %s91
    %p105 = scmp.eq.s32.totalorder %s15, 1
    %p106 = por %p104, %p105
    %p108 = scmp.ne.s32.totalorder %s91, %s107
    %p109 = scmp.eq.s32.totalorder %s15, 0
    %p110 = por %p108, %p109
    %p111 = scmp.le.s32.totalorder 1, %s9
    %p112 = scmp.lt.s32.totalorder %s9, 3
    %p113 = pnand %p111, %p112
    %p114 = pneg %p113
    // Predicated region
    $region9: #{unet_forward.5} parent=5 // pred_check
      _
    $region10: #{unet_forward.5} parent=5 // pred_check_branch
      %116 = sbr.rel (%p113) target = $region12
    $region11: #{unet_forward.5} parent=5 // pred_region
      %s117 = ssub.s32 %s9, 1
      // Predicated region
      $region13: #{unet_forward.5} parent=11 // pred_check
        %p118 = pneg %p56
      $region14: #{unet_forward.5} parent=11 // pred_check_branch
        %120 = sbr.rel (%p118) target = $region16
      $region15: #{unet_forward.5} parent=11 // pred_region
        _
      $region16: #{unet_forward.5} parent=11 // pred_fallthru
        _
      // Predicated region
      $region17: #{unet_forward.5} parent=11 // pred_check
        %p121 = pneg %p77
      $region18: #{unet_forward.5} parent=11 // pred_check_branch
        %123 = sbr.rel (%p121) target = $region20
      $region19: #{unet_forward.5} parent=11 // pred_region
        _
      $region20: #{unet_forward.5} parent=11 // pred_fallthru
        _
    $region12: #{unet_forward.5} parent=5 // pred_fallthru
      _
    %p124 = scmp.lt.s32.totalorder %s9, 2
    // Predicated region
    $region21: #{unet_forward.5} parent=5 // pred_check
      %p125 = pneg %p124
    $region22: #{unet_forward.5} parent=5 // pred_check_branch
      %127 = sbr.rel (%p125) target = $region24
    $region23: #{unet_forward.5} parent=5 // pred_region
      // Predicated region
      $region25: #{unet_forward.5} parent=23 // pred_check
        %p128 = pneg %p29
      $region26: #{unet_forward.5} parent=23 // pred_check_branch
        %130 = sbr.rel (%p128) target = $region28
      $region27: #{unet_forward.5} parent=23 // pred_region
        %p131 = scmp.lt.s32.totalorder %s9, 1
        %s132 = scalar_select %p131, %s9, 1
        %s133 = smul.addr %s132, 8
        %s134 = smul.addr %s133, 4
        %s135 = scalar_lea.vmem %s0, %s134
      $region28: #{unet_forward.5} parent=23 // pred_fallthru
        _
    $region24: #{unet_forward.5} parent=5 // pred_fallthru
      _
    %p136 = scmp.le.s32.totalorder 1, %s9
    %p137 = scmp.lt.s32.totalorder %s9, 3
    %p138 = pnand %p136, %p137
    %p139 = pneg %p138
    // Predicated region
    $region29: #{unet_forward.5} parent=5 // pred_check
      _
    $region30: #{unet_forward.5} parent=5 // pred_check_branch
      %141 = sbr.rel (%p138) target = $region32
    $region31: #{unet_forward.5} parent=5 // pred_region
      %s142 = ssub.s32 %s9, 1
      %p143 = scmp.lt.s32.totalorder %s14, 1
      %s144 = scalar_select %p143, %s14, 1
      %s145 = smul.addr %s144, 8
      %s146 = smul.addr %s145, 4
      %s147 = scalar_lea.vmem %s0, %s146
      %p148 = pneg %p35
      %p149 = pneg %p32
      %p150 = pneg %p56
      %p151 = pneg %p53
      %p152 = pneg %p77
      %p153 = pneg %p74
      %p154 = pneg %p103
      %p155 = pneg %p100
      %p156 = scmp.lt.s32.totalorder %s14, 1
      %s157 = scalar_select %p156, %s14, 1
      %s158 = smul.addr %s157, 2
      %s159 = smul.addr %s158, 2
      %s160 = scalar_lea.vmem %s3, %s159
      %p161 = scmp.lt.s32.totalorder %s14, 1
      %s162 = scalar_select %p161, %s14, 1
      %s163 = smul.addr %s162, 8
      %s164 = smul.addr %s163, 4
      %s165 = scalar_lea.vmem %s0, %s164
      %p166 = scmp.lt.s32.totalorder %s14, 1
      %s167 = scalar_select %p166, %s14, 1
      %s168 = smul.addr %s167, 2
      %s169 = smul.addr %s168, 2
      %s170 = scalar_lea.vmem %s3, %s169
      %v172 = vld [vmem:[%s1] sm:$0x1]
      %v173 = vld [vmem:[%s165] sm:$0xff]
      %v174 = vld [vmem:[%s165 + $0x8] sm:$0xff]
      %v175 = vld [vmem:[%s165 + $0x10] sm:$0xff]
      %v176 = vld [vmem:[%s165 + $0x18] sm:$0xff]
      %v177 = vld [vmem:[%s2] sm:$0x3]
      %179 = vset.pattern.permute.xlu0 0
      %180 = vperm.xlu0 %179, %v177
      %v181 = vpop.permute.xlu0 %180
      %v187 = vunpack.c.l.b16 %v173
      %v188 = vunpack.c.h.b16 %v173
      %v189 = vunpack.c.l.b16 %v174
      %v190 = vunpack.c.h.b16 %v174
      %v191 = vunpack.c.l.b16 %v175
      %v192 = vunpack.c.h.b16 %v175
      %v193 = vunpack.c.l.b16 %v176
      %v194 = vunpack.c.h.b16 %v176
      %v195 = vpack.c.b16 %v189, %v187
      %v196 = vpack.c.b16 %v190, %v188
      %v197 = vpack.c.b16 %v193, %v191
      %v198 = vpack.c.b16 %v194, %v192
      %vm203 = vcmask 261120
      %v205 = vsel %vm203, %v172, 0
      %207 = vmatprep.subr.bf16.mxu0 %v196
      %208 = vmatpush1.bf16.msra.mxu0 %v195
      %209 = vmatprep.subr.bf16.mxu0 %v198
      %210 = vmatpush1.bf16.msra.mxu0 %v197
      %211 = vmatprep.subr.bf16.mxu0 0
      %212 = vmatpush1.bf16.msra.mxu0 0
      %213 = vmatprep.subr.bf16.mxu0 0
      %214 = vmatpush1.bf16.msra.mxu0 0
      %215 = vmatprep.subr.bf16.mxu0 0
      %216 = vmatpush1.bf16.msra.mxu0 0
      %217 = vmatprep.subr.bf16.mxu0 0
      %218 = vmatpush1.bf16.msra.mxu0 0
      %219 = vmatprep.subr.bf16.mxu0 0
      %220 = vmatpush1.bf16.msra.mxu0 0
      %221 = vmatprep.subr.bf16.mxu0 0
      %222 = vmatpush1.bf16.msra.mxu0 0
      %223 = vmatprep.subr.bf16.mxu0 0
      %224 = vmatpush1.bf16.msra.mxu0 0
      %225 = vmatprep.subr.bf16.mxu0 0
      %226 = vmatpush1.bf16.msra.mxu0 0
      %227 = vmatprep.subr.bf16.mxu0 0
      %228 = vmatpush1.bf16.msra.mxu0 0
      %229 = vmatprep.subr.bf16.mxu0 0
      %230 = vmatpush1.bf16.msra.mxu0 0
      %231 = vmatprep.subr.bf16.mxu0 0
      %232 = vmatpush1.bf16.msra.mxu0 0
      %233 = vmatprep.subr.bf16.mxu0 0
      %234 = vmatpush1.bf16.msra.mxu0 0
      %235 = vmatprep.subr.bf16.mxu0 0
      %236 = vmatpush1.bf16.msra.mxu0 0
      %237 = vmatprep.subr.bf16.mxu0 0
      %238 = vmatpush1.bf16.msra.mxu0 0
      %239 = vmatprep.mubr.bf16.mxu0 0
      %240 = vmatmul.mubr.bf16.gmra.mrb[0].mxu0 %v205
      %v241 = vpop.f32.mrb[0].mxu0
      %v242 = vadd.f32 %v181, %v241
      %v243 = vpop.f32.mrb[0].mxu0
      %v244 = vadd.f32 %v181, %v243
      %v245 = vpop.f32.mrb[0].mxu0
      %v246 = vpop.f32.mrb[0].mxu0
      %247 = vdwg.mxu0
      %v250 = vcombine.low %v242, %v244
      %v252 = vunpack.c.l.s4 1983009808
      %v253 = vunpack.c.0.s8 %v252
      %v254 = vlaneseq
      %v255 = vshrl.u32 %v254, 7
      %v256 = vsub.s32 %v253, %v255
      %v257 = vrot.slane %v250, %v256
      %259 = vst [vmem:[%s170] sm:$0xf] %v257
      %p260 = scmp.lt.s32.totalorder %s14, 1
      %s261 = scalar_select %p260, %s14, 1
      %s262 = smul.addr %s261, 2
      %s263 = smul.addr %s262, 2
      %s264 = scalar_lea.vmem %s3, %s263
      // Predicated region
      $region33: #{unet_forward.5} parent=31 // pred_check
        %p265 = pneg %p100
      $region34: #{unet_forward.5} parent=31 // pred_check_branch
        %267 = sbr.rel (%p265) target = $region36
      $region35: #{unet_forward.5} parent=31 // pred_region
        _
      $region36: #{unet_forward.5} parent=31 // pred_fallthru
        _
    $region32: #{unet_forward.5} parent=5 // pred_fallthru
      _
    %p268 = scmp.le.s32.totalorder 2, %s9
    // Predicated region
    $region37: #{unet_forward.5} parent=5 // pred_check
      %p269 = pneg %p268
    $region38: #{unet_forward.5} parent=5 // pred_check_branch
      %271 = sbr.rel (%p269) target = $region40
    $region39: #{unet_forward.5} parent=5 // pred_region
      %s272 = ssub.s32 %s9, 2
      // Predicated region
      $region41: #{unet_forward.5} parent=39 // pred_check
        %p273 = pneg %p106
      $region42: #{unet_forward.5} parent=39 // pred_check_branch
        %275 = sbr.rel (%p273) target = $region44
      $region43: #{unet_forward.5} parent=39 // pred_region
        %p276 = scmp.lt.s32.totalorder %s15, 1
        %s277 = scalar_select %p276, %s15, 1
        %s278 = smul.addr %s277, 2
        %s279 = smul.addr %s278, 2
        %s280 = scalar_lea.vmem %s3, %s279
      $region44: #{unet_forward.5} parent=39 // pred_fallthru
        _
    $region40: #{unet_forward.5} parent=5 // pred_fallthru
      _
  $region6: #{unet_forward.5} parent=0 // loop_footer
    %s13 = sadd.s32 1, %s9
  $region7: #{unet_forward.5} parent=0 // loop_footer_branch
    %8 = sbr.rel target = $region3
  $region8: #{unet_forward.5} parent=0 // loop_exit
    _

// kernel: unet_forward.4
$region0: #{unet_forward.4}
  #allocation0 [shape = 'u32[]', space=smem, size = 0x4, offset = 0x4, fixed_abs, tag = 'smem constant byte address 0x4 - core index']
  #allocation1 [shape = 'u32[144,128]{1,0:T(1,128)}', space=vmem, size = 0x12000, scoped, tag = 'internal scratch']
  %s0 = inlined_call_operand.vmem [shape: bf16[2,32,256], index: 0, kind: input, shape index: {}]
  %s1 = inlined_call_operand.vmem [shape: f32[32,2], index: 1, kind: input, shape index: {}]
  %s2 = inlined_call_operand.vmem [shape: bf16[9,32,32], index: 2, kind: input, shape index: {}]
  %s3 = inlined_call_operand.vmem [shape: f32[32,1], index: 3, kind: input, shape index: {}]
  %s4 = inlined_call_operand.vmem [shape: bf16[9,256], index: 4, kind: input, shape index: {}]
  %s5 = inlined_call_operand.vmem [shape: bf16[2,32,256], index: 5, kind: output, shape index: {0}]
  %s6 = inlined_call_operand.vmem [shape: f32[2,32,2], index: 6, kind: output, shape index: {1}]
  %7 = xla_tuple %s5, %s6
  %s8 = sld [smem:[#allocation0]]
  $region61: #{unet_forward.4} parent=0
    _
  %s10 = ssub.s32 1, %s8
  %s11 = scalar_select 0, %s10, %s8
  loop: start=0, step=1, limit=4
  $region2: #{unet_forward.4} parent=0 // loop_pre_header
    _
  $region3: #{unet_forward.4} parent=0 // loop_header
    %s13 = sphi 0, %s17
    %p14 = scmp.ge.s32.totalorder %s13, 4
    %s23 = sphi 0, %s25
    %s26 = sphi 0, %s23
    %s27 = sphi 0, %s26
    %s43 = sphi 0, %s27
    %s47 = sphi 0, %s47
    %s49 = sphi 0, %s47
    %s50 = sphi 0, %s49
    %s64 = sphi 0, %s50
    %s68 = sphi 0, %s68
    %s70 = sphi 0, %s68
    %s71 = sphi 0, %s70
    %s85 = sphi 0, %s71
    %s89 = sphi 0, %s89
    %s91 = sphi 0, %s89
    %s92 = sphi 0, %s91
    %s106 = sphi 0, %s92
    %s110 = sphi 0, %s110
    %s112 = sphi 0, %s110
    %s113 = sphi 0, %s112
    %s127 = sphi 0, %s113
    %s133 = sphi 0, %s135
    %s136 = sphi 0, %s133
    %s137 = sphi 0, %s136
    %s153 = sphi 0, %s137
    %s159 = sphi 0, %s161
    %s162 = sphi 0, %s159
    %s163 = sphi 0, %s162
    %s179 = sphi 0, %s163
  $region4: #{unet_forward.4} parent=0 // loop_header_branch
    %16 = sbr.rel (%p14) target = $region8
  $region5: #{unet_forward.4} parent=0 // loop_body
    %s18 = ssub.s32 %s13, 1
    %s19 = ssub.s32 %s13, 2
    %s20 = sadd.s32 %s13, 1
    %s21 = ssub.s32 %s13, %s20
    %p22 = scmp.eq.s32.totalorder %s21, 0
    %s24 = sadd.s32 %s23, 1
    %s25 = scalar_select %p22, %s23, %s24
    %p28 = pneg %p22
    %p29 = scmp.eq.s32.totalorder %s13, 1
    %p30 = por %p28, %p29
    %p31 = scmp.ne.s32.totalorder %s23, %s26
    %p32 = scmp.eq.s32.totalorder %s13, 0
    %p33 = por %p31, %p32
    %p34 = scmp.ne.s32.totalorder %s23, %s26
    %p35 = scmp.eq.s32.totalorder %s18, 1
    %p36 = por %p34, %p35
    %p37 = scmp.ne.s32.totalorder %s26, %s27
    %p38 = scmp.eq.s32.totalorder %s18, 0
    %p39 = por %p37, %p38
    %p40 = scmp.ne.s32.totalorder %s26, %s27
    %p41 = scmp.eq.s32.totalorder %s19, 1
    %p42 = por %p40, %p41
    %p44 = scmp.ne.s32.totalorder %s27, %s43
    %p45 = scmp.eq.s32.totalorder %s19, 0
    %p46 = por %p44, %p45
    %s48 = sadd.s32 %s47, 1
    %p51 = scmp.eq.s32.totalorder %s13, 1
    %p52 = scmp.ne.s32.totalorder %s47, %s49
    %p53 = scmp.eq.s32.totalorder %s13, 0
    %p54 = por %p52, %p53
    %p55 = scmp.ne.s32.totalorder %s47, %s49
    %p56 = scmp.eq.s32.totalorder %s18, 1
    %p57 = por %p55, %p56
    %p58 = scmp.ne.s32.totalorder %s49, %s50
    %p59 = scmp.eq.s32.totalorder %s18, 0
    %p60 = por %p58, %p59
    %p61 = scmp.ne.s32.totalorder %s49, %s50
    %p62 = scmp.eq.s32.totalorder %s19, 1
    %p63 = por %p61, %p62
    %p65 = scmp.ne.s32.totalorder %s50, %s64
    %p66 = scmp.eq.s32.totalorder %s19, 0
    %p67 = por %p65, %p66
    %s69 = sadd.s32 %s68, 1
    %p72 = scmp.eq.s32.totalorder %s13, 1
    %p73 = scmp.ne.s32.totalorder %s68, %s70
    %p74 = scmp.eq.s32.totalorder %s13, 0
    %p75 = por %p73, %p74
    %p76 = scmp.ne.s32.totalorder %s68, %s70
    %p77 = scmp.eq.s32.totalorder %s18, 1
    %p78 = por %p76, %p77
    %p79 = scmp.ne.s32.totalorder %s70, %s71
    %p80 = scmp.eq.s32.totalorder %s18, 0
    %p81 = por %p79, %p80
    %p82 = scmp.ne.s32.totalorder %s70, %s71
    %p83 = scmp.eq.s32.totalorder %s19, 1
    %p84 = por %p82, %p83
    %p86 = scmp.ne.s32.totalorder %s71, %s85
    %p87 = scmp.eq.s32.totalorder %s19, 0
    %p88 = por %p86, %p87
    %s90 = sadd.s32 %s89, 1
    %p93 = scmp.eq.s32.totalorder %s13, 1
    %p94 = scmp.ne.s32.totalorder %s89, %s91
    %p95 = scmp.eq.s32.totalorder %s13, 0
    %p96 = por %p94, %p95
    %p97 = scmp.ne.s32.totalorder %s89, %s91
    %p98 = scmp.eq.s32.totalorder %s18, 1
    %p99 = por %p97, %p98
    %p100 = scmp.ne.s32.totalorder %s91, %s92
    %p101 = scmp.eq.s32.totalorder %s18, 0
    %p102 = por %p100, %p101
    %p103 = scmp.ne.s32.totalorder %s91, %s92
    %p104 = scmp.eq.s32.totalorder %s19, 1
    %p105 = por %p103, %p104
    %p107 = scmp.ne.s32.totalorder %s92, %s106
    %p108 = scmp.eq.s32.totalorder %s19, 0
    %p109 = por %p107, %p108
    %s111 = sadd.s32 %s110, 1
    %p114 = scmp.eq.s32.totalorder %s13, 1
    %p115 = scmp.ne.s32.totalorder %s110, %s112
    %p116 = scmp.eq.s32.totalorder %s13, 0
    %p117 = por %p115, %p116
    %p118 = scmp.ne.s32.totalorder %s110, %s112
    %p119 = scmp.eq.s32.totalorder %s18, 1
    %p120 = por %p118, %p119
    %p121 = scmp.ne.s32.totalorder %s112, %s113
    %p122 = scmp.eq.s32.totalorder %s18, 0
    %p123 = por %p121, %p122
    %p124 = scmp.ne.s32.totalorder %s112, %s113
    %p125 = scmp.eq.s32.totalorder %s19, 1
    %p126 = por %p124, %p125
    %p128 = scmp.ne.s32.totalorder %s113, %s127
    %p129 = scmp.eq.s32.totalorder %s19, 0
    %p130 = por %p128, %p129
    %s131 = ssub.s32 %s13, %s20
    %p132 = scmp.eq.s32.totalorder %s131, 0
    %s134 = sadd.s32 %s133, 1
    %s135 = scalar_select %p132, %s133, %s134
    %p138 = pneg %p132
    %p139 = scmp.eq.s32.totalorder %s13, 1
    %p140 = por %p138, %p139
    %p141 = scmp.ne.s32.totalorder %s133, %s136
    %p142 = scmp.eq.s32.totalorder %s13, 0
    %p143 = por %p141, %p142
    %p144 = scmp.ne.s32.totalorder %s133, %s136
    %p145 = scmp.eq.s32.totalorder %s18, 1
    %p146 = por %p144, %p145
    %p147 = scmp.ne.s32.totalorder %s136, %s137
    %p148 = scmp.eq.s32.totalorder %s18, 0
    %p149 = por %p147, %p148
    %p150 = scmp.ne.s32.totalorder %s136, %s137
    %p151 = scmp.eq.s32.totalorder %s19, 1
    %p152 = por %p150, %p151
    %p154 = scmp.ne.s32.totalorder %s137, %s153
    %p155 = scmp.eq.s32.totalorder %s19, 0
    %p156 = por %p154, %p155
    %s157 = ssub.s32 %s13, %s20
    %p158 = scmp.eq.s32.totalorder %s157, 0
    %s160 = sadd.s32 %s159, 1
    %s161 = scalar_select %p158, %s159, %s160
    %p164 = pneg %p158
    %p165 = scmp.eq.s32.totalorder %s13, 1
    %p166 = por %p164, %p165
    %p167 = scmp.ne.s32.totalorder %s159, %s162
    %p168 = scmp.eq.s32.totalorder %s13, 0
    %p169 = por %p167, %p168
    %p170 = scmp.ne.s32.totalorder %s159, %s162
    %p171 = scmp.eq.s32.totalorder %s18, 1
    %p172 = por %p170, %p171
    %p173 = scmp.ne.s32.totalorder %s162, %s163
    %p174 = scmp.eq.s32.totalorder %s18, 0
    %p175 = por %p173, %p174
    %p176 = scmp.ne.s32.totalorder %s162, %s163
    %p177 = scmp.eq.s32.totalorder %s19, 1
    %p178 = por %p176, %p177
    %p180 = scmp.ne.s32.totalorder %s163, %s179
    %p181 = scmp.eq.s32.totalorder %s19, 0
    %p182 = por %p180, %p181
    %p183 = scmp.le.s32.totalorder 1, %s13
    %p184 = scmp.lt.s32.totalorder %s13, 3
    %p185 = pnand %p183, %p184
    %p186 = pneg %p185
    // Predicated region
    $region9: #{unet_forward.4} parent=5 // pred_check
      _
    $region10: #{unet_forward.4} parent=5 // pred_check_branch
      %188 = sbr.rel (%p185) target = $region12
    $region11: #{unet_forward.4} parent=5 // pred_region
      %s189 = ssub.s32 %s13, 1
      // Predicated region
      $region13: #{unet_forward.4} parent=11 // pred_check
        %p190 = pneg %p60
      $region14: #{unet_forward.4} parent=11 // pred_check_branch
        %192 = sbr.rel (%p190) target = $region16
      $region15: #{unet_forward.4} parent=11 // pred_region
        _
      $region16: #{unet_forward.4} parent=11 // pred_fallthru
        _
      // Predicated region
      $region17: #{unet_forward.4} parent=11 // pred_check
        %p193 = pneg %p81
      $region18: #{unet_forward.4} parent=11 // pred_check_branch
        %195 = sbr.rel (%p193) target = $region20
      $region19: #{unet_forward.4} parent=11 // pred_region
        _
      $region20: #{unet_forward.4} parent=11 // pred_fallthru
        _
      // Predicated region
      $region21: #{unet_forward.4} parent=11 // pred_check
        %p196 = pneg %p102
      $region22: #{unet_forward.4} parent=11 // pred_check_branch
        %198 = sbr.rel (%p196) target = $region24
      $region23: #{unet_forward.4} parent=11 // pred_region
        _
      $region24: #{unet_forward.4} parent=11 // pred_fallthru
        _
      // Predicated region
      $region25: #{unet_forward.4} parent=11 // pred_check
        %p199 = pneg %p123
      $region26: #{unet_forward.4} parent=11 // pred_check_branch
        %201 = sbr.rel (%p199) target = $region28
      $region27: #{unet_forward.4} parent=11 // pred_region
        _
      $region28: #{unet_forward.4} parent=11 // pred_fallthru
        _
    $region12: #{unet_forward.4} parent=5 // pred_fallthru
      _
    %p202 = scmp.lt.s32.totalorder %s13, 2
    // Predicated region
    $region29: #{unet_forward.4} parent=5 // pred_check
      %p203 = pneg %p202
    $region30: #{unet_forward.4} parent=5 // pred_check_branch
      %205 = sbr.rel (%p203) target = $region32
    $region31: #{unet_forward.4} parent=5 // pred_region
      // Predicated region
      $region33: #{unet_forward.4} parent=31 // pred_check
        %p206 = pneg %p33
      $region34: #{unet_forward.4} parent=31 // pred_check_branch
        %208 = sbr.rel (%p206) target = $region36
      $region35: #{unet_forward.4} parent=31 // pred_region
        %p209 = scmp.lt.s32.totalorder %s13, 1
        %s210 = scalar_select %p209, %s13, 1
        %s211 = smul.addr %s210, 8
        %s212 = smul.addr %s211, 4
        %s213 = scalar_lea.vmem %s0, %s212
      $region36: #{unet_forward.4} parent=31 // pred_fallthru
        _
    $region32: #{unet_forward.4} parent=5 // pred_fallthru
      _
    %p214 = scmp.le.s32.totalorder 1, %s13
    %p215 = scmp.lt.s32.totalorder %s13, 3
    %p216 = pnand %p214, %p215
    %p217 = pneg %p216
    // Predicated region
    $region37: #{unet_forward.4} parent=5 // pred_check
      _
    $region38: #{unet_forward.4} parent=5 // pred_check_branch
      %219 = sbr.rel (%p216) target = $region40
    $region39: #{unet_forward.4} parent=5 // pred_region
      %s220 = ssub.s32 %s13, 1
      %p221 = scmp.lt.s32.totalorder %s18, 1
      %s222 = scalar_select %p221, %s18, 1
      %s223 = smul.addr %s222, 8
      %s224 = smul.addr %s223, 4
      %s225 = scalar_lea.vmem %s0, %s224
      %p226 = pneg %p39
      %p227 = pneg %p36
      %p228 = pneg %p60
      %p229 = pneg %p57
      %p230 = pneg %p81
      %p231 = pneg %p78
      %p232 = pneg %p102
      %p233 = pneg %p99
      %p234 = pneg %p123
      %p235 = pneg %p120
      %p236 = pneg %p149
      %p237 = pneg %p146
      %p238 = scmp.lt.s32.totalorder %s18, 1
      %s239 = scalar_select %p238, %s18, 1
      %s240 = smul.addr %s239, 8
      %s241 = smul.addr %s240, 4
      %s242 = scalar_lea.vmem %s5, %s241
      %p243 = pneg %p175
      %p244 = pneg %p172
      %p245 = scmp.lt.s32.totalorder %s18, 1
      %s246 = scalar_select %p245, %s18, 1
      %s247 = smul.addr %s246, 4
      %s248 = smul.addr %s247, 8
      %s249 = scalar_lea.vmem %s6, %s248
      %p250 = scmp.lt.s32.totalorder %s18, 1
      %s251 = scalar_select %p250, %s18, 1
      %s252 = smul.addr %s251, 8
      %s253 = smul.addr %s252, 4
      %s254 = scalar_lea.vmem %s0, %s253
      %p255 = scmp.lt.s32.totalorder %s18, 1
      %s256 = scalar_select %p255, %s18, 1
      %s257 = smul.addr %s256, 8
      %s258 = smul.addr %s257, 4
      %s259 = scalar_lea.vmem %s5, %s258
      %p260 = scmp.lt.s32.totalorder %s18, 1
      %s261 = scalar_select %p260, %s18, 1
      %s262 = smul.addr %s261, 4
      %s263 = smul.addr %s262, 8
      %s264 = scalar_lea.vmem %s6, %s263
      %v266 = vld [vmem:[%s254] sm:$0xff]
      %v267 = vld [vmem:[%s254 + $0x8] sm:$0xff]
      %v268 = vld [vmem:[%s254 + $0x10] sm:$0xff]
      %v269 = vld [vmem:[%s254 + $0x18] sm:$0xff]
      %v270 = vunpack.c.l.bf16 %v266
      %v271 = vunpack.c.h.bf16 %v266
      %v272 = vunpack.c.l.bf16 %v267
      %v273 = vunpack.c.h.bf16 %v267
      %v274 = vunpack.c.l.bf16 %v268
      %v275 = vunpack.c.h.bf16 %v268
      %v276 = vunpack.c.l.bf16 %v269
      %v277 = vunpack.c.h.bf16 %v269
      %v278 = vld [vmem:[%s1] sm:$0xff]
      %v279 = vld [vmem:[%s1 + $0x8] sm:$0xff]
      %v280 = vld [vmem:[%s1 + $0x10] sm:$0xff]
      %v281 = vld [vmem:[%s1 + $0x18] sm:$0xff]
      %283 = vset.pattern.permute.xlu0 0
      %284 = vperm.xlu0 %283, %v278
      %v285 = vpop.permute.xlu0 %284
      %288 = vset.pattern.permute.xlu0 0
      %289 = vperm.xlu0 %288, %v279
      %v290 = vpop.permute.xlu0 %289
      %293 = vset.pattern.permute.xlu0 0
      %294 = vperm.xlu0 %293, %v280
      %v295 = vpop.permute.xlu0 %294
      %298 = vset.pattern.permute.xlu0 0
      %299 = vperm.xlu0 %298, %v281
      %v300 = vpop.permute.xlu0 %299
      %v302 = vmul.f32 %v270, %v285
      %v303 = vmul.f32 %v271, %v285
      %v304 = vmul.f32 %v272, %v290
      %v305 = vmul.f32 %v273, %v290
      %v306 = vmul.f32 %v274, %v295
      %v307 = vmul.f32 %v275, %v295
      %v308 = vmul.f32 %v276, %v300
      %v309 = vmul.f32 %v277, %v300
      %310 = vset.pattern.permute.xlu0 1
      %311 = vperm.xlu0 %310, %v278
      %v312 = vpop.permute.xlu0 %311
      %314 = vset.pattern.permute.xlu0 1
      %315 = vperm.xlu0 %314, %v279
      %v316 = vpop.permute.xlu0 %315
      %318 = vset.pattern.permute.xlu0 1
      %319 = vperm.xlu0 %318, %v280
      %v320 = vpop.permute.xlu0 %319
      %322 = vset.pattern.permute.xlu0 1
      %323 = vperm.xlu0 %322, %v281
      %v324 = vpop.permute.xlu0 %323
      %v326 = vadd.f32 %v302, %v312
      %v327 = vadd.f32 %v303, %v312
      %v328 = vadd.f32 %v304, %v316
      %v329 = vadd.f32 %v305, %v316
      %v330 = vadd.f32 %v306, %v320
      %v331 = vadd.f32 %v307, %v320
      %v332 = vadd.f32 %v308, %v324
      %v333 = vadd.f32 %v309, %v324
      %v334 = vpack.c.bf16 %v328, %v326
      %v335 = vpack.c.bf16 %v329, %v327
      %v336 = vpack.c.bf16 %v332, %v330
      %v337 = vpack.c.bf16 %v333, %v331
      %340 = vrot.lane.b32.xlu0 %v335, 17
      %v341 = vpop.permute.xlu0 %340
      %342 = vrot.lane.b32.xlu0 %v337, 17
      %v343 = vpop.permute.xlu0 %342
      %346 = vrot.lane.b32.xlu0 %v334, 17
      %v347 = vpop.permute.xlu0 %346
      %348 = vrot.lane.b32.xlu0 %v336, 17
      %v349 = vpop.permute.xlu0 %348
      %vm350 = vcmask 138240
      %v351 = vsel %vm350, %v347, %v341
      %v352 = vsel %vm350, %v349, %v343
      %vm355 = vcmask 138240
      %v358 = vsel %vm355, %v341, %v347
      %v362 = vsel %vm355, %v343, %v349
      %v364 = vld [vmem:[%s4] sm:$0x11]
      %v366 = vunpack.c.l.b16 %v364
      %v367 = vunpack.c.h.b16 %v364
      %v368 = vpack.c.b16 %v366, %v366
      %v369 = vpack.c.b16 %v367, %v367
      %v371 = vpack.i.b16 %v368, %v368
      %v373 = vlaneseq
      %v374 = vshrl.u32 %v373, 7
      %v375 = vsub.s32 0, %v374
      %v376 = vrot.slane %v371, %v375
      %v378 = vpack.i.b16 %v369, %v369
      %v380 = vlaneseq
      %v381 = vshrl.u32 %v380, 7
      %v382 = vsub.s32 0, %v381
      %v383 = vrot.slane %v378, %v382
      %v384 = vmul.bf16 %v358, %v376
      %v385 = vmul.bf16 %v351, %v383
      %v386 = vmul.bf16 %v362, %v376
      %v387 = vmul.bf16 %v352, %v383
      %v388 = vld [vmem:[%s2] sm:$0xf]
      %v389 = vld [vmem:[%s2 + $0x4] sm:$0xf]
      %v390 = vld [vmem:[%s2 + $0x8] sm:$0xf]
      %v391 = vld [vmem:[%s2 + $0xc] sm:$0xf]
      %392 = vrot.lane.b32.xlu0 %v335, 16
      %v393 = vpop.permute.xlu0 %392
      %394 = vrot.lane.b32.xlu0 %v337, 16
      %v395 = vpop.permute.xlu0 %394
      %396 = vrot.lane.b32.xlu0 %v334, 16
      %v397 = vpop.permute.xlu0 %396
      %398 = vrot.lane.b32.xlu0 %v336, 16
      %v399 = vpop.permute.xlu0 %398
      %vm400 = vcmask 130048
      %v401 = vsel %vm400, %v397, %v393
      %v402 = vsel %vm400, %v399, %v395
      %vm405 = vcmask 130048
      %v408 = vsel %vm405, %v393, %v397
      %v412 = vsel %vm405, %v395, %v399
      %v414 = vshrl.u32 %v368, 16
      %v415 = vpack.i.b16 %v414, %v414
      %v417 = vlaneseq
      %v418 = vshrl.u32 %v417, 7
      %v419 = vsub.s32 0, %v418
      %v420 = vrot.slane %v415, %v419
      %v421 = vshrl.u32 %v369, 16
      %v422 = vpack.i.b16 %v421, %v421
      %v424 = vlaneseq
      %v425 = vshrl.u32 %v424, 7
      %v426 = vsub.s32 0, %v425
      %v427 = vrot.slane %v422, %v426
      %v428 = vmul.bf16 %v408, %v420
      %v429 = vmul.bf16 %v401, %v427
      %v430 = vmul.bf16 %v412, %v420
      %v431 = vmul.bf16 %v402, %v427
      %s432 = scalar_lea.vmem %s2, 16
      %v433 = vld [vmem:[%s432] sm:$0xf]
      %v434 = vld [vmem:[%s432 + $0x4] sm:$0xf]
      %v435 = vld [vmem:[%s432 + $0x8] sm:$0xf]
      %v436 = vld [vmem:[%s432 + $0xc] sm:$0xf]
      %v441 = vunpack.c.l.b16 %v433
      %v442 = vunpack.c.l.b16 %v434
      %v443 = vunpack.c.l.b16 %v435
      %v444 = vunpack.c.l.b16 %v436
      %v445 = vpack.c.b16 %v442, %v441
      %v446 = vpack.c.b16 %v444, %v443
      %vm447 = vcmask 261120
      %v449 = vsel %vm447, %v445, 0
      %v452 = vsel %vm447, %v446, 0
      %454 = vmatprep.subr.bf16.mxu0 %v429
      %455 = vmatpush1.bf16.msra.mxu0 %v428
      %456 = vmatprep.subr.bf16.mxu0 %v431
      %457 = vmatpush1.bf16.msra.mxu0 %v430
      %458 = vmatprep.subr.bf16.mxu0 0
      %459 = vmatpush1.bf16.msra.mxu0 0
      %460 = vmatprep.subr.bf16.mxu0 0
      %461 = vmatpush1.bf16.msra.mxu0 0
      %462 = vmatprep.subr.bf16.mxu0 0
      %463 = vmatpush1.bf16.msra.mxu0 0
      %464 = vmatprep.subr.bf16.mxu0 0
      %465 = vmatpush1.bf16.msra.mxu0 0
      %466 = vmatprep.subr.bf16.mxu0 0
      %467 = vmatpush1.bf16.msra.mxu0 0
      %468 = vmatprep.subr.bf16.mxu0 0
      %469 = vmatpush1.bf16.msra.mxu0 0
      %470 = vmatprep.subr.bf16.mxu0 0
      %471 = vmatpush1.bf16.msra.mxu0 0
      %472 = vmatprep.subr.bf16.mxu0 0
      %473 = vmatpush1.bf16.msra.mxu0 0
      %474 = vmatprep.subr.bf16.mxu0 0
      %475 = vmatpush1.bf16.msra.mxu0 0
      %476 = vmatprep.subr.bf16.mxu0 0
      %477 = vmatpush1.bf16.msra.mxu0 0
      %478 = vmatprep.subr.bf16.mxu0 0
      %479 = vmatpush1.bf16.msra.mxu0 0
      %480 = vmatprep.subr.bf16.mxu0 0
      %481 = vmatpush1.bf16.msra.mxu0 0
      %482 = vmatprep.subr.bf16.mxu0 0
      %483 = vmatpush1.bf16.msra.mxu0 0
      %484 = vmatprep.subr.bf16.mxu0 0
      %485 = vmatpush1.bf16.msra.mxu0 0
      %486 = vmatprep.mubr.bf16.mxu0 0
      %487 = vmatmul.mubr.bf16.gmra.mrb[0].mxu0 %v449
      %v488 = vpop.f32.mrb[0].mxu0
      %v489 = vadd.f32 0.0, %v488
      %v490 = vpop.f32.mrb[0].mxu0
      %v491 = vadd.f32 0.0, %v490
      %v492 = vpop.f32.mrb[0].mxu0
      %v493 = vadd.f32 0.0, %v492
      %v494 = vpop.f32.mrb[0].mxu0
      %v495 = vadd.f32 0.0, %v494
      %496 = vmatprep.mubr.bf16.mxu0 0
      %497 = vmatmul.mubr.bf16.gmra.mrb[0].mxu0 %v452
      %v498 = vpop.f32.mrb[0].mxu0
      %v499 = vadd.f32 0.0, %v498
      %v500 = vpop.f32.mrb[0].mxu0
      %v501 = vadd.f32 0.0, %v500
      %v502 = vpop.f32.mrb[0].mxu0
      %v503 = vadd.f32 0.0, %v502
      %v504 = vpop.f32.mrb[0].mxu0
      %v505 = vadd.f32 0.0, %v504
      %506 = vdwg.mxu0
      %v511 = vunpack.c.l.b16 %v388
      %v512 = vunpack.c.l.b16 %v389
      %v513 = vunpack.c.l.b16 %v390
      %v514 = vunpack.c.l.b16 %v391
      %v515 = vpack.c.b16 %v512, %v511
      %v516 = vpack.c.b16 %v514, %v513
      %v518 = vsel %vm447, %v515, 0
      %v521 = vsel %vm447, %v516, 0
      %523 = vmatprep.subr.bf16.mxu0 %v385
      %524 = vmatpush1.bf16.msra.mxu0 %v384
      %525 = vmatprep.subr.bf16.mxu0 %v387
      %526 = vmatpush1.bf16.msra.mxu0 %v386
      %527 = vmatprep.subr.bf16.mxu0 0
      %528 = vmatpush1.bf16.msra.mxu0 0
      %529 = vmatprep.subr.bf16.mxu0 0
      %530 = vmatpush1.bf16.msra.mxu0 0
      %531 = vmatprep.subr.bf16.mxu0 0
      %532 = vmatpush1.bf16.msra.mxu0 0
      %533 = vmatprep.subr.bf16.mxu0 0
      %534 = vmatpush1.bf16.msra.mxu0 0
      %535 = vmatprep.subr.bf16.mxu0 0
      %536 = vmatpush1.bf16.msra.mxu0 0
      %537 = vmatprep.subr.bf16.mxu0 0
      %538 = vmatpush1.bf16.msra.mxu0 0
      %539 = vmatprep.subr.bf16.mxu0 0
      %540 = vmatpush1.bf16.msra.mxu0 0
      %541 = vmatprep.subr.bf16.mxu0 0
      %542 = vmatpush1.bf16.msra.mxu0 0
      %543 = vmatprep.subr.bf16.mxu0 0
      %544 = vmatpush1.bf16.msra.mxu0 0
      %545 = vmatprep.subr.bf16.mxu0 0
      %546 = vmatpush1.bf16.msra.mxu0 0
      %547 = vmatprep.subr.bf16.mxu0 0
      %548 = vmatpush1.bf16.msra.mxu0 0
      %549 = vmatprep.subr.bf16.mxu0 0
      %550 = vmatpush1.bf16.msra.mxu0 0
      %551 = vmatprep.subr.bf16.mxu0 0
      %552 = vmatpush1.bf16.msra.mxu0 0
      %553 = vmatprep.subr.bf16.mxu0 0
      %554 = vmatpush1.bf16.msra.mxu0 0
      %555 = vmatprep.mubr.bf16.mxu0 0
      %556 = vmatmul.mubr.bf16.gmra.mrb[0].mxu0 %v518
      %v557 = vpop.f32.mrb[0].mxu0
      %v558 = vadd.f32 %v489, %v557
      %v559 = vpop.f32.mrb[0].mxu0
      %v560 = vadd.f32 %v491, %v559
      %v561 = vpop.f32.mrb[0].mxu0
      %v562 = vadd.f32 %v493, %v561
      %v563 = vpop.f32.mrb[0].mxu0
      %v564 = vadd.f32 %v495, %v563
      %565 = vmatprep.mubr.bf16.mxu0 0
      %566 = vmatmul.mubr.bf16.gmra.mrb[0].mxu0 %v521
      %v567 = vpop.f32.mrb[0].mxu0
      %v568 = vadd.f32 %v499, %v567
      %v569 = vpop.f32.mrb[0].mxu0
      %v570 = vadd.f32 %v501, %v569
      %v571 = vpop.f32.mrb[0].mxu0
      %v572 = vadd.f32 %v503, %v571
      %v573 = vpop.f32.mrb[0].mxu0
      %v574 = vadd.f32 %v505, %v573
      %575 = vdwg.mxu0
      %576 = vrot.lane.b32.xlu0 %v335, 15
      %v577 = vpop.permute.xlu0 %576
      %578 = vrot.lane.b32.xlu0 %v337, 15
      %v579 = vpop.permute.xlu0 %578
      %580 = vrot.lane.b32.xlu0 %v334, 15
      %v581 = vpop.permute.xlu0 %580
      %582 = vrot.lane.b32.xlu0 %v336, 15
      %v583 = vpop.permute.xlu0 %582
      %vm584 = vcmask 121856
      %v585 = vsel %vm584, %v581, %v577
      %v586 = vsel %vm584, %v583, %v579
      %vm589 = vcmask 121856
      %v592 = vsel %vm589, %v577, %v581
      %v596 = vsel %vm589, %v579, %v583
      %v598 = vld [vmem:[%s4] sm:$0x22]
      %v600 = vunpack.c.l.b16 %v598
      %v601 = vunpack.c.h.b16 %v598
      %v602 = vpack.c.b16 %v600, %v600
      %v603 = vpack.c.b16 %v601, %v601
      %v605 = vpack.i.b16 %v602, %v602
      %v607 = vlaneseq
      %v608 = vshrl.u32 %v607, 7
      %v609 = vsub.s32 1, %v608
      %v610 = vrot.slane %v605, %v609
      %v612 = vpack.i.b16 %v603, %v603
      %v614 = vlaneseq
      %v615 = vshrl.u32 %v614, 7
      %v616 = vsub.s32 1, %v615
      %v617 = vrot.slane %v612, %v616
      %v618 = vmul.bf16 %v592, %v610
      %v619 = vmul.bf16 %v585, %v617
      %v620 = vmul.bf16 %v596, %v610
      %v621 = vmul.bf16 %v586, %v617
      %s622 = scalar_lea.vmem %s2, 32
      %v623 = vld [vmem:[%s622] sm:$0xf]
      %v624 = vld [vmem:[%s622 + $0x4] sm:$0xf]
      %v625 = vld [vmem:[%s622 + $0x8] sm:$0xf]
      %v626 = vld [vmem:[%s622 + $0xc] sm:$0xf]
      %v631 = vunpack.c.l.b16 %v623
      %v632 = vunpack.c.l.b16 %v624
      %v633 = vunpack.c.l.b16 %v625
      %v634 = vunpack.c.l.b16 %v626
      %v635 = vpack.c.b16 %v632, %v631
      %v636 = vpack.c.b16 %v634, %v633
      %v638 = vsel %vm447, %v635, 0
      %v641 = vsel %vm447, %v636, 0
      %643 = vmatprep.subr.bf16.mxu0 %v619
      %644 = vmatpush1.bf16.msra.mxu0 %v618
      %645 = vmatprep.subr.bf16.mxu0 %v621
      %646 = vmatpush1.bf16.msra.mxu0 %v620
      %647 = vmatprep.subr.bf16.mxu0 0
      %648 = vmatpush1.bf16.msra.mxu0 0
      %649 = vmatprep.subr.bf16.mxu0 0
      %650 = vmatpush1.bf16.msra.mxu0 0
      %651 = vmatprep.subr.bf16.mxu0 0
      %652 = vmatpush1.bf16.msra.mxu0 0
      %653 = vmatprep.subr.bf16.mxu0 0
      %654 = vmatpush1.bf16.msra.mxu0 0
      %655 = vmatprep.subr.bf16.mxu0 0
      %656 = vmatpush1.bf16.msra.mxu0 0
      %657 = vmatprep.subr.bf16.mxu0 0
      %658 = vmatpush1.bf16.msra.mxu0 0
      %659 = vmatprep.subr.bf16.mxu0 0
      %660 = vmatpush1.bf16.msra.mxu0 0
      %661 = vmatprep.subr.bf16.mxu0 0
      %662 = vmatpush1.bf16.msra.mxu0 0
      %663 = vmatprep.subr.bf16.mxu0 0
      %664 = vmatpush1.bf16.msra.mxu0 0
      %665 = vmatprep.subr.bf16.mxu0 0
      %666 = vmatpush1.bf16.msra.mxu0 0
      %667 = vmatprep.subr.bf16.mxu0 0
      %668 = vmatpush1.bf16.msra.mxu0 0
      %669 = vmatprep.subr.bf16.mxu0 0
      %670 = vmatpush1.bf16.msra.mxu0 0
      %671 = vmatprep.subr.bf16.mxu0 0
      %672 = vmatpush1.bf16.msra.mxu0 0
      %673 = vmatprep.subr.bf16.mxu0 0
      %674 = vmatpush1.bf16.msra.mxu0 0
      %675 = vmatprep.mubr.bf16.mxu0 0
      %676 = vmatmul.mubr.bf16.gmra.mrb[0].mxu0 %v638
      %v677 = vpop.f32.mrb[0].mxu0
      %v678 = vadd.f32 0.0, %v677
      %v679 = vpop.f32.mrb[0].mxu0
      %v680 = vadd.f32 0.0, %v679
      %v681 = vpop.f32.mrb[0].mxu0
      %v682 = vadd.f32 0.0, %v681
      %v683 = vpop.f32.mrb[0].mxu0
      %v684 = vadd.f32 0.0, %v683
      %685 = vmatprep.mubr.bf16.mxu0 0
      %686 = vmatmul.mubr.bf16.gmra.mrb[0].mxu0 %v641
      %v687 = vpop.f32.mrb[0].mxu0
      %v688 = vadd.f32 0.0, %v687
      %v689 = vpop.f32.mrb[0].mxu0
      %v690 = vadd.f32 0.0, %v689
      %v691 = vpop.f32.mrb[0].mxu0
      %v692 = vadd.f32 0.0, %v691
      %v693 = vpop.f32.mrb[0].mxu0
      %v694 = vadd.f32 0.0, %v693
      %695 = vdwg.mxu0
      %v696 = vadd.f32 %v558, %v678
      %v697 = vadd.f32 %v560, %v680
      %v698 = vadd.f32 %v562, %v682
      %v699 = vadd.f32 %v564, %v684
      %v700 = vadd.f32 %v568, %v688
      %v701 = vadd.f32 %v570, %v690
      %v702 = vadd.f32 %v572, %v692
      %v703 = vadd.f32 %v574, %v694
      %704 = vrot.lane.b32.xlu0 %v335, 1
      %v705 = vpop.permute.xlu0 %704
      %706 = vrot.lane.b32.xlu0 %v337, 1
      %v707 = vpop.permute.xlu0 %706
      %708 = vrot.lane.b32.xlu0 %v334, 1
      %v709 = vpop.permute.xlu0 %708
      %710 = vrot.lane.b32.xlu0 %v336, 1
      %v711 = vpop.permute.xlu0 %710
      %vm712 = vcmask 7168
      %v713 = vsel %vm712, %v709, %v705
      %v714 = vsel %vm712, %v711, %v707
      %vm717 = vcmask 7168
      %v720 = vsel %vm717, %v705, %v709
      %v724 = vsel %vm717, %v707, %v711
      %v726 = vshrl.u32 %v602, 16
      %v727 = vpack.i.b16 %v726, %v726
      %v729 = vlaneseq
      %v730 = vshrl.u32 %v729, 7
      %v731 = vsub.s32 1, %v730
      %v732 = vrot.slane %v727, %v731
      %v733 = vshrl.u32 %v603, 16
      %v734 = vpack.i.b16 %v733, %v733
      %v736 = vlaneseq
      %v737 = vshrl.u32 %v736, 7
      %v738 = vsub.s32 1, %v737
      %v739 = vrot.slane %v734, %v738
      %v740 = vmul.bf16 %v720, %v732
      %v741 = vmul.bf16 %v713, %v739
      %v742 = vmul.bf16 %v724, %v732
      %v743 = vmul.bf16 %v714, %v739
      %s744 = scalar_lea.vmem %s2, 48
      %v745 = vld [vmem:[%s744] sm:$0xf]
      %v746 = vld [vmem:[%s744 + $0x4] sm:$0xf]
      %v747 = vld [vmem:[%s744 + $0x8] sm:$0xf]
      %v748 = vld [vmem:[%s744 + $0xc] sm:$0xf]
      %v753 = vunpack.c.l.b16 %v745
      %v754 = vunpack.c.l.b16 %v746
      %v755 = vunpack.c.l.b16 %v747
      %v756 = vunpack.c.l.b16 %v748
      %v757 = vpack.c.b16 %v754, %v753
      %v758 = vpack.c.b16 %v756, %v755
      %v760 = vsel %vm447, %v757, 0
      %v763 = vsel %vm447, %v758, 0
      %765 = vmatprep.subr.bf16.mxu0 %v741
      %766 = vmatpush1.bf16.msra.mxu0 %v740
      %767 = vmatprep.subr.bf16.mxu0 %v743
      %768 = vmatpush1.bf16.msra.mxu0 %v742
      %769 = vmatprep.subr.bf16.mxu0 0
      %770 = vmatpush1.bf16.msra.mxu0 0
      %771 = vmatprep.subr.bf16.mxu0 0
      %772 = vmatpush1.bf16.msra.mxu0 0
      %773 = vmatprep.subr.bf16.mxu0 0
      %774 = vmatpush1.bf16.msra.mxu0 0
      %775 = vmatprep.subr.bf16.mxu0 0
      %776 = vmatpush1.bf16.msra.mxu0 0
      %777 = vmatprep.subr.bf16.mxu0 0
      %778 = vmatpush1.bf16.msra.mxu0 0
      %779 = vmatprep.subr.bf16.mxu0 0
      %780 = vmatpush1.bf16.msra.mxu0 0
      %781 = vmatprep.subr.bf16.mxu0 0
      %782 = vmatpush1.bf16.msra.mxu0 0
      %783 = vmatprep.subr.bf16.mxu0 0
      %784 = vmatpush1.bf16.msra.mxu0 0
      %785 = vmatprep.subr.bf16.mxu0 0
      %786 = vmatpush1.bf16.msra.mxu0 0
      %787 = vmatprep.subr.bf16.mxu0 0
      %788 = vmatpush1.bf16.msra.mxu0 0
      %789 = vmatprep.subr.bf16.mxu0 0
      %790 = vmatpush1.bf16.msra.mxu0 0
      %791 = vmatprep.subr.bf16.mxu0 0
      %792 = vmatpush1.bf16.msra.mxu0 0
      %793 = vmatprep.subr.bf16.mxu0 0
      %794 = vmatpush1.bf16.msra.mxu0 0
      %795 = vmatprep.subr.bf16.mxu0 0
      %796 = vmatpush1.bf16.msra.mxu0 0
      %797 = vmatprep.mubr.bf16.mxu0 0
      %798 = vmatmul.mubr.bf16.gmra.mrb[0].mxu0 %v760
      %v799 = vpop.f32.mrb[0].mxu0
      %v800 = vadd.f32 0.0, %v799
      %v801 = vpop.f32.mrb[0].mxu0
      %v802 = vadd.f32 0.0, %v801
      %v803 = vpop.f32.mrb[0].mxu0
      %v804 = vadd.f32 0.0, %v803
      %v805 = vpop.f32.mrb[0].mxu0
      %v806 = vadd.f32 0.0, %v805
      %807 = vmatprep.mubr.bf16.mxu0 0
      %808 = vmatmul.mubr.bf16.gmra.mrb[0].mxu0 %v763
      %v809 = vpop.f32.mrb[0].mxu0
      %v810 = vadd.f32 0.0, %v809
      %v811 = vpop.f32.mrb[0].mxu0
      %v812 = vadd.f32 0.0, %v811
      %v813 = vpop.f32.mrb[0].mxu0
      %v814 = vadd.f32 0.0, %v813
      %v815 = vpop.f32.mrb[0].mxu0
      %v816 = vadd.f32 0.0, %v815
      %817 = vdwg.mxu0
      %v818 = vadd.f32 %v696, %v800
      %v819 = vadd.f32 %v697, %v802
      %v820 = vadd.f32 %v698, %v804
      %v821 = vadd.f32 %v699, %v806
      %v822 = vadd.f32 %v700, %v810
      %v823 = vadd.f32 %v701, %v812
      %v824 = vadd.f32 %v702, %v814
      %v825 = vadd.f32 %v703, %v816
      %s826 = scalar_lea.vmem %s2, 64
      %v827 = vld [vmem:[%s826] sm:$0xf]
      %v828 = vld [vmem:[%s826 + $0x4] sm:$0xf]
      %v829 = vld [vmem:[%s826 + $0x8] sm:$0xf]
      %v830 = vld [vmem:[%s826 + $0xc] sm:$0xf]
      %v835 = vunpack.c.l.b16 %v827
      %v836 = vunpack.c.l.b16 %v828
      %v837 = vunpack.c.l.b16 %v829
      %v838 = vunpack.c.l.b16 %v830
      %v839 = vpack.c.b16 %v836, %v835
      %v840 = vpack.c.b16 %v838, %v837
      %v842 = vsel %vm447, %v839, 0
      %v845 = vsel %vm447, %v840, 0
      %847 = vmatprep.subr.bf16.mxu0 %v335
      %848 = vmatpush1.bf16.msra.mxu0 %v334
      %849 = vmatprep.subr.bf16.mxu0 %v337
      %850 = vmatpush1.bf16.msra.mxu0 %v336
      %851 = vmatprep.subr.bf16.mxu0 0
      %852 = vmatpush1.bf16.msra.mxu0 0
      %853 = vmatprep.subr.bf16.mxu0 0
      %854 = vmatpush1.bf16.msra.mxu0 0
      %855 = vmatprep.subr.bf16.mxu0 0
      %856 = vmatpush1.bf16.msra.mxu0 0
      %857 = vmatprep.subr.bf16.mxu0 0
      %858 = vmatpush1.bf16.msra.mxu0 0
      %859 = vmatprep.subr.bf16.mxu0 0
      %860 = vmatpush1.bf16.msra.mxu0 0
      %861 = vmatprep.subr.bf16.mxu0 0
      %862 = vmatpush1.bf16.msra.mxu0 0
      %863 = vmatprep.subr.bf16.mxu0 0
      %864 = vmatpush1.bf16.msra.mxu0 0
      %865 = vmatprep.subr.bf16.mxu0 0
      %866 = vmatpush1.bf16.msra.mxu0 0
      %867 = vmatprep.subr.bf16.mxu0 0
      %868 = vmatpush1.bf16.msra.mxu0 0
      %869 = vmatprep.subr.bf16.mxu0 0
      %870 = vmatpush1.bf16.msra.mxu0 0
      %871 = vmatprep.subr.bf16.mxu0 0
      %872 = vmatpush1.bf16.msra.mxu0 0
      %873 = vmatprep.subr.bf16.mxu0 0
      %874 = vmatpush1.bf16.msra.mxu0 0
      %875 = vmatprep.subr.bf16.mxu0 0
      %876 = vmatpush1.bf16.msra.mxu0 0
      %877 = vmatprep.subr.bf16.mxu0 0
      %878 = vmatpush1.bf16.msra.mxu0 0
      %879 = vmatprep.mubr.bf16.mxu0 0
      %880 = vmatmul.mubr.bf16.gmra.mrb[0].mxu0 %v842
      %v881 = vpop.f32.mrb[0].mxu0
      %v882 = vadd.f32 0.0, %v881
      %v883 = vpop.f32.mrb[0].mxu0
      %v884 = vadd.f32 0.0, %v883
      %v885 = vpop.f32.mrb[0].mxu0
      %v886 = vadd.f32 0.0, %v885
      %v887 = vpop.f32.mrb[0].mxu0
      %v888 = vadd.f32 0.0, %v887
      %889 = vmatprep.mubr.bf16.mxu0 0
      %890 = vmatmul.mubr.bf16.gmra.mrb[0].mxu0 %v845
      %v891 = vpop.f32.mrb[0].mxu0
      %v892 = vadd.f32 0.0, %v891
      %v893 = vpop.f32.mrb[0].mxu0
      %v894 = vadd.f32 0.0, %v893
      %v895 = vpop.f32.mrb[0].mxu0
      %v896 = vadd.f32 0.0, %v895
      %v897 = vpop.f32.mrb[0].mxu0
      %v898 = vadd.f32 0.0, %v897
      %899 = vdwg.mxu0
      %v900 = vadd.f32 %v818, %v882
      %v901 = vadd.f32 %v819, %v884
      %v902 = vadd.f32 %v820, %v886
      %v903 = vadd.f32 %v821, %v888
      %v904 = vadd.f32 %v822, %v892
      %v905 = vadd.f32 %v823, %v894
      %v906 = vadd.f32 %v824, %v896
      %v907 = vadd.f32 %v825, %v898
      %908 = vrot.lane.b32.xlu0 %v334, 127
      %v909 = vpop.permute.xlu0 %908
      %910 = vrot.lane.b32.xlu0 %v335, 127
      %v911 = vpop.permute.xlu0 %910
      %912 = vrot.lane.b32.xlu0 %v336, 127
      %v913 = vpop.permute.xlu0 %912
      %914 = vrot.lane.b32.xlu0 %v337, 127
      %v915 = vpop.permute.xlu0 %914
      %vm916 = vcmask 1039360
      %v917 = vsel %vm916, %v909, %v911
      %v918 = vsel %vm916, %v913, %v915
      %vm921 = vcmask 1039360
      %v924 = vsel %vm921, %v911, %v909
      %v928 = vsel %vm921, %v915, %v913
      %v930 = vld [vmem:[%s4] sm:$0x44]
      %v932 = vunpack.c.l.b16 %v930
      %v933 = vunpack.c.h.b16 %v930
      %v934 = vpack.c.b16 %v932, %v932
      %v935 = vpack.c.b16 %v933, %v933
      %v937 = vshrl.u32 %v934, 16
      %v938 = vpack.i.b16 %v937, %v937
      %v940 = vlaneseq
      %v941 = vshrl.u32 %v940, 7
      %v942 = vsub.s32 2, %v941
      %v943 = vrot.slane %v938, %v942
      %v945 = vshrl.u32 %v935, 16
      %v946 = vpack.i.b16 %v945, %v945
      %v948 = vlaneseq
      %v949 = vshrl.u32 %v948, 7
      %v950 = vsub.s32 2, %v949
      %v951 = vrot.slane %v946, %v950
      %v952 = vmul.bf16 %v917, %v943
      %v953 = vmul.bf16 %v924, %v951
      %v954 = vmul.bf16 %v918, %v943
      %v955 = vmul.bf16 %v928, %v951
      %s956 = scalar_lea.vmem %s2, 80
      %v957 = vld [vmem:[%s956] sm:$0xf]
      %v958 = vld [vmem:[%s956 + $0x4] sm:$0xf]
      %v959 = vld [vmem:[%s956 + $0x8] sm:$0xf]
      %v960 = vld [vmem:[%s956 + $0xc] sm:$0xf]
      %v965 = vunpack.c.l.b16 %v957
      %v966 = vunpack.c.l.b16 %v958
      %v967 = vunpack.c.l.b16 %v959
      %v968 = vunpack.c.l.b16 %v960
      %v969 = vpack.c.b16 %v966, %v965
      %v970 = vpack.c.b16 %v968, %v967
      %v972 = vsel %vm447, %v969, 0
      %v975 = vsel %vm447, %v970, 0
      %977 = vmatprep.subr.bf16.mxu0 %v953
      %978 = vmatpush1.bf16.msra.mxu0 %v952
      %979 = vmatprep.subr.bf16.mxu0 %v955
      %980 = vmatpush1.bf16.msra.mxu0 %v954
      %981 = vmatprep.subr.bf16.mxu0 0
      %982 = vmatpush1.bf16.msra.mxu0 0
      %983 = vmatprep.subr.bf16.mxu0 0
      %984 = vmatpush1.bf16.msra.mxu0 0
      %985 = vmatprep.subr.bf16.mxu0 0
      %986 = vmatpush1.bf16.msra.mxu0 0
      %987 = vmatprep.subr.bf16.mxu0 0
      %988 = vmatpush1.bf16.msra.mxu0 0
      %989 = vmatprep.subr.bf16.mxu0 0
      %990 = vmatpush1.bf16.msra.mxu0 0
      %991 = vmatprep.subr.bf16.mxu0 0
      %992 = vmatpush1.bf16.msra.mxu0 0
      %993 = vmatprep.subr.bf16.mxu0 0
      %994 = vmatpush1.bf16.msra.mxu0 0
      %995 = vmatprep.subr.bf16.mxu0 0
      %996 = vmatpush1.bf16.msra.mxu0 0
      %997 = vmatprep.subr.bf16.mxu0 0
      %998 = vmatpush1.bf16.msra.mxu0 0
      %999 = vmatprep.subr.bf16.mxu0 0
      %1000 = vmatpush1.bf16.msra.mxu0 0
      %1001 = vmatprep.subr.bf16.mxu0 0
      %1002 = vmatpush1.bf16.msra.mxu0 0
      %1003 = vmatprep.subr.bf16.mxu0 0
      %1004 = vmatpush1.bf16.msra.mxu0 0
      %1005 = vmatprep.subr.bf16.mxu0 0
      %1006 = vmatpush1.bf16.msra.mxu0 0
      %1007 = vmatprep.subr.bf16.mxu0 0
      %1008 = vmatpush1.bf16.msra.mxu0 0
      %1009 = vmatprep.mubr.bf16.mxu0 0
      %1010 = vmatmul.mubr.bf16.gmra.mrb[0].mxu0 %v972
      %v1011 = vpop.f32.mrb[0].mxu0
      %v1012 = vadd.f32 0.0, %v1011
      %v1013 = vpop.f32.mrb[0].mxu0
      %v1014 = vadd.f32 0.0, %v1013
      %v1015 = vpop.f32.mrb[0].mxu0
      %v1016 = vadd.f32 0.0, %v1015
      %v1017 = vpop.f32.mrb[0].mxu0
      %v1018 = vadd.f32 0.0, %v1017
      %1019 = vmatprep.mubr.bf16.mxu0 0
      %1020 = vmatmul.mubr.bf16.gmra.mrb[0].mxu0 %v975
      %v1021 = vpop.f32.mrb[0].mxu0
      %v1022 = vadd.f32 0.0, %v1021
      %v1023 = vpop.f32.mrb[0].mxu0
      %v1024 = vadd.f32 0.0, %v1023
      %v1025 = vpop.f32.mrb[0].mxu0
      %v1026 = vadd.f32 0.0, %v1025
      %v1027 = vpop.f32.mrb[0].mxu0
      %v1028 = vadd.f32 0.0, %v1027
      %1029 = vdwg.mxu0
      %v1030 = vadd.f32 %v900, %v1012
      %v1031 = vadd.f32 %v901, %v1014
      %v1032 = vadd.f32 %v902, %v1016
      %v1033 = vadd.f32 %v903, %v1018
      %v1034 = vadd.f32 %v904, %v1022
      %v1035 = vadd.f32 %v905, %v1024
      %v1036 = vadd.f32 %v906, %v1026
      %v1037 = vadd.f32 %v907, %v1028
      %1038 = vrot.lane.b32.xlu0 %v334, 113
      %v1039 = vpop.permute.xlu0 %1038
      %1040 = vrot.lane.b32.xlu0 %v335, 113
      %v1041 = vpop.permute.xlu0 %1040
      %1042 = vrot.lane.b32.xlu0 %v336, 113
      %v1043 = vpop.permute.xlu0 %1042
      %1044 = vrot.lane.b32.xlu0 %v337, 113
      %v1045 = vpop.permute.xlu0 %1044
      %vm1046 = vcmask 924672
      %v1047 = vsel %vm1046, %v1039, %v1041
      %v1048 = vsel %vm1046, %v1043, %v1045
      %vm1051 = vcmask 924672
      %v1054 = vsel %vm1051, %v1041, %v1039
      %v1058 = vsel %vm1051, %v1045, %v1043
      %v1060 = vld [vmem:[%s4] sm:$0x88]
      %v1062 = vunpack.c.l.b16 %v1060
      %v1063 = vunpack.c.h.b16 %v1060
      %v1064 = vpack.c.b16 %v1062, %v1062
      %v1065 = vpack.c.b16 %v1063, %v1063
      %v1067 = vpack.i.b16 %v1064, %v1064
      %v1069 = vlaneseq
      %v1070 = vshrl.u32 %v1069, 7
      %v1071 = vsub.s32 3, %v1070
      %v1072 = vrot.slane %v1067, %v1071
      %v1074 = vpack.i.b16 %v1065, %v1065
      %v1076 = vlaneseq
      %v1077 = vshrl.u32 %v1076, 7
      %v1078 = vsub.s32 3, %v1077
      %v1079 = vrot.slane %v1074, %v1078
      %v1080 = vmul.bf16 %v1047, %v1072
      %v1081 = vmul.bf16 %v1054, %v1079
      %v1082 = vmul.bf16 %v1048, %v1072
      %v1083 = vmul.bf16 %v1058, %v1079
      %s1084 = scalar_lea.vmem %s2, 96
      %v1085 = vld [vmem:[%s1084] sm:$0xf]
      %v1086 = vld [vmem:[%s1084 + $0x4] sm:$0xf]
      %v1087 = vld [vmem:[%s1084 + $0x8] sm:$0xf]
      %v1088 = vld [vmem:[%s1084 + $0xc] sm:$0xf]
      %v1093 = vunpack.c.l.b16 %v1085
      %v1094 = vunpack.c.l.b16 %v1086
      %v1095 = vunpack.c.l.b16 %v1087
      %v1096 = vunpack.c.l.b16 %v1088
      %v1097 = vpack.c.b16 %v1094, %v1093
      %v1098 = vpack.c.b16 %v1096, %v1095
      %v1100 = vsel %vm447, %v1097, 0
      %v1103 = vsel %vm447, %v1098, 0
      %1105 = vmatprep.subr.bf16.mxu0 %v1081
      %1106 = vmatpush1.bf16.msra.mxu0 %v1080
      %1107 = vmatprep.subr.bf16.mxu0 %v1083
      %1108 = vmatpush1.bf16.msra.mxu0 %v1082
      %1109 = vmatprep.subr.bf16.mxu0 0
      %1110 = vmatpush1.bf16.msra.mxu0 0
      %1111 = vmatprep.subr.bf16.mxu0 0
      %1112 = vmatpush1.bf16.msra.mxu0 0
      %1113 = vmatprep.subr.bf16.mxu0 0
      %1114 = vmatpush1.bf16.msra.mxu0 0
      %1115 = vmatprep.subr.bf16.mxu0 0
      %1116 = vmatpush1.bf16.msra.mxu0 0
      %1117 = vmatprep.subr.bf16.mxu0 0
      %1118 = vmatpush1.bf16.msra.mxu0 0
      %1119 = vmatprep.subr.bf16.mxu0 0
      %1120 = vmatpush1.bf16.msra.mxu0 0
      %1121 = vmatprep.subr.bf16.mxu0 0
      %1122 = vmatpush1.bf16.msra.mxu0 0
      %1123 = vmatprep.subr.bf16.mxu0 0
      %1124 = vmatpush1.bf16.msra.mxu0 0
      %1125 = vmatprep.subr.bf16.mxu0 0
      %1126 = vmatpush1.bf16.msra.mxu0 0
      %1127 = vmatprep.subr.bf16.mxu0 0
      %1128 = vmatpush1.bf16.msra.mxu0 0
      %1129 = vmatprep.subr.bf16.mxu0 0
      %1130 = vmatpush1.bf16.msra.mxu0 0
      %1131 = vmatprep.subr.bf16.mxu0 0
      %1132 = vmatpush1.bf16.msra.mxu0 0
      %1133 = vmatprep.subr.bf16.mxu0 0
      %1134 = vmatpush1.bf16.msra.mxu0 0
      %1135 = vmatprep.subr.bf16.mxu0 0
      %1136 = vmatpush1.bf16.msra.mxu0 0
      %1137 = vmatprep.mubr.bf16.mxu0 0
      %1138 = vmatmul.mubr.bf16.gmra.mrb[0].mxu0 %v1100
      %v1139 = vpop.f32.mrb[0].mxu0
      %v1140 = vadd.f32 0.0, %v1139
      %v1141 = vpop.f32.mrb[0].mxu0
      %v1142 = vadd.f32 0.0, %v1141
      %v1143 = vpop.f32.mrb[0].mxu0
      %v1144 = vadd.f32 0.0, %v1143
      %v1145 = vpop.f32.mrb[0].mxu0
      %v1146 = vadd.f32 0.0, %v1145
      %1147 = vmatprep.mubr.bf16.mxu0 0
      %1148 = vmatmul.mubr.bf16.gmra.mrb[0].mxu0 %v1103
      %v1149 = vpop.f32.mrb[0].mxu0
      %v1150 = vadd.f32 0.0, %v1149
      %v1151 = vpop.f32.mrb[0].mxu0
      %v1152 = vadd.f32 0.0, %v1151
      %v1153 = vpop.f32.mrb[0].mxu0
      %v1154 = vadd.f32 0.0, %v1153
      %v1155 = vpop.f32.mrb[0].mxu0
      %v1156 = vadd.f32 0.0, %v1155
      %1157 = vdwg.mxu0
      %v1158 = vadd.f32 %v1030, %v1140
      %v1159 = vadd.f32 %v1031, %v1142
      %v1160 = vadd.f32 %v1032, %v1144
      %v1161 = vadd.f32 %v1033, %v1146
      %v1162 = vadd.f32 %v1034, %v1150
      %v1163 = vadd.f32 %v1035, %v1152
      %v1164 = vadd.f32 %v1036, %v1154
      %v1165 = vadd.f32 %v1037, %v1156
      %1166 = vrot.lane.b32.xlu0 %v334, 112
      %v1167 = vpop.permute.xlu0 %1166
      %1168 = vrot.lane.b32.xlu0 %v335, 112
      %v1169 = vpop.permute.xlu0 %1168
      %1170 = vrot.lane.b32.xlu0 %v336, 112
      %v1171 = vpop.permute.xlu0 %1170
      %1172 = vrot.lane.b32.xlu0 %v337, 112
      %v1173 = vpop.permute.xlu0 %1172
      %vm1174 = vcmask 916480
      %v1175 = vsel %vm1174, %v1167, %v1169
      %v1176 = vsel %vm1174, %v1171, %v1173
      %vm1179 = vcmask 916480
      %v1182 = vsel %vm1179, %v1169, %v1167
      %v1186 = vsel %vm1179, %v1173, %v1171
      %v1188 = vshrl.u32 %v1064, 16
      %v1189 = vpack.i.b16 %v1188, %v1188
      %v1191 = vlaneseq
      %v1192 = vshrl.u32 %v1191, 7
      %v1193 = vsub.s32 3, %v1192
      %v1194 = vrot.slane %v1189, %v1193
      %v1195 = vshrl.u32 %v1065, 16
      %v1196 = vpack.i.b16 %v1195, %v1195
      %v1198 = vlaneseq
      %v1199 = vshrl.u32 %v1198, 7
      %v1200 = vsub.s32 3, %v1199
      %v1201 = vrot.slane %v1196, %v1200
      %v1202 = vmul.bf16 %v1175, %v1194
      %v1203 = vmul.bf16 %v1182, %v1201
      %v1204 = vmul.bf16 %v1176, %v1194
      %v1205 = vmul.bf16 %v1186, %v1201
      %s1206 = scalar_lea.vmem %s2, 112
      %v1207 = vld [vmem:[%s1206] sm:$0xf]
      %v1208 = vld [vmem:[%s1206 + $0x4] sm:$0xf]
      %v1209 = vld [vmem:[%s1206 + $0x8] sm:$0xf]
      %v1210 = vld [vmem:[%s1206 + $0xc] sm:$0xf]
      %v1215 = vunpack.c.l.b16 %v1207
      %v1216 = vunpack.c.l.b16 %v1208
      %v1217 = vunpack.c.l.b16 %v1209
      %v1218 = vunpack.c.l.b16 %v1210
      %v1219 = vpack.c.b16 %v1216, %v1215
      %v1220 = vpack.c.b16 %v1218, %v1217
      %v1222 = vsel %vm447, %v1219, 0
      %v1225 = vsel %vm447, %v1220, 0
      %1227 = vmatprep.subr.bf16.mxu0 %v1203
      %1228 = vmatpush1.bf16.msra.mxu0 %v1202
      %1229 = vmatprep.subr.bf16.mxu0 %v1205
      %1230 = vmatpush1.bf16.msra.mxu0 %v1204
      %1231 = vmatprep.subr.bf16.mxu0 0
      %1232 = vmatpush1.bf16.msra.mxu0 0
      %1233 = vmatprep.subr.bf16.mxu0 0
      %1234 = vmatpush1.bf16.msra.mxu0 0
      %1235 = vmatprep.subr.bf16.mxu0 0
      %1236 = vmatpush1.bf16.msra.mxu0 0
      %1237 = vmatprep.subr.bf16.mxu0 0
      %1238 = vmatpush1.bf16.msra.mxu0 0
      %1239 = vmatprep.subr.bf16.mxu0 0
      %1240 = vmatpush1.bf16.msra.mxu0 0
      %1241 = vmatprep.subr.bf16.mxu0 0
      %1242 = vmatpush1.bf16.msra.mxu0 0
      %1243 = vmatprep.subr.bf16.mxu0 0
      %1244 = vmatpush1.bf16.msra.mxu0 0
      %1245 = vmatprep.subr.bf16.mxu0 0
      %1246 = vmatpush1.bf16.msra.mxu0 0
      %1247 = vmatprep.subr.bf16.mxu0 0
      %1248 = vmatpush1.bf16.msra.mxu0 0
      %1249 = vmatprep.subr.bf16.mxu0 0
      %1250 = vmatpush1.bf16.msra.mxu0 0
      %1251 = vmatprep.subr.bf16.mxu0 0
      %1252 = vmatpush1.bf16.msra.mxu0 0
      %1253 = vmatprep.subr.bf16.mxu0 0
      %1254 = vmatpush1.bf16.msra.mxu0 0
      %1255 = vmatprep.subr.bf16.mxu0 0
      %1256 = vmatpush1.bf16.msra.mxu0 0
      %1257 = vmatprep.subr.bf16.mxu0 0
      %1258 = vmatpush1.bf16.msra.mxu0 0
      %1259 = vmatprep.mubr.bf16.mxu0 0
      %1260 = vmatmul.mubr.bf16.gmra.mrb[0].mxu0 %v1222
      %v1261 = vpop.f32.mrb[0].mxu0
      %v1262 = vadd.f32 0.0, %v1261
      %v1263 = vpop.f32.mrb[0].mxu0
      %v1264 = vadd.f32 0.0, %v1263
      %v1265 = vpop.f32.mrb[0].mxu0
      %v1266 = vadd.f32 0.0, %v1265
      %v1267 = vpop.f32.mrb[0].mxu0
      %v1268 = vadd.f32 0.0, %v1267
      %1269 = vmatprep.mubr.bf16.mxu0 0
      %1270 = vmatmul.mubr.bf16.gmra.mrb[0].mxu0 %v1225
      %v1271 = vpop.f32.mrb[0].mxu0
      %v1272 = vadd.f32 0.0, %v1271
      %v1273 = vpop.f32.mrb[0].mxu0
      %v1274 = vadd.f32 0.0, %v1273
      %v1275 = vpop.f32.mrb[0].mxu0
      %v1276 = vadd.f32 0.0, %v1275
      %v1277 = vpop.f32.mrb[0].mxu0
      %v1278 = vadd.f32 0.0, %v1277
      %1279 = vdwg.mxu0
      %v1280 = vadd.f32 %v1158, %v1262
      %v1281 = vadd.f32 %v1159, %v1264
      %v1282 = vadd.f32 %v1160, %v1266
      %v1283 = vadd.f32 %v1161, %v1268
      %v1284 = vadd.f32 %v1162, %v1272
      %v1285 = vadd.f32 %v1163, %v1274
      %v1286 = vadd.f32 %v1164, %v1276
      %v1287 = vadd.f32 %v1165, %v1278
      %1288 = vrot.lane.b32.xlu0 %v334, 111
      %v1289 = vpop.permute.xlu0 %1288
      %1290 = vrot.lane.b32.xlu0 %v335, 111
      %v1291 = vpop.permute.xlu0 %1290
      %1292 = vrot.lane.b32.xlu0 %v336, 111
      %v1293 = vpop.permute.xlu0 %1292
      %1294 = vrot.lane.b32.xlu0 %v337, 111
      %v1295 = vpop.permute.xlu0 %1294
      %vm1296 = vcmask 908288
      %v1297 = vsel %vm1296, %v1289, %v1291
      %v1298 = vsel %vm1296, %v1293, %v1295
      %vm1301 = vcmask 908288
      %v1304 = vsel %vm1301, %v1291, %v1289
      %v1308 = vsel %vm1301, %v1295, %v1293
      %v1310 = vld [vmem:[%s4 + $0x8] sm:$0x11]
      %v1312 = vunpack.c.l.b16 %v1310
      %v1313 = vunpack.c.h.b16 %v1310
      %v1314 = vpack.c.b16 %v1312, %v1312
      %v1315 = vpack.c.b16 %v1313, %v1313
      %v1317 = vpack.i.b16 %v1314, %v1314
      %v1319 = vlaneseq
      %v1320 = vshrl.u32 %v1319, 7
      %v1321 = vsub.s32 0, %v1320
      %v1322 = vrot.slane %v1317, %v1321
      %v1324 = vpack.i.b16 %v1315, %v1315
      %v1326 = vlaneseq
      %v1327 = vshrl.u32 %v1326, 7
      %v1328 = vsub.s32 0, %v1327
      %v1329 = vrot.slane %v1324, %v1328
      %v1330 = vmul.bf16 %v1297, %v1322
      %v1331 = vmul.bf16 %v1304, %v1329
      %v1332 = vmul.bf16 %v1298, %v1322
      %v1333 = vmul.bf16 %v1308, %v1329
      %s1334 = scalar_lea.vmem %s2, 128
      %v1335 = vld [vmem:[%s1334] sm:$0xf]
      %v1336 = vld [vmem:[%s1334 + $0x4] sm:$0xf]
      %v1337 = vld [vmem:[%s1334 + $0x8] sm:$0xf]
      %v1338 = vld [vmem:[%s1334 + $0xc] sm:$0xf]
      %v1343 = vunpack.c.l.b16 %v1335
      %v1344 = vunpack.c.l.b16 %v1336
      %v1345 = vunpack.c.l.b16 %v1337
      %v1346 = vunpack.c.l.b16 %v1338
      %v1347 = vpack.c.b16 %v1344, %v1343
      %v1348 = vpack.c.b16 %v1346, %v1345
      %v1350 = vsel %vm447, %v1347, 0
      %v1353 = vsel %vm447, %v1348, 0
      %1355 = vmatprep.subr.bf16.mxu0 %v1331
      %1356 = vmatpush1.bf16.msra.mxu0 %v1330
      %1357 = vmatprep.subr.bf16.mxu0 %v1333
      %1358 = vmatpush1.bf16.msra.mxu0 %v1332
      %1359 = vmatprep.subr.bf16.mxu0 0
      %1360 = vmatpush1.bf16.msra.mxu0 0
      %1361 = vmatprep.subr.bf16.mxu0 0
      %1362 = vmatpush1.bf16.msra.mxu0 0
      %1363 = vmatprep.subr.bf16.mxu0 0
      %1364 = vmatpush1.bf16.msra.mxu0 0
      %1365 = vmatprep.subr.bf16.mxu0 0
      %1366 = vmatpush1.bf16.msra.mxu0 0
      %1367 = vmatprep.subr.bf16.mxu0 0
      %1368 = vmatpush1.bf16.msra.mxu0 0
      %1369 = vmatprep.subr.bf16.mxu0 0
      %1370 = vmatpush1.bf16.msra.mxu0 0
      %1371 = vmatprep.subr.bf16.mxu0 0
      %1372 = vmatpush1.bf16.msra.mxu0 0
      %1373 = vmatprep.subr.bf16.mxu0 0
      %1374 = vmatpush1.bf16.msra.mxu0 0
      %1375 = vmatprep.subr.bf16.mxu0 0
      %1376 = vmatpush1.bf16.msra.mxu0 0
      %1377 = vmatprep.subr.bf16.mxu0 0
      %1378 = vmatpush1.bf16.msra.mxu0 0
      %1379 = vmatprep.subr.bf16.mxu0 0
      %1380 = vmatpush1.bf16.msra.mxu0 0
      %1381 = vmatprep.subr.bf16.mxu0 0
      %1382 = vmatpush1.bf16.msra.mxu0 0
      %1383 = vmatprep.subr.bf16.mxu0 0
      %1384 = vmatpush1.bf16.msra.mxu0 0
      %1385 = vmatprep.subr.bf16.mxu0 0
      %1386 = vmatpush1.bf16.msra.mxu0 0
      %1387 = vmatprep.mubr.bf16.mxu0 0
      %1388 = vmatmul.mubr.bf16.gmra.mrb[0].mxu0 %v1350
      %v1389 = vpop.f32.mrb[0].mxu0
      %v1390 = vadd.f32 0.0, %v1389
      %v1391 = vpop.f32.mrb[0].mxu0
      %v1392 = vadd.f32 0.0, %v1391
      %v1393 = vpop.f32.mrb[0].mxu0
      %v1394 = vadd.f32 0.0, %v1393
      %v1395 = vpop.f32.mrb[0].mxu0
      %v1396 = vadd.f32 0.0, %v1395
      %1397 = vmatprep.mubr.bf16.mxu0 0
      %1398 = vmatmul.mubr.bf16.gmra.mrb[0].mxu0 %v1353
      %v1399 = vpop.f32.mrb[0].mxu0
      %v1400 = vadd.f32 0.0, %v1399
      %v1401 = vpop.f32.mrb[0].mxu0
      %v1402 = vadd.f32 0.0, %v1401
      %v1403 = vpop.f32.mrb[0].mxu0
      %v1404 = vadd.f32 0.0, %v1403
      %v1405 = vpop.f32.mrb[0].mxu0
      %v1406 = vadd.f32 0.0, %v1405
      %1407 = vdwg.mxu0
      %v1408 = vadd.f32 %v1280, %v1390
      %v1409 = vadd.f32 %v1281, %v1392
      %v1410 = vadd.f32 %v1282, %v1394
      %v1411 = vadd.f32 %v1283, %v1396
      %v1412 = vadd.f32 %v1284, %v1400
      %v1413 = vadd.f32 %v1285, %v1402
      %v1414 = vadd.f32 %v1286, %v1404
      %v1415 = vadd.f32 %v1287, %v1406
      %v1416 = vld [vmem:[%s3] sm:$0xff]
      %v1417 = vld [vmem:[%s3 + $0x8] sm:$0xff]
      %v1418 = vld [vmem:[%s3 + $0x10] sm:$0xff]
      %v1419 = vld [vmem:[%s3 + $0x18] sm:$0xff]
      %1421 = vset.pattern.permute.xlu0 0
      %1422 = vperm.xlu0 %1421, %v1416
      %v1423 = vpop.permute.xlu0 %1422
      %1426 = vset.pattern.permute.xlu0 0
      %1427 = vperm.xlu0 %1426, %v1417
      %v1428 = vpop.permute.xlu0 %1427
      %1431 = vset.pattern.permute.xlu0 0
      %1432 = vperm.xlu0 %1431, %v1418
      %v1433 = vpop.permute.xlu0 %1432
      %1436 = vset.pattern.permute.xlu0 0
      %1437 = vperm.xlu0 %1436, %v1419
      %v1438 = vpop.permute.xlu0 %1437
      %v1440 = vadd.f32 %v1408, %v1423
      %v1441 = vadd.f32 %v1409, %v1423
      %v1442 = vadd.f32 %v1410, %v1428
      %v1443 = vadd.f32 %v1411, %v1428
      %v1444 = vadd.f32 %v1412, %v1433
      %v1445 = vadd.f32 %v1413, %v1433
      %v1446 = vadd.f32 %v1414, %v1438
      %v1447 = vadd.f32 %v1415, %v1438
      %v1448 = vmax.f32 %v1440, 0.0
      %v1449 = vmax.f32 %v1441, 0.0
      %v1450 = vmax.f32 %v1442, 0.0
      %v1451 = vmax.f32 %v1443, 0.0
      %v1452 = vmax.f32 %v1444, 0.0
      %v1453 = vmax.f32 %v1445, 0.0
      %v1454 = vmax.f32 %v1446, 0.0
      %v1455 = vmax.f32 %v1447, 0.0
      %v1456 = vpack.c.bf16 %v1450, %v1448
      %v1457 = vpack.c.bf16 %v1451, %v1449
      %v1458 = vpack.c.bf16 %v1454, %v1452
      %v1459 = vpack.c.bf16 %v1455, %v1453
      %v1464 = vunpack.c.l.b16 %v1456
      %v1465 = vunpack.c.l.b16 %v1457
      %v1466 = vunpack.c.h.b16 %v1456
      %v1467 = vunpack.c.h.b16 %v1457
      %v1468 = vunpack.c.l.b16 %v1458
      %v1469 = vunpack.c.l.b16 %v1459
      %v1470 = vunpack.c.h.b16 %v1458
      %v1471 = vunpack.c.h.b16 %v1459
      %v1472 = vpack.c.b16 %v1465, %v1464
      %v1473 = vpack.c.b16 %v1467, %v1466
      %v1474 = vpack.c.b16 %v1469, %v1468
      %v1475 = vpack.c.b16 %v1471, %v1470
      %1480 = vst [vmem:[%s259] sm:$0xff] %v1472
      %1481 = vst [vmem:[%s259 + $0x8] sm:$0xff] %v1473
      %1482 = vst [vmem:[%s259 + $0x10] sm:$0xff] %v1474
      %1483 = vst [vmem:[%s259 + $0x18] sm:$0xff] %v1475
      %v1484 = vunpack.c.l.bf16 %v1456
      %v1485 = vunpack.c.l.bf16 %v1457
      %v1486 = vunpack.c.h.bf16 %v1456
      %v1487 = vunpack.c.h.bf16 %v1457
      %v1488 = vunpack.c.l.bf16 %v1458
      %v1489 = vunpack.c.l.bf16 %v1459
      %v1490 = vunpack.c.h.bf16 %v1458
      %v1491 = vunpack.c.h.bf16 %v1459
      %v1492 = vadd.f32 %v1484, %v1485
      %1493 = vadd.xlane.f32.xlu0 %v1492
      %v1494 = vpop.xlane.xlu0 %1493
      %v1495 = vadd.f32 %v1486, %v1487
      %1496 = vadd.xlane.f32.xlu0 %v1495
      %v1497 = vpop.xlane.xlu0 %1496
      %v1498 = vadd.f32 %v1488, %v1489
      %1499 = vadd.xlane.f32.xlu0 %v1498
      %v1500 = vpop.xlane.xlu0 %1499
      %v1501 = vadd.f32 %v1490, %v1491
      %1502 = vadd.xlane.f32.xlu0 %v1501
      %v1503 = vpop.xlane.xlu0 %1502
      %1504 = vst.msk [vmem:[%s264] sm:$0xff] %vm717, %v1494
      %1505 = vst.msk [vmem:[%s264 + $0x8] sm:$0xff] %vm717, %v1497
      %1506 = vst.msk [vmem:[%s264 + $0x10] sm:$0xff] %vm717, %v1500
      %1507 = vst.msk [vmem:[%s264 + $0x18] sm:$0xff] %vm717, %v1503
      %v1508 = vmul.f32 %v1484, %v1484
      %v1509 = vmul.f32 %v1485, %v1485
      %v1510 = vmul.f32 %v1486, %v1486
      %v1511 = vmul.f32 %v1487, %v1487
      %v1512 = vmul.f32 %v1488, %v1488
      %v1513 = vmul.f32 %v1489, %v1489
      %v1514 = vmul.f32 %v1490, %v1490
      %v1515 = vmul.f32 %v1491, %v1491
      %v1516 = vadd.f32 %v1508, %v1509
      %1517 = vadd.xlane.f32.xlu0 %v1516
      %v1518 = vpop.xlane.xlu0 %1517
      %v1519 = vadd.f32 %v1510, %v1511
      %1520 = vadd.xlane.f32.xlu0 %v1519
      %v1521 = vpop.xlane.xlu0 %1520
      %v1522 = vadd.f32 %v1512, %v1513
      %1523 = vadd.xlane.f32.xlu0 %v1522
      %v1524 = vpop.xlane.xlu0 %1523
      %v1525 = vadd.f32 %v1514, %v1515
      %1526 = vadd.xlane.f32.xlu0 %v1525
      %v1527 = vpop.xlane.xlu0 %1526
      %vm1528 = vcmask 15368
      %1529 = vst.msk [vmem:[%s264] sm:$0xff] %vm1528, %v1518
      %1530 = vst.msk [vmem:[%s264 + $0x8] sm:$0xff] %vm1528, %v1521
      %1531 = vst.msk [vmem:[%s264 + $0x10] sm:$0xff] %vm1528, %v1524
      %1532 = vst.msk [vmem:[%s264 + $0x18] sm:$0xff] %vm1528, %v1527
      %p1533 = scmp.lt.s32.totalorder %s18, 1
      %s1534 = scalar_select %p1533, %s18, 1
      %s1535 = smul.addr %s1534, 8
      %s1536 = smul.addr %s1535, 4
      %s1537 = scalar_lea.vmem %s5, %s1536
      %p1538 = scmp.lt.s32.totalorder %s18, 1
      %s1539 = scalar_select %p1538, %s18, 1
      %s1540 = smul.addr %s1539, 4
      %s1541 = smul.addr %s1540, 8
      %s1542 = scalar_lea.vmem %s6, %s1541
      // Predicated region
      $region41: #{unet_forward.4} parent=39 // pred_check
        %p1543 = pneg %p146
      $region42: #{unet_forward.4} parent=39 // pred_check_branch
        %1545 = sbr.rel (%p1543) target = $region44
      $region43: #{unet_forward.4} parent=39 // pred_region
        _
      $region44: #{unet_forward.4} parent=39 // pred_fallthru
        _
      // Predicated region
      $region45: #{unet_forward.4} parent=39 // pred_check
        %p1546 = pneg %p172
      $region46: #{unet_forward.4} parent=39 // pred_check_branch
        %1548 = sbr.rel (%p1546) target = $region48
      $region47: #{unet_forward.4} parent=39 // pred_region
        _
      $region48: #{unet_forward.4} parent=39 // pred_fallthru
        _
    $region40: #{unet_forward.4} parent=5 // pred_fallthru
      _
    %p1549 = scmp.le.s32.totalorder 2, %s13
    // Predicated region
    $region49: #{unet_forward.4} parent=5 // pred_check
      %p1550 = pneg %p1549
    $region50: #{unet_forward.4} parent=5 // pred_check_branch
      %1552 = sbr.rel (%p1550) target = $region52
    $region51: #{unet_forward.4} parent=5 // pred_region
      %s1553 = ssub.s32 %s13, 2
      // Predicated region
      $region53: #{unet_forward.4} parent=51 // pred_check
        %p1554 = pneg %p152
      $region54: #{unet_forward.4} parent=51 // pred_check_branch
        %1556 = sbr.rel (%p1554) target = $region56
      $region55: #{unet_forward.4} parent=51 // pred_region
        %p1557 = scmp.lt.s32.totalorder %s19, 1
        %s1558 = scalar_select %p1557, %s19, 1
        %s1559 = smul.addr %s1558, 8
        %s1560 = smul.addr %s1559, 4
        %s1561 = scalar_lea.vmem %s5, %s1560
      $region56: #{unet_forward.4} parent=51 // pred_fallthru
        _
      // Predicated region
      $region57: #{unet_forward.4} parent=51 // pred_check
        %p1562 = pneg %p178
      $region58: #{unet_forward.4} parent=51 // pred_check_branch
        %1564 = sbr.rel (%p1562) target = $region60
      $region59: #{unet_forward.4} parent=51 // pred_region
        %p1565 = scmp.lt.s32.totalorder %s19, 1
        %s1566 = scalar_select %p1565, %s19, 1
        %s1567 = smul.addr %s1566, 4
        %s1568 = smul.addr %s1567, 8
        %s1569 = scalar_lea.vmem %s6, %s1568
      $region60: #{unet_forward.4} parent=51 // pred_fallthru
        _
    $region52: #{unet_forward.4} parent=5 // pred_fallthru
      _
  $region6: #{unet_forward.4} parent=0 // loop_footer
    %s17 = sadd.s32 1, %s13
  $region7: #{unet_forward.4} parent=0 // loop_footer_branch
    %12 = sbr.rel target = $region3
  $region8: #{unet_forward.4} parent=0 // loop_exit
    _

// kernel: unet_forward.3
$region0: #{unet_forward.3}
  #allocation0 [shape = 'u32[]', space=smem, size = 0x4, offset = 0x4, fixed_abs, tag = 'smem constant byte address 0x4 - core index']
  #allocation1 [shape = 'u32[144,128]{1,0:T(1,128)}', space=vmem, size = 0x12000, scoped, tag = 'internal scratch']
  %s0 = inlined_call_operand.vmem [shape: bf16[2,3,256], index: 0, kind: input, shape index: {}]
  %s1 = inlined_call_operand.vmem [shape: bf16[1,3,3], index: 1, kind: input, shape index: {}]
  %s2 = inlined_call_operand.vmem [shape: f32[3,1], index: 2, kind: input, shape index: {}]
  %s3 = inlined_call_operand.vmem [shape: bf16[9,32,3], index: 3, kind: input, shape index: {}]
  %s4 = inlined_call_operand.vmem [shape: f32[32,1], index: 4, kind: input, shape index: {}]
  %s5 = inlined_call_operand.vmem [shape: bf16[1,256], index: 5, kind: input, shape index: {}]
  %s6 = inlined_call_operand.vmem [shape: bf16[9,256], index: 6, kind: input, shape index: {}]
  %s7 = inlined_call_operand.vmem [shape: bf16[2,32,256], index: 7, kind: output, shape index: {0}]
  %s8 = inlined_call_operand.vmem [shape: f32[2,32,2], index: 8, kind: output, shape index: {1}]
  %9 = xla_tuple %s7, %s8
  %s10 = sld [smem:[#allocation0]]
  $region69: #{unet_forward.3} parent=0
    _
  %s12 = ssub.s32 1, %s10
  %s13 = scalar_select 0, %s12, %s10
  loop: start=0, step=1, limit=4
  $region2: #{unet_forward.3} parent=0 // loop_pre_header
    _
  $region3: #{unet_forward.3} parent=0 // loop_header
    %s15 = sphi 0, %s19
    %p16 = scmp.ge.s32.totalorder %s15, 4
    %s25 = sphi 0, %s27
    %s28 = sphi 0, %s25
    %s29 = sphi 0, %s28
    %s45 = sphi 0, %s29
    %s49 = sphi 0, %s49
    %s51 = sphi 0, %s49
    %s52 = sphi 0, %s51
    %s66 = sphi 0, %s52
    %s70 = sphi 0, %s70
    %s72 = sphi 0, %s70
    %s73 = sphi 0, %s72
    %s87 = sphi 0, %s73
    %s91 = sphi 0, %s91
    %s93 = sphi 0, %s91
    %s94 = sphi 0, %s93
    %s108 = sphi 0, %s94
    %s112 = sphi 0, %s112
    %s114 = sphi 0, %s112
    %s115 = sphi 0, %s114
    %s129 = sphi 0, %s115
    %s133 = sphi 0, %s133
    %s135 = sphi 0, %s133
    %s136 = sphi 0, %s135
    %s150 = sphi 0, %s136
    %s154 = sphi 0, %s154
    %s156 = sphi 0, %s154
    %s157 = sphi 0, %s156
    %s171 = sphi 0, %s157
    %s177 = sphi 0, %s179
    %s180 = sphi 0, %s177
    %s181 = sphi 0, %s180
    %s197 = sphi 0, %s181
    %s203 = sphi 0, %s205
    %s206 = sphi 0, %s203
    %s207 = sphi 0, %s206
    %s223 = sphi 0, %s207
  $region4: #{unet_forward.3} parent=0 // loop_header_branch
    %18 = sbr.rel (%p16) target = $region8
  $region5: #{unet_forward.3} parent=0 // loop_body
    %s20 = ssub.s32 %s15, 1
    %s21 = ssub.s32 %s15, 2
    %s22 = sadd.s32 %s15, 1
    %s23 = ssub.s32 %s15, %s22
    %p24 = scmp.eq.s32.totalorder %s23, 0
    %s26 = sadd.s32 %s25, 1
    %s27 = scalar_select %p24, %s25, %s26
    %p30 = pneg %p24
    %p31 = scmp.eq.s32.totalorder %s15, 1
    %p32 = por %p30, %p31
    %p33 = scmp.ne.s32.totalorder %s25, %s28
    %p34 = scmp.eq.s32.totalorder %s15, 0
    %p35 = por %p33, %p34
    %p36 = scmp.ne.s32.totalorder %s25, %s28
    %p37 = scmp.eq.s32.totalorder %s20, 1
    %p38 = por %p36, %p37
    %p39 = scmp.ne.s32.totalorder %s28, %s29
    %p40 = scmp.eq.s32.totalorder %s20, 0
    %p41 = por %p39, %p40
    %p42 = scmp.ne.s32.totalorder %s28, %s29
    %p43 = scmp.eq.s32.totalorder %s21, 1
    %p44 = por %p42, %p43
    %p46 = scmp.ne.s32.totalorder %s29, %s45
    %p47 = scmp.eq.s32.totalorder %s21, 0
    %p48 = por %p46, %p47
    %s50 = sadd.s32 %s49, 1
    %p53 = scmp.eq.s32.totalorder %s15, 1
    %p54 = scmp.ne.s32.totalorder %s49, %s51
    %p55 = scmp.eq.s32.totalorder %s15, 0
    %p56 = por %p54, %p55
    %p57 = scmp.ne.s32.totalorder %s49, %s51
    %p58 = scmp.eq.s32.totalorder %s20, 1
    %p59 = por %p57, %p58
    %p60 = scmp.ne.s32.totalorder %s51, %s52
    %p61 = scmp.eq.s32.totalorder %s20, 0
    %p62 = por %p60, %p61
    %p63 = scmp.ne.s32.totalorder %s51, %s52
    %p64 = scmp.eq.s32.totalorder %s21, 1
    %p65 = por %p63, %p64
    %p67 = scmp.ne.s32.totalorder %s52, %s66
    %p68 = scmp.eq.s32.totalorder %s21, 0
    %p69 = por %p67, %p68
    %s71 = sadd.s32 %s70, 1
    %p74 = scmp.eq.s32.totalorder %s15, 1
    %p75 = scmp.ne.s32.totalorder %s70, %s72
    %p76 = scmp.eq.s32.totalorder %s15, 0
    %p77 = por %p75, %p76
    %p78 = scmp.ne.s32.totalorder %s70, %s72
    %p79 = scmp.eq.s32.totalorder %s20, 1
    %p80 = por %p78, %p79
    %p81 = scmp.ne.s32.totalorder %s72, %s73
    %p82 = scmp.eq.s32.totalorder %s20, 0
    %p83 = por %p81, %p82
    %p84 = scmp.ne.s32.totalorder %s72, %s73
    %p85 = scmp.eq.s32.totalorder %s21, 1
    %p86 = por %p84, %p85
    %p88 = scmp.ne.s32.totalorder %s73, %s87
    %p89 = scmp.eq.s32.totalorder %s21, 0
    %p90 = por %p88, %p89
    %s92 = sadd.s32 %s91, 1
    %p95 = scmp.eq.s32.totalorder %s15, 1
    %p96 = scmp.ne.s32.totalorder %s91, %s93
    %p97 = scmp.eq.s32.totalorder %s15, 0
    %p98 = por %p96, %p97
    %p99 = scmp.ne.s32.totalorder %s91, %s93
    %p100 = scmp.eq.s32.totalorder %s20, 1
    %p101 = por %p99, %p100
    %p102 = scmp.ne.s32.totalorder %s93, %s94
    %p103 = scmp.eq.s32.totalorder %s20, 0
    %p104 = por %p102, %p103
    %p105 = scmp.ne.s32.totalorder %s93, %s94
    %p106 = scmp.eq.s32.totalorder %s21, 1
    %p107 = por %p105, %p106
    %p109 = scmp.ne.s32.totalorder %s94, %s108
    %p110 = scmp.eq.s32.totalorder %s21, 0
    %p111 = por %p109, %p110
    %s113 = sadd.s32 %s112, 1
    %p116 = scmp.eq.s32.totalorder %s15, 1
    %p117 = scmp.ne.s32.totalorder %s112, %s114
    %p118 = scmp.eq.s32.totalorder %s15, 0
    %p119 = por %p117, %p118
    %p120 = scmp.ne.s32.totalorder %s112, %s114
    %p121 = scmp.eq.s32.totalorder %s20, 1
    %p122 = por %p120, %p121
    %p123 = scmp.ne.s32.totalorder %s114, %s115
    %p124 = scmp.eq.s32.totalorder %s20, 0
    %p125 = por %p123, %p124
    %p126 = scmp.ne.s32.totalorder %s114, %s115
    %p127 = scmp.eq.s32.totalorder %s21, 1
    %p128 = por %p126, %p127
    %p130 = scmp.ne.s32.totalorder %s115, %s129
    %p131 = scmp.eq.s32.totalorder %s21, 0
    %p132 = por %p130, %p131
    %s134 = sadd.s32 %s133, 1
    %p137 = scmp.eq.s32.totalorder %s15, 1
    %p138 = scmp.ne.s32.totalorder %s133, %s135
    %p139 = scmp.eq.s32.totalorder %s15, 0
    %p140 = por %p138, %p139
    %p141 = scmp.ne.s32.totalorder %s133, %s135
    %p142 = scmp.eq.s32.totalorder %s20, 1
    %p143 = por %p141, %p142
    %p144 = scmp.ne.s32.totalorder %s135, %s136
    %p145 = scmp.eq.s32.totalorder %s20, 0
    %p146 = por %p144, %p145
    %p147 = scmp.ne.s32.totalorder %s135, %s136
    %p148 = scmp.eq.s32.totalorder %s21, 1
    %p149 = por %p147, %p148
    %p151 = scmp.ne.s32.totalorder %s136, %s150
    %p152 = scmp.eq.s32.totalorder %s21, 0
    %p153 = por %p151, %p152
    %s155 = sadd.s32 %s154, 1
    %p158 = scmp.eq.s32.totalorder %s15, 1
    %p159 = scmp.ne.s32.totalorder %s154, %s156
    %p160 = scmp.eq.s32.totalorder %s15, 0
    %p161 = por %p159, %p160
    %p162 = scmp.ne.s32.totalorder %s154, %s156
    %p163 = scmp.eq.s32.totalorder %s20, 1
    %p164 = por %p162, %p163
    %p165 = scmp.ne.s32.totalorder %s156, %s157
    %p166 = scmp.eq.s32.totalorder %s20, 0
    %p167 = por %p165, %p166
    %p168 = scmp.ne.s32.totalorder %s156, %s157
    %p169 = scmp.eq.s32.totalorder %s21, 1
    %p170 = por %p168, %p169
    %p172 = scmp.ne.s32.totalorder %s157, %s171
    %p173 = scmp.eq.s32.totalorder %s21, 0
    %p174 = por %p172, %p173
    %s175 = ssub.s32 %s15, %s22
    %p176 = scmp.eq.s32.totalorder %s175, 0
    %s178 = sadd.s32 %s177, 1
    %s179 = scalar_select %p176, %s177, %s178
    %p182 = pneg %p176
    %p183 = scmp.eq.s32.totalorder %s15, 1
    %p184 = por %p182, %p183
    %p185 = scmp.ne.s32.totalorder %s177, %s180
    %p186 = scmp.eq.s32.totalorder %s15, 0
    %p187 = por %p185, %p186
    %p188 = scmp.ne.s32.totalorder %s177, %s180
    %p189 = scmp.eq.s32.totalorder %s20, 1
    %p190 = por %p188, %p189
    %p191 = scmp.ne.s32.totalorder %s180, %s181
    %p192 = scmp.eq.s32.totalorder %s20, 0
    %p193 = por %p191, %p192
    %p194 = scmp.ne.s32.totalorder %s180, %s181
    %p195 = scmp.eq.s32.totalorder %s21, 1
    %p196 = por %p194, %p195
    %p198 = scmp.ne.s32.totalorder %s181, %s197
    %p199 = scmp.eq.s32.totalorder %s21, 0
    %p200 = por %p198, %p199
    %s201 = ssub.s32 %s15, %s22
    %p202 = scmp.eq.s32.totalorder %s201, 0
    %s204 = sadd.s32 %s203, 1
    %s205 = scalar_select %p202, %s203, %s204
    %p208 = pneg %p202
    %p209 = scmp.eq.s32.totalorder %s15, 1
    %p210 = por %p208, %p209
    %p211 = scmp.ne.s32.totalorder %s203, %s206
    %p212 = scmp.eq.s32.totalorder %s15, 0
    %p213 = por %p211, %p212
    %p214 = scmp.ne.s32.totalorder %s203, %s206
    %p215 = scmp.eq.s32.totalorder %s20, 1
    %p216 = por %p214, %p215
    %p217 = scmp.ne.s32.totalorder %s206, %s207
    %p218 = scmp.eq.s32.totalorder %s20, 0
    %p219 = por %p217, %p218
    %p220 = scmp.ne.s32.totalorder %s206, %s207
    %p221 = scmp.eq.s32.totalorder %s21, 1
    %p222 = por %p220, %p221
    %p224 = scmp.ne.s32.totalorder %s207, %s223
    %p225 = scmp.eq.s32.totalorder %s21, 0
    %p226 = por %p224, %p225
    %p227 = scmp.le.s32.totalorder 1, %s15
    %p228 = scmp.lt.s32.totalorder %s15, 3
    %p229 = pnand %p227, %p228
    %p230 = pneg %p229
    // Predicated region
    $region9: #{unet_forward.3} parent=5 // pred_check
      _
    $region10: #{unet_forward.3} parent=5 // pred_check_branch
      %232 = sbr.rel (%p229) target = $region12
    $region11: #{unet_forward.3} parent=5 // pred_region
      %s233 = ssub.s32 %s15, 1
      // Predicated region
      $region13: #{unet_forward.3} parent=11 // pred_check
        %p234 = pneg %p62
      $region14: #{unet_forward.3} parent=11 // pred_check_branch
        %236 = sbr.rel (%p234) target = $region16
      $region15: #{unet_forward.3} parent=11 // pred_region
        _
      $region16: #{unet_forward.3} parent=11 // pred_fallthru
        _
      // Predicated region
      $region17: #{unet_forward.3} parent=11 // pred_check
        %p237 = pneg %p83
      $region18: #{unet_forward.3} parent=11 // pred_check_branch
        %239 = sbr.rel (%p237) target = $region20
      $region19: #{unet_forward.3} parent=11 // pred_region
        _
      $region20: #{unet_forward.3} parent=11 // pred_fallthru
        _
      // Predicated region
      $region21: #{unet_forward.3} parent=11 // pred_check
        %p240 = pneg %p104
      $region22: #{unet_forward.3} parent=11 // pred_check_branch
        %242 = sbr.rel (%p240) target = $region24
      $region23: #{unet_forward.3} parent=11 // pred_region
        _
      $region24: #{unet_forward.3} parent=11 // pred_fallthru
        _
      // Predicated region
      $region25: #{unet_forward.3} parent=11 // pred_check
        %p243 = pneg %p125
      $region26: #{unet_forward.3} parent=11 // pred_check_branch
        %245 = sbr.rel (%p243) target = $region28
      $region27: #{unet_forward.3} parent=11 // pred_region
        _
      $region28: #{unet_forward.3} parent=11 // pred_fallthru
        _
      // Predicated region
      $region29: #{unet_forward.3} parent=11 // pred_check
        %p246 = pneg %p146
      $region30: #{unet_forward.3} parent=11 // pred_check_branch
        %248 = sbr.rel (%p246) target = $region32
      $region31: #{unet_forward.3} parent=11 // pred_region
        _
      $region32: #{unet_forward.3} parent=11 // pred_fallthru
        _
      // Predicated region
      $region33: #{unet_forward.3} parent=11 // pred_check
        %p249 = pneg %p167
      $region34: #{unet_forward.3} parent=11 // pred_check_branch
        %251 = sbr.rel (%p249) target = $region36
      $region35: #{unet_forward.3} parent=11 // pred_region
        _
      $region36: #{unet_forward.3} parent=11 // pred_fallthru
        _
    $region12: #{unet_forward.3} parent=5 // pred_fallthru
      _
    %p252 = scmp.lt.s32.totalorder %s15, 2
    // Predicated region
    $region37: #{unet_forward.3} parent=5 // pred_check
      %p253 = pneg %p252
    $region38: #{unet_forward.3} parent=5 // pred_check_branch
      %255 = sbr.rel (%p253) target = $region40
    $region39: #{unet_forward.3} parent=5 // pred_region
      // Predicated region
      $region41: #{unet_forward.3} parent=39 // pred_check
        %p256 = pneg %p35
      $region42: #{unet_forward.3} parent=39 // pred_check_branch
        %258 = sbr.rel (%p256) target = $region44
      $region43: #{unet_forward.3} parent=39 // pred_region
        %p259 = scmp.lt.s32.totalorder %s15, 1
        %s260 = scalar_select %p259, %s15, 1
        %s261 = smul.addr %s260, 2
        %s262 = smul.addr %s261, 2
        %s263 = scalar_lea.vmem %s0, %s262
      $region44: #{unet_forward.3} parent=39 // pred_fallthru
        _
    $region40: #{unet_forward.3} parent=5 // pred_fallthru
      _
    %p264 = scmp.le.s32.totalorder 1, %s15
    %p265 = scmp.lt.s32.totalorder %s15, 3
    %p266 = pnand %p264, %p265
    %p267 = pneg %p266
    // Predicated region
    $region45: #{unet_forward.3} parent=5 // pred_check
      _
    $region46: #{unet_forward.3} parent=5 // pred_check_branch
      %269 = sbr.rel (%p266) target = $region48
    $region47: #{unet_forward.3} parent=5 // pred_region
      %s270 = ssub.s32 %s15, 1
      %p271 = scmp.lt.s32.totalorder %s20, 1
      %s272 = scalar_select %p271, %s20, 1
      %s273 = smul.addr %s272, 2
      %s274 = smul.addr %s273, 2
      %s275 = scalar_lea.vmem %s0, %s274
      %p276 = pneg %p41
      %p277 = pneg %p38
      %p278 = pneg %p62
      %p279 = pneg %p59
      %p280 = pneg %p83
      %p281 = pneg %p80
      %p282 = pneg %p104
      %p283 = pneg %p101
      %p284 = pneg %p125
      %p285 = pneg %p122
      %p286 = pneg %p146
      %p287 = pneg %p143
      %p288 = pneg %p167
      %p289 = pneg %p164
      %p290 = pneg %p193
      %p291 = pneg %p190
      %p292 = scmp.lt.s32.totalorder %s20, 1
      %s293 = scalar_select %p292, %s20, 1
      %s294 = smul.addr %s293, 8
      %s295 = smul.addr %s294, 4
      %s296 = scalar_lea.vmem %s7, %s295
      %p297 = pneg %p219
      %p298 = pneg %p216
      %p299 = scmp.lt.s32.totalorder %s20, 1
      %s300 = scalar_select %p299, %s20, 1
      %s301 = smul.addr %s300, 4
      %s302 = smul.addr %s301, 8
      %s303 = scalar_lea.vmem %s8, %s302
      %p304 = scmp.lt.s32.totalorder %s20, 1
      %s305 = scalar_select %p304, %s20, 1
      %s306 = smul.addr %s305, 2
      %s307 = smul.addr %s306, 2
      %s308 = scalar_lea.vmem %s0, %s307
      %p309 = scmp.lt.s32.totalorder %s20, 1
      %s310 = scalar_select %p309, %s20, 1
      %s311 = smul.addr %s310, 8
      %s312 = smul.addr %s311, 4
      %s313 = scalar_lea.vmem %s7, %s312
      %p314 = scmp.lt.s32.totalorder %s20, 1
      %s315 = scalar_select %p314, %s20, 1
      %s316 = smul.addr %s315, 4
      %s317 = smul.addr %s316, 8
      %s318 = scalar_lea.vmem %s8, %s317
      %v320 = vld [vmem:[%s308] sm:$0xf]
      %v321 = vld [vmem:[%s1] sm:$0x3]
      %v322 = vld [vmem:[%s2] sm:$0x7]
      %324 = vset.pattern.permute.xlu0 0
      %325 = vperm.xlu0 %324, %v322
      %v326 = vpop.permute.xlu0 %325
      %v330 = vunpack.c.l.s4 1983009808
      %v331 = vunpack.c.0.s8 %v330
      %v332 = vlaneseq
      %v333 = vshrl.u32 %v332, 7
      %v334 = vsub.s32 %v331, %v333
      %v335 = vrot.slane %v320, %v334
      %v336 = vcombine.high %v335, %v335
      %vm337 = vcmask 23552
      %v339 = vsel %vm337, %v321, 0
      %vm341 = vcmask 1040384
      %vm342 = vcmask 1041408
      %v343 = vsel %vm341, 4294967295, 65535
      %v344 = vsel %vm342, %v343, 0
      %v346 = vand.u32 %v335, %v344
      %v349 = vand.u32 %v336, %v344
      %351 = vmatprep.subr.bf16.mxu0 %v349
      %352 = vmatpush1.bf16.msra.mxu0 %v346
      %353 = vmatprep.subr.bf16.mxu0 0
      %354 = vmatpush1.bf16.msra.mxu0 0
      %355 = vmatprep.subr.bf16.mxu0 0
      %356 = vmatpush1.bf16.msra.mxu0 0
      %357 = vmatprep.subr.bf16.mxu0 0
      %358 = vmatpush1.bf16.msra.mxu0 0
      %359 = vmatprep.subr.bf16.mxu0 0
      %360 = vmatpush1.bf16.msra.mxu0 0
      %361 = vmatprep.subr.bf16.mxu0 0
      %362 = vmatpush1.bf16.msra.mxu0 0
      %363 = vmatprep.subr.bf16.mxu0 0
      %364 = vmatpush1.bf16.msra.mxu0 0
      %365 = vmatprep.subr.bf16.mxu0 0
      %366 = vmatpush1.bf16.msra.mxu0 0
      %367 = vmatprep.subr.bf16.mxu0 0
      %368 = vmatpush1.bf16.msra.mxu0 0
      %369 = vmatprep.subr.bf16.mxu0 0
      %370 = vmatpush1.bf16.msra.mxu0 0
      %371 = vmatprep.subr.bf16.mxu0 0
      %372 = vmatpush1.bf16.msra.mxu0 0
      %373 = vmatprep.subr.bf16.mxu0 0
      %374 = vmatpush1.bf16.msra.mxu0 0
      %375 = vmatprep.subr.bf16.mxu0 0
      %376 = vmatpush1.bf16.msra.mxu0 0
      %377 = vmatprep.subr.bf16.mxu0 0
      %378 = vmatpush1.bf16.msra.mxu0 0
      %379 = vmatprep.subr.bf16.mxu0 0
      %380 = vmatpush1.bf16.msra.mxu0 0
      %381 = vmatprep.subr.bf16.mxu0 0
      %382 = vmatpush1.bf16.msra.mxu0 0
      %383 = vmatprep.mubr.bf16.mxu0 0
      %384 = vmatmul.mubr.bf16.gmra.mrb[0].mxu0 %v339
      %v385 = vpop.f32.mrb[0].mxu0
      %v386 = vadd.f32 %v326, %v385
      %v387 = vpop.f32.mrb[0].mxu0
      %v388 = vadd.f32 %v326, %v387
      %v389 = vpop.f32.mrb[0].mxu0
      %v390 = vpop.f32.mrb[0].mxu0
      %391 = vdwg.mxu0
      %v392 = vpack.c.bf16 %v386, %v386
      %v393 = vpack.c.bf16 %v388, %v388
      %395 = vrot.lane.b32.xlu0 %v393, 17
      %v396 = vpop.permute.xlu0 %395
      %398 = vrot.lane.b32.xlu0 %v392, 17
      %v399 = vpop.permute.xlu0 %398
      %vm400 = vcmask 138240
      %v401 = vsel %vm400, %v399, %v396
      %vm403 = vcmask 138240
      %v406 = vsel %vm403, %v396, %v399
      %v408 = vld [vmem:[%s6] sm:$0x11]
      %v410 = vunpack.c.l.b16 %v408
      %v411 = vunpack.c.h.b16 %v408
      %v412 = vpack.c.b16 %v410, %v410
      %v413 = vpack.c.b16 %v411, %v411
      %v415 = vpack.i.b16 %v412, %v412
      %v417 = vlaneseq
      %v418 = vshrl.u32 %v417, 7
      %v419 = vsub.s32 0, %v418
      %v420 = vrot.slane %v415, %v419
      %v422 = vpack.i.b16 %v413, %v413
      %v424 = vlaneseq
      %v425 = vshrl.u32 %v424, 7
      %v426 = vsub.s32 0, %v425
      %v427 = vrot.slane %v422, %v426
      %v428 = vmul.bf16 %v406, %v420
      %v429 = vmul.bf16 %v401, %v427
      %v430 = vld [vmem:[%s3] sm:$0xf]
      %v431 = vld [vmem:[%s3 + $0x4] sm:$0xf]
      %v432 = vld [vmem:[%s3 + $0x8] sm:$0xf]
      %v433 = vld [vmem:[%s3 + $0xc] sm:$0xf]
      %434 = vrot.lane.b32.xlu0 %v393, 16
      %v435 = vpop.permute.xlu0 %434
      %436 = vrot.lane.b32.xlu0 %v392, 16
      %v437 = vpop.permute.xlu0 %436
      %vm438 = vcmask 130048
      %v439 = vsel %vm438, %v437, %v435
      %vm441 = vcmask 130048
      %v444 = vsel %vm441, %v435, %v437
      %v446 = vshrl.u32 %v412, 16
      %v447 = vpack.i.b16 %v446, %v446
      %v449 = vlaneseq
      %v450 = vshrl.u32 %v449, 7
      %v451 = vsub.s32 0, %v450
      %v452 = vrot.slane %v447, %v451
      %v453 = vshrl.u32 %v413, 16
      %v454 = vpack.i.b16 %v453, %v453
      %v456 = vlaneseq
      %v457 = vshrl.u32 %v456, 7
      %v458 = vsub.s32 0, %v457
      %v459 = vrot.slane %v454, %v458
      %v460 = vmul.bf16 %v444, %v452
      %v461 = vmul.bf16 %v439, %v459
      %s462 = scalar_lea.vmem %s3, 16
      %v463 = vld [vmem:[%s462] sm:$0xf]
      %v464 = vld [vmem:[%s462 + $0x4] sm:$0xf]
      %v465 = vld [vmem:[%s462 + $0x8] sm:$0xf]
      %v466 = vld [vmem:[%s462 + $0xc] sm:$0xf]
      %v471 = vunpack.c.l.b16 %v463
      %v472 = vunpack.c.l.b16 %v464
      %v473 = vunpack.c.l.b16 %v465
      %v474 = vunpack.c.l.b16 %v466
      %v475 = vpack.c.b16 %v472, %v471
      %v476 = vpack.c.b16 %v474, %v473
      %v478 = vsel %vm337, %v475, 0
      %v481 = vsel %vm337, %v476, 0
      %v484 = vand.u32 %v460, %v344
      %v487 = vand.u32 %v461, %v344
      %489 = vmatprep.subr.bf16.mxu0 %v487
      %490 = vmatpush1.bf16.msra.mxu0 %v484
      %491 = vmatprep.subr.bf16.mxu0 0
      %492 = vmatpush1.bf16.msra.mxu0 0
      %493 = vmatprep.subr.bf16.mxu0 0
      %494 = vmatpush1.bf16.msra.mxu0 0
      %495 = vmatprep.subr.bf16.mxu0 0
      %496 = vmatpush1.bf16.msra.mxu0 0
      %497 = vmatprep.subr.bf16.mxu0 0
      %498 = vmatpush1.bf16.msra.mxu0 0
      %499 = vmatprep.subr.bf16.mxu0 0
      %500 = vmatpush1.bf16.msra.mxu0 0
      %501 = vmatprep.subr.bf16.mxu0 0
      %502 = vmatpush1.bf16.msra.mxu0 0
      %503 = vmatprep.subr.bf16.mxu0 0
      %504 = vmatpush1.bf16.msra.mxu0 0
      %505 = vmatprep.subr.bf16.mxu0 0
      %506 = vmatpush1.bf16.msra.mxu0 0
      %507 = vmatprep.subr.bf16.mxu0 0
      %508 = vmatpush1.bf16.msra.mxu0 0
      %509 = vmatprep.subr.bf16.mxu0 0
      %510 = vmatpush1.bf16.msra.mxu0 0
      %511 = vmatprep.subr.bf16.mxu0 0
      %512 = vmatpush1.bf16.msra.mxu0 0
      %513 = vmatprep.subr.bf16.mxu0 0
      %514 = vmatpush1.bf16.msra.mxu0 0
      %515 = vmatprep.subr.bf16.mxu0 0
      %516 = vmatpush1.bf16.msra.mxu0 0
      %517 = vmatprep.subr.bf16.mxu0 0
      %518 = vmatpush1.bf16.msra.mxu0 0
      %519 = vmatprep.subr.bf16.mxu0 0
      %520 = vmatpush1.bf16.msra.mxu0 0
      %521 = vmatprep.mubr.bf16.mxu0 0
      %522 = vmatmul.mubr.bf16.gmra.mrb[0].mxu0 %v478
      %v523 = vpop.f32.mrb[0].mxu0
      %v524 = vadd.f32 0.0, %v523
      %v525 = vpop.f32.mrb[0].mxu0
      %v526 = vadd.f32 0.0, %v525
      %v527 = vpop.f32.mrb[0].mxu0
      %v528 = vadd.f32 0.0, %v527
      %v529 = vpop.f32.mrb[0].mxu0
      %v530 = vadd.f32 0.0, %v529
      %531 = vmatprep.mubr.bf16.mxu0 0
      %532 = vmatmul.mubr.bf16.gmra.mrb[0].mxu0 %v481
      %v533 = vpop.f32.mrb[0].mxu0
      %v534 = vadd.f32 0.0, %v533
      %v535 = vpop.f32.mrb[0].mxu0
      %v536 = vadd.f32 0.0, %v535
      %v537 = vpop.f32.mrb[0].mxu0
      %v538 = vadd.f32 0.0, %v537
      %v539 = vpop.f32.mrb[0].mxu0
      %v540 = vadd.f32 0.0, %v539
      %541 = vdwg.mxu0
      %v546 = vunpack.c.l.b16 %v430
      %v547 = vunpack.c.l.b16 %v431
      %v548 = vunpack.c.l.b16 %v432
      %v549 = vunpack.c.l.b16 %v433
      %v550 = vpack.c.b16 %v547, %v546
      %v551 = vpack.c.b16 %v549, %v548
      %v553 = vsel %vm337, %v550, 0
      %v556 = vsel %vm337, %v551, 0
      %v559 = vand.u32 %v428, %v344
      %v562 = vand.u32 %v429, %v344
      %564 = vmatprep.subr.bf16.mxu0 %v562
      %565 = vmatpush1.bf16.msra.mxu0 %v559
      %566 = vmatprep.subr.bf16.mxu0 0
      %567 = vmatpush1.bf16.msra.mxu0 0
      %568 = vmatprep.subr.bf16.mxu0 0
      %569 = vmatpush1.bf16.msra.mxu0 0
      %570 = vmatprep.subr.bf16.mxu0 0
      %571 = vmatpush1.bf16.msra.mxu0 0
      %572 = vmatprep.subr.bf16.mxu0 0
      %573 = vmatpush1.bf16.msra.mxu0 0
      %574 = vmatprep.subr.bf16.mxu0 0
      %575 = vmatpush1.bf16.msra.mxu0 0
      %576 = vmatprep.subr.bf16.mxu0 0
      %577 = vmatpush1.bf16.msra.mxu0 0
      %578 = vmatprep.subr.bf16.mxu0 0
      %579 = vmatpush1.bf16.msra.mxu0 0
      %580 = vmatprep.subr.bf16.mxu0 0
      %581 = vmatpush1.bf16.msra.mxu0 0
      %582 = vmatprep.subr.bf16.mxu0 0
      %583 = vmatpush1.bf16.msra.mxu0 0
      %584 = vmatprep.subr.bf16.mxu0 0
      %585 = vmatpush1.bf16.msra.mxu0 0
      %586 = vmatprep.subr.bf16.mxu0 0
      %587 = vmatpush1.bf16.msra.mxu0 0
      %588 = vmatprep.subr.bf16.mxu0 0
      %589 = vmatpush1.bf16.msra.mxu0 0
      %590 = vmatprep.subr.bf16.mxu0 0
      %591 = vmatpush1.bf16.msra.mxu0 0
      %592 = vmatprep.subr.bf16.mxu0 0
      %593 = vmatpush1.bf16.msra.mxu0 0
      %594 = vmatprep.subr.bf16.mxu0 0
      %595 = vmatpush1.bf16.msra.mxu0 0
      %596 = vmatprep.mubr.bf16.mxu0 0
      %597 = vmatmul.mubr.bf16.gmra.mrb[0].mxu0 %v553
      %v598 = vpop.f32.mrb[0].mxu0
      %v599 = vadd.f32 %v524, %v598
      %v600 = vpop.f32.mrb[0].mxu0
      %v601 = vadd.f32 %v526, %v600
      %v602 = vpop.f32.mrb[0].mxu0
      %v603 = vadd.f32 %v528, %v602
      %v604 = vpop.f32.mrb[0].mxu0
      %v605 = vadd.f32 %v530, %v604
      %606 = vmatprep.mubr.bf16.mxu0 0
      %607 = vmatmul.mubr.bf16.gmra.mrb[0].mxu0 %v556
      %v608 = vpop.f32.mrb[0].mxu0
      %v609 = vadd.f32 %v534, %v608
      %v610 = vpop.f32.mrb[0].mxu0
      %v611 = vadd.f32 %v536, %v610
      %v612 = vpop.f32.mrb[0].mxu0
      %v613 = vadd.f32 %v538, %v612
      %v614 = vpop.f32.mrb[0].mxu0
      %v615 = vadd.f32 %v540, %v614
      %616 = vdwg.mxu0
      %617 = vrot.lane.b32.xlu0 %v393, 15
      %v618 = vpop.permute.xlu0 %617
      %619 = vrot.lane.b32.xlu0 %v392, 15
      %v620 = vpop.permute.xlu0 %619
      %vm621 = vcmask 121856
      %v622 = vsel %vm621, %v620, %v618
      %vm624 = vcmask 121856
      %v627 = vsel %vm624, %v618, %v620
      %v629 = vld [vmem:[%s6] sm:$0x22]
      %v631 = vunpack.c.l.b16 %v629
      %v632 = vunpack.c.h.b16 %v629
      %v633 = vpack.c.b16 %v631, %v631
      %v634 = vpack.c.b16 %v632, %v632
      %v636 = vpack.i.b16 %v633, %v633
      %v638 = vlaneseq
      %v639 = vshrl.u32 %v638, 7
      %v640 = vsub.s32 1, %v639
      %v641 = vrot.slane %v636, %v640
      %v643 = vpack.i.b16 %v634, %v634
      %v645 = vlaneseq
      %v646 = vshrl.u32 %v645, 7
      %v647 = vsub.s32 1, %v646
      %v648 = vrot.slane %v643, %v647
      %v649 = vmul.bf16 %v627, %v641
      %v650 = vmul.bf16 %v622, %v648
      %s651 = scalar_lea.vmem %s3, 32
      %v652 = vld [vmem:[%s651] sm:$0xf]
      %v653 = vld [vmem:[%s651 + $0x4] sm:$0xf]
      %v654 = vld [vmem:[%s651 + $0x8] sm:$0xf]
      %v655 = vld [vmem:[%s651 + $0xc] sm:$0xf]
      %v660 = vunpack.c.l.b16 %v652
      %v661 = vunpack.c.l.b16 %v653
      %v662 = vunpack.c.l.b16 %v654
      %v663 = vunpack.c.l.b16 %v655
      %v664 = vpack.c.b16 %v661, %v660
      %v665 = vpack.c.b16 %v663, %v662
      %v667 = vsel %vm337, %v664, 0
      %v670 = vsel %vm337, %v665, 0
      %v673 = vand.u32 %v649, %v344
      %v676 = vand.u32 %v650, %v344
      %678 = vmatprep.subr.bf16.mxu0 %v676
      %679 = vmatpush1.bf16.msra.mxu0 %v673
      %680 = vmatprep.subr.bf16.mxu0 0
      %681 = vmatpush1.bf16.msra.mxu0 0
      %682 = vmatprep.subr.bf16.mxu0 0
      %683 = vmatpush1.bf16.msra.mxu0 0
      %684 = vmatprep.subr.bf16.mxu0 0
      %685 = vmatpush1.bf16.msra.mxu0 0
      %686 = vmatprep.subr.bf16.mxu0 0
      %687 = vmatpush1.bf16.msra.mxu0 0
      %688 = vmatprep.subr.bf16.mxu0 0
      %689 = vmatpush1.bf16.msra.mxu0 0
      %690 = vmatprep.subr.bf16.mxu0 0
      %691 = vmatpush1.bf16.msra.mxu0 0
      %692 = vmatprep.subr.bf16.mxu0 0
      %693 = vmatpush1.bf16.msra.mxu0 0
      %694 = vmatprep.subr.bf16.mxu0 0
      %695 = vmatpush1.bf16.msra.mxu0 0
      %696 = vmatprep.subr.bf16.mxu0 0
      %697 = vmatpush1.bf16.msra.mxu0 0
      %698 = vmatprep.subr.bf16.mxu0 0
      %699 = vmatpush1.bf16.msra.mxu0 0
      %700 = vmatprep.subr.bf16.mxu0 0
      %701 = vmatpush1.bf16.msra.mxu0 0
      %702 = vmatprep.subr.bf16.mxu0 0
      %703 = vmatpush1.bf16.msra.mxu0 0
      %704 = vmatprep.subr.bf16.mxu0 0
      %705 = vmatpush1.bf16.msra.mxu0 0
      %706 = vmatprep.subr.bf16.mxu0 0
      %707 = vmatpush1.bf16.msra.mxu0 0
      %708 = vmatprep.subr.bf16.mxu0 0
      %709 = vmatpush1.bf16.msra.mxu0 0
      %710 = vmatprep.mubr.bf16.mxu0 0
      %711 = vmatmul.mubr.bf16.gmra.mrb[0].mxu0 %v667
      %v712 = vpop.f32.mrb[0].mxu0
      %v713 = vadd.f32 0.0, %v712
      %v714 = vpop.f32.mrb[0].mxu0
      %v715 = vadd.f32 0.0, %v714
      %v716 = vpop.f32.mrb[0].mxu0
      %v717 = vadd.f32 0.0, %v716
      %v718 = vpop.f32.mrb[0].mxu0
      %v719 = vadd.f32 0.0, %v718
      %720 = vmatprep.mubr.bf16.mxu0 0
      %721 = vmatmul.mubr.bf16.gmra.mrb[0].mxu0 %v670
      %v722 = vpop.f32.mrb[0].mxu0
      %v723 = vadd.f32 0.0, %v722
      %v724 = vpop.f32.mrb[0].mxu0
      %v725 = vadd.f32 0.0, %v724
      %v726 = vpop.f32.mrb[0].mxu0
      %v727 = vadd.f32 0.0, %v726
      %v728 = vpop.f32.mrb[0].mxu0
      %v729 = vadd.f32 0.0, %v728
      %730 = vdwg.mxu0
      %v731 = vadd.f32 %v599, %v713
      %v732 = vadd.f32 %v601, %v715
      %v733 = vadd.f32 %v603, %v717
      %v734 = vadd.f32 %v605, %v719
      %v735 = vadd.f32 %v609, %v723
      %v736 = vadd.f32 %v611, %v725
      %v737 = vadd.f32 %v613, %v727
      %v738 = vadd.f32 %v615, %v729
      %739 = vrot.lane.b32.xlu0 %v393, 1
      %v740 = vpop.permute.xlu0 %739
      %741 = vrot.lane.b32.xlu0 %v392, 1
      %v742 = vpop.permute.xlu0 %741
      %vm743 = vcmask 7168
      %v744 = vsel %vm743, %v742, %v740
      %vm746 = vcmask 7168
      %v749 = vsel %vm746, %v740, %v742
      %v751 = vshrl.u32 %v633, 16
      %v752 = vpack.i.b16 %v751, %v751
      %v754 = vlaneseq
      %v755 = vshrl.u32 %v754, 7
      %v756 = vsub.s32 1, %v755
      %v757 = vrot.slane %v752, %v756
      %v758 = vshrl.u32 %v634, 16
      %v759 = vpack.i.b16 %v758, %v758
      %v761 = vlaneseq
      %v762 = vshrl.u32 %v761, 7
      %v763 = vsub.s32 1, %v762
      %v764 = vrot.slane %v759, %v763
      %v765 = vmul.bf16 %v749, %v757
      %v766 = vmul.bf16 %v744, %v764
      %s767 = scalar_lea.vmem %s3, 48
      %v768 = vld [vmem:[%s767] sm:$0xf]
      %v769 = vld [vmem:[%s767 + $0x4] sm:$0xf]
      %v770 = vld [vmem:[%s767 + $0x8] sm:$0xf]
      %v771 = vld [vmem:[%s767 + $0xc] sm:$0xf]
      %v776 = vunpack.c.l.b16 %v768
      %v777 = vunpack.c.l.b16 %v769
      %v778 = vunpack.c.l.b16 %v770
      %v779 = vunpack.c.l.b16 %v771
      %v780 = vpack.c.b16 %v777, %v776
      %v781 = vpack.c.b16 %v779, %v778
      %v783 = vsel %vm337, %v780, 0
      %v786 = vsel %vm337, %v781, 0
      %v789 = vand.u32 %v765, %v344
      %v792 = vand.u32 %v766, %v344
      %794 = vmatprep.subr.bf16.mxu0 %v792
      %795 = vmatpush1.bf16.msra.mxu0 %v789
      %796 = vmatprep.subr.bf16.mxu0 0
      %797 = vmatpush1.bf16.msra.mxu0 0
      %798 = vmatprep.subr.bf16.mxu0 0
      %799 = vmatpush1.bf16.msra.mxu0 0
      %800 = vmatprep.subr.bf16.mxu0 0
      %801 = vmatpush1.bf16.msra.mxu0 0
      %802 = vmatprep.subr.bf16.mxu0 0
      %803 = vmatpush1.bf16.msra.mxu0 0
      %804 = vmatprep.subr.bf16.mxu0 0
      %805 = vmatpush1.bf16.msra.mxu0 0
      %806 = vmatprep.subr.bf16.mxu0 0
      %807 = vmatpush1.bf16.msra.mxu0 0
      %808 = vmatprep.subr.bf16.mxu0 0
      %809 = vmatpush1.bf16.msra.mxu0 0
      %810 = vmatprep.subr.bf16.mxu0 0
      %811 = vmatpush1.bf16.msra.mxu0 0
      %812 = vmatprep.subr.bf16.mxu0 0
      %813 = vmatpush1.bf16.msra.mxu0 0
      %814 = vmatprep.subr.bf16.mxu0 0
      %815 = vmatpush1.bf16.msra.mxu0 0
      %816 = vmatprep.subr.bf16.mxu0 0
      %817 = vmatpush1.bf16.msra.mxu0 0
      %818 = vmatprep.subr.bf16.mxu0 0
      %819 = vmatpush1.bf16.msra.mxu0 0
      %820 = vmatprep.subr.bf16.mxu0 0
      %821 = vmatpush1.bf16.msra.mxu0 0
      %822 = vmatprep.subr.bf16.mxu0 0
      %823 = vmatpush1.bf16.msra.mxu0 0
      %824 = vmatprep.subr.bf16.mxu0 0
      %825 = vmatpush1.bf16.msra.mxu0 0
      %826 = vmatprep.mubr.bf16.mxu0 0
      %827 = vmatmul.mubr.bf16.gmra.mrb[0].mxu0 %v783
      %v828 = vpop.f32.mrb[0].mxu0
      %v829 = vadd.f32 0.0, %v828
      %v830 = vpop.f32.mrb[0].mxu0
      %v831 = vadd.f32 0.0, %v830
      %v832 = vpop.f32.mrb[0].mxu0
      %v833 = vadd.f32 0.0, %v832
      %v834 = vpop.f32.mrb[0].mxu0
      %v835 = vadd.f32 0.0, %v834
      %836 = vmatprep.mubr.bf16.mxu0 0
      %837 = vmatmul.mubr.bf16.gmra.mrb[0].mxu0 %v786
      %v838 = vpop.f32.mrb[0].mxu0
      %v839 = vadd.f32 0.0, %v838
      %v840 = vpop.f32.mrb[0].mxu0
      %v841 = vadd.f32 0.0, %v840
      %v842 = vpop.f32.mrb[0].mxu0
      %v843 = vadd.f32 0.0, %v842
      %v844 = vpop.f32.mrb[0].mxu0
      %v845 = vadd.f32 0.0, %v844
      %846 = vdwg.mxu0
      %v847 = vadd.f32 %v731, %v829
      %v848 = vadd.f32 %v732, %v831
      %v849 = vadd.f32 %v733, %v833
      %v850 = vadd.f32 %v734, %v835
      %v851 = vadd.f32 %v735, %v839
      %v852 = vadd.f32 %v736, %v841
      %v853 = vadd.f32 %v737, %v843
      %v854 = vadd.f32 %v738, %v845
      %s855 = scalar_lea.vmem %s3, 64
      %v856 = vld [vmem:[%s855] sm:$0xf]
      %v857 = vld [vmem:[%s855 + $0x4] sm:$0xf]
      %v858 = vld [vmem:[%s855 + $0x8] sm:$0xf]
      %v859 = vld [vmem:[%s855 + $0xc] sm:$0xf]
      %v864 = vunpack.c.l.b16 %v856
      %v865 = vunpack.c.l.b16 %v857
      %v866 = vunpack.c.l.b16 %v858
      %v867 = vunpack.c.l.b16 %v859
      %v868 = vpack.c.b16 %v865, %v864
      %v869 = vpack.c.b16 %v867, %v866
      %v871 = vsel %vm337, %v868, 0
      %v874 = vsel %vm337, %v869, 0
      %v877 = vand.u32 %v392, %v344
      %v880 = vand.u32 %v393, %v344
      %882 = vmatprep.subr.bf16.mxu0 %v880
      %883 = vmatpush1.bf16.msra.mxu0 %v877
      %884 = vmatprep.subr.bf16.mxu0 0
      %885 = vmatpush1.bf16.msra.mxu0 0
      %886 = vmatprep.subr.bf16.mxu0 0
      %887 = vmatpush1.bf16.msra.mxu0 0
      %888 = vmatprep.subr.bf16.mxu0 0
      %889 = vmatpush1.bf16.msra.mxu0 0
      %890 = vmatprep.subr.bf16.mxu0 0
      %891 = vmatpush1.bf16.msra.mxu0 0
      %892 = vmatprep.subr.bf16.mxu0 0
      %893 = vmatpush1.bf16.msra.mxu0 0
      %894 = vmatprep.subr.bf16.mxu0 0
      %895 = vmatpush1.bf16.msra.mxu0 0
      %896 = vmatprep.subr.bf16.mxu0 0
      %897 = vmatpush1.bf16.msra.mxu0 0
      %898 = vmatprep.subr.bf16.mxu0 0
      %899 = vmatpush1.bf16.msra.mxu0 0
      %900 = vmatprep.subr.bf16.mxu0 0
      %901 = vmatpush1.bf16.msra.mxu0 0
      %902 = vmatprep.subr.bf16.mxu0 0
      %903 = vmatpush1.bf16.msra.mxu0 0
      %904 = vmatprep.subr.bf16.mxu0 0
      %905 = vmatpush1.bf16.msra.mxu0 0
      %906 = vmatprep.subr.bf16.mxu0 0
      %907 = vmatpush1.bf16.msra.mxu0 0
      %908 = vmatprep.subr.bf16.mxu0 0
      %909 = vmatpush1.bf16.msra.mxu0 0
      %910 = vmatprep.subr.bf16.mxu0 0
      %911 = vmatpush1.bf16.msra.mxu0 0
      %912 = vmatprep.subr.bf16.mxu0 0
      %913 = vmatpush1.bf16.msra.mxu0 0
      %914 = vmatprep.mubr.bf16.mxu0 0
      %915 = vmatmul.mubr.bf16.gmra.mrb[0].mxu0 %v871
      %v916 = vpop.f32.mrb[0].mxu0
      %v917 = vadd.f32 0.0, %v916
      %v918 = vpop.f32.mrb[0].mxu0
      %v919 = vadd.f32 0.0, %v918
      %v920 = vpop.f32.mrb[0].mxu0
      %v921 = vadd.f32 0.0, %v920
      %v922 = vpop.f32.mrb[0].mxu0
      %v923 = vadd.f32 0.0, %v922
      %924 = vmatprep.mubr.bf16.mxu0 0
      %925 = vmatmul.mubr.bf16.gmra.mrb[0].mxu0 %v874
      %v926 = vpop.f32.mrb[0].mxu0
      %v927 = vadd.f32 0.0, %v926
      %v928 = vpop.f32.mrb[0].mxu0
      %v929 = vadd.f32 0.0, %v928
      %v930 = vpop.f32.mrb[0].mxu0
      %v931 = vadd.f32 0.0, %v930
      %v932 = vpop.f32.mrb[0].mxu0
      %v933 = vadd.f32 0.0, %v932
      %934 = vdwg.mxu0
      %v935 = vadd.f32 %v847, %v917
      %v936 = vadd.f32 %v848, %v919
      %v937 = vadd.f32 %v849, %v921
      %v938 = vadd.f32 %v850, %v923
      %v939 = vadd.f32 %v851, %v927
      %v940 = vadd.f32 %v852, %v929
      %v941 = vadd.f32 %v853, %v931
      %v942 = vadd.f32 %v854, %v933
      %943 = vrot.lane.b32.xlu0 %v392, 127
      %v944 = vpop.permute.xlu0 %943
      %945 = vrot.lane.b32.xlu0 %v393, 127
      %v946 = vpop.permute.xlu0 %945
      %vm947 = vcmask 1039360
      %v948 = vsel %vm947, %v944, %v946
      %vm950 = vcmask 1039360
      %v953 = vsel %vm950, %v946, %v944
      %v955 = vld [vmem:[%s6] sm:$0x44]
      %v957 = vunpack.c.l.b16 %v955
      %v958 = vunpack.c.h.b16 %v955
      %v959 = vpack.c.b16 %v957, %v957
      %v960 = vpack.c.b16 %v958, %v958
      %v962 = vshrl.u32 %v959, 16
      %v963 = vpack.i.b16 %v962, %v962
      %v965 = vlaneseq
      %v966 = vshrl.u32 %v965, 7
      %v967 = vsub.s32 2, %v966
      %v968 = vrot.slane %v963, %v967
      %v970 = vshrl.u32 %v960, 16
      %v971 = vpack.i.b16 %v970, %v970
      %v973 = vlaneseq
      %v974 = vshrl.u32 %v973, 7
      %v975 = vsub.s32 2, %v974
      %v976 = vrot.slane %v971, %v975
      %v977 = vmul.bf16 %v948, %v968
      %v978 = vmul.bf16 %v953, %v976
      %s979 = scalar_lea.vmem %s3, 80
      %v980 = vld [vmem:[%s979] sm:$0xf]
      %v981 = vld [vmem:[%s979 + $0x4] sm:$0xf]
      %v982 = vld [vmem:[%s979 + $0x8] sm:$0xf]
      %v983 = vld [vmem:[%s979 + $0xc] sm:$0xf]
      %v988 = vunpack.c.l.b16 %v980
      %v989 = vunpack.c.l.b16 %v981
      %v990 = vunpack.c.l.b16 %v982
      %v991 = vunpack.c.l.b16 %v983
      %v992 = vpack.c.b16 %v989, %v988
      %v993 = vpack.c.b16 %v991, %v990
      %v995 = vsel %vm337, %v992, 0
      %v998 = vsel %vm337, %v993, 0
      %v1001 = vand.u32 %v977, %v344
      %v1004 = vand.u32 %v978, %v344
      %1006 = vmatprep.subr.bf16.mxu0 %v1004
      %1007 = vmatpush1.bf16.msra.mxu0 %v1001
      %1008 = vmatprep.subr.bf16.mxu0 0
      %1009 = vmatpush1.bf16.msra.mxu0 0
      %1010 = vmatprep.subr.bf16.mxu0 0
      %1011 = vmatpush1.bf16.msra.mxu0 0
      %1012 = vmatprep.subr.bf16.mxu0 0
      %1013 = vmatpush1.bf16.msra.mxu0 0
      %1014 = vmatprep.subr.bf16.mxu0 0
      %1015 = vmatpush1.bf16.msra.mxu0 0
      %1016 = vmatprep.subr.bf16.mxu0 0
      %1017 = vmatpush1.bf16.msra.mxu0 0
      %1018 = vmatprep.subr.bf16.mxu0 0
      %1019 = vmatpush1.bf16.msra.mxu0 0
      %1020 = vmatprep.subr.bf16.mxu0 0
      %1021 = vmatpush1.bf16.msra.mxu0 0
      %1022 = vmatprep.subr.bf16.mxu0 0
      %1023 = vmatpush1.bf16.msra.mxu0 0
      %1024 = vmatprep.subr.bf16.mxu0 0
      %1025 = vmatpush1.bf16.msra.mxu0 0
      %1026 = vmatprep.subr.bf16.mxu0 0
      %1027 = vmatpush1.bf16.msra.mxu0 0
      %1028 = vmatprep.subr.bf16.mxu0 0
      %1029 = vmatpush1.bf16.msra.mxu0 0
      %1030 = vmatprep.subr.bf16.mxu0 0
      %1031 = vmatpush1.bf16.msra.mxu0 0
      %1032 = vmatprep.subr.bf16.mxu0 0
      %1033 = vmatpush1.bf16.msra.mxu0 0
      %1034 = vmatprep.subr.bf16.mxu0 0
      %1035 = vmatpush1.bf16.msra.mxu0 0
      %1036 = vmatprep.subr.bf16.mxu0 0
      %1037 = vmatpush1.bf16.msra.mxu0 0
      %1038 = vmatprep.mubr.bf16.mxu0 0
      %1039 = vmatmul.mubr.bf16.gmra.mrb[0].mxu0 %v995
      %v1040 = vpop.f32.mrb[0].mxu0
      %v1041 = vadd.f32 0.0, %v1040
      %v1042 = vpop.f32.mrb[0].mxu0
      %v1043 = vadd.f32 0.0, %v1042
      %v1044 = vpop.f32.mrb[0].mxu0
      %v1045 = vadd.f32 0.0, %v1044
      %v1046 = vpop.f32.mrb[0].mxu0
      %v1047 = vadd.f32 0.0, %v1046
      %1048 = vmatprep.mubr.bf16.mxu0 0
      %1049 = vmatmul.mubr.bf16.gmra.mrb[0].mxu0 %v998
      %v1050 = vpop.f32.mrb[0].mxu0
      %v1051 = vadd.f32 0.0, %v1050
      %v1052 = vpop.f32.mrb[0].mxu0
      %v1053 = vadd.f32 0.0, %v1052
      %v1054 = vpop.f32.mrb[0].mxu0
      %v1055 = vadd.f32 0.0, %v1054
      %v1056 = vpop.f32.mrb[0].mxu0
      %v1057 = vadd.f32 0.0, %v1056
      %1058 = vdwg.mxu0
      %v1059 = vadd.f32 %v935, %v1041
      %v1060 = vadd.f32 %v936, %v1043
      %v1061 = vadd.f32 %v937, %v1045
      %v1062 = vadd.f32 %v938, %v1047
      %v1063 = vadd.f32 %v939, %v1051
      %v1064 = vadd.f32 %v940, %v1053
      %v1065 = vadd.f32 %v941, %v1055
      %v1066 = vadd.f32 %v942, %v1057
      %1067 = vrot.lane.b32.xlu0 %v392, 113
      %v1068 = vpop.permute.xlu0 %1067
      %1069 = vrot.lane.b32.xlu0 %v393, 113
      %v1070 = vpop.permute.xlu0 %1069
      %vm1071 = vcmask 924672
      %v1072 = vsel %vm1071, %v1068, %v1070
      %vm1074 = vcmask 924672
      %v1077 = vsel %vm1074, %v1070, %v1068
      %v1079 = vld [vmem:[%s6] sm:$0x88]
      %v1081 = vunpack.c.l.b16 %v1079
      %v1082 = vunpack.c.h.b16 %v1079
      %v1083 = vpack.c.b16 %v1081, %v1081
      %v1084 = vpack.c.b16 %v1082, %v1082
      %v1086 = vpack.i.b16 %v1083, %v1083
      %v1088 = vlaneseq
      %v1089 = vshrl.u32 %v1088, 7
      %v1090 = vsub.s32 3, %v1089
      %v1091 = vrot.slane %v1086, %v1090
      %v1093 = vpack.i.b16 %v1084, %v1084
      %v1095 = vlaneseq
      %v1096 = vshrl.u32 %v1095, 7
      %v1097 = vsub.s32 3, %v1096
      %v1098 = vrot.slane %v1093, %v1097
      %v1099 = vmul.bf16 %v1072, %v1091
      %v1100 = vmul.bf16 %v1077, %v1098
      %s1101 = scalar_lea.vmem %s3, 96
      %v1102 = vld [vmem:[%s1101] sm:$0xf]
      %v1103 = vld [vmem:[%s1101 + $0x4] sm:$0xf]
      %v1104 = vld [vmem:[%s1101 + $0x8] sm:$0xf]
      %v1105 = vld [vmem:[%s1101 + $0xc] sm:$0xf]
      %v1110 = vunpack.c.l.b16 %v1102
      %v1111 = vunpack.c.l.b16 %v1103
      %v1112 = vunpack.c.l.b16 %v1104
      %v1113 = vunpack.c.l.b16 %v1105
      %v1114 = vpack.c.b16 %v1111, %v1110
      %v1115 = vpack.c.b16 %v1113, %v1112
      %v1117 = vsel %vm337, %v1114, 0
      %v1120 = vsel %vm337, %v1115, 0
      %v1123 = vand.u32 %v1099, %v344
      %v1126 = vand.u32 %v1100, %v344
      %1128 = vmatprep.subr.bf16.mxu0 %v1126
      %1129 = vmatpush1.bf16.msra.mxu0 %v1123
      %1130 = vmatprep.subr.bf16.mxu0 0
      %1131 = vmatpush1.bf16.msra.mxu0 0
      %1132 = vmatprep.subr.bf16.mxu0 0
      %1133 = vmatpush1.bf16.msra.mxu0 0
      %1134 = vmatprep.subr.bf16.mxu0 0
      %1135 = vmatpush1.bf16.msra.mxu0 0
      %1136 = vmatprep.subr.bf16.mxu0 0
      %1137 = vmatpush1.bf16.msra.mxu0 0
      %1138 = vmatprep.subr.bf16.mxu0 0
      %1139 = vmatpush1.bf16.msra.mxu0 0
      %1140 = vmatprep.subr.bf16.mxu0 0
      %1141 = vmatpush1.bf16.msra.mxu0 0
      %1142 = vmatprep.subr.bf16.mxu0 0
      %1143 = vmatpush1.bf16.msra.mxu0 0
      %1144 = vmatprep.subr.bf16.mxu0 0
      %1145 = vmatpush1.bf16.msra.mxu0 0
      %1146 = vmatprep.subr.bf16.mxu0 0
      %1147 = vmatpush1.bf16.msra.mxu0 0
      %1148 = vmatprep.subr.bf16.mxu0 0
      %1149 = vmatpush1.bf16.msra.mxu0 0
      %1150 = vmatprep.subr.bf16.mxu0 0
      %1151 = vmatpush1.bf16.msra.mxu0 0
      %1152 = vmatprep.subr.bf16.mxu0 0
      %1153 = vmatpush1.bf16.msra.mxu0 0
      %1154 = vmatprep.subr.bf16.mxu0 0
      %1155 = vmatpush1.bf16.msra.mxu0 0
      %1156 = vmatprep.subr.bf16.mxu0 0
      %1157 = vmatpush1.bf16.msra.mxu0 0
      %1158 = vmatprep.subr.bf16.mxu0 0
      %1159 = vmatpush1.bf16.msra.mxu0 0
      %1160 = vmatprep.mubr.bf16.mxu0 0
      %1161 = vmatmul.mubr.bf16.gmra.mrb[0].mxu0 %v1117
      %v1162 = vpop.f32.mrb[0].mxu0
      %v1163 = vadd.f32 0.0, %v1162
      %v1164 = vpop.f32.mrb[0].mxu0
      %v1165 = vadd.f32 0.0, %v1164
      %v1166 = vpop.f32.mrb[0].mxu0
      %v1167 = vadd.f32 0.0, %v1166
      %v1168 = vpop.f32.mrb[0].mxu0
      %v1169 = vadd.f32 0.0, %v1168
      %1170 = vmatprep.mubr.bf16.mxu0 0
      %1171 = vmatmul.mubr.bf16.gmra.mrb[0].mxu0 %v1120
      %v1172 = vpop.f32.mrb[0].mxu0
      %v1173 = vadd.f32 0.0, %v1172
      %v1174 = vpop.f32.mrb[0].mxu0
      %v1175 = vadd.f32 0.0, %v1174
      %v1176 = vpop.f32.mrb[0].mxu0
      %v1177 = vadd.f32 0.0, %v1176
      %v1178 = vpop.f32.mrb[0].mxu0
      %v1179 = vadd.f32 0.0, %v1178
      %1180 = vdwg.mxu0
      %v1181 = vadd.f32 %v1059, %v1163
      %v1182 = vadd.f32 %v1060, %v1165
      %v1183 = vadd.f32 %v1061, %v1167
      %v1184 = vadd.f32 %v1062, %v1169
      %v1185 = vadd.f32 %v1063, %v1173
      %v1186 = vadd.f32 %v1064, %v1175
      %v1187 = vadd.f32 %v1065, %v1177
      %v1188 = vadd.f32 %v1066, %v1179
      %1189 = vrot.lane.b32.xlu0 %v392, 112
      %v1190 = vpop.permute.xlu0 %1189
      %1191 = vrot.lane.b32.xlu0 %v393, 112
      %v1192 = vpop.permute.xlu0 %1191
      %vm1193 = vcmask 916480
      %v1194 = vsel %vm1193, %v1190, %v1192
      %vm1196 = vcmask 916480
      %v1199 = vsel %vm1196, %v1192, %v1190
      %v1201 = vshrl.u32 %v1083, 16
      %v1202 = vpack.i.b16 %v1201, %v1201
      %v1204 = vlaneseq
      %v1205 = vshrl.u32 %v1204, 7
      %v1206 = vsub.s32 3, %v1205
      %v1207 = vrot.slane %v1202, %v1206
      %v1208 = vshrl.u32 %v1084, 16
      %v1209 = vpack.i.b16 %v1208, %v1208
      %v1211 = vlaneseq
      %v1212 = vshrl.u32 %v1211, 7
      %v1213 = vsub.s32 3, %v1212
      %v1214 = vrot.slane %v1209, %v1213
      %v1215 = vmul.bf16 %v1194, %v1207
      %v1216 = vmul.bf16 %v1199, %v1214
      %s1217 = scalar_lea.vmem %s3, 112
      %v1218 = vld [vmem:[%s1217] sm:$0xf]
      %v1219 = vld [vmem:[%s1217 + $0x4] sm:$0xf]
      %v1220 = vld [vmem:[%s1217 + $0x8] sm:$0xf]
      %v1221 = vld [vmem:[%s1217 + $0xc] sm:$0xf]
      %v1226 = vunpack.c.l.b16 %v1218
      %v1227 = vunpack.c.l.b16 %v1219
      %v1228 = vunpack.c.l.b16 %v1220
      %v1229 = vunpack.c.l.b16 %v1221
      %v1230 = vpack.c.b16 %v1227, %v1226
      %v1231 = vpack.c.b16 %v1229, %v1228
      %v1233 = vsel %vm337, %v1230, 0
      %v1236 = vsel %vm337, %v1231, 0
      %v1239 = vand.u32 %v1215, %v344
      %v1242 = vand.u32 %v1216, %v344
      %1244 = vmatprep.subr.bf16.mxu0 %v1242
      %1245 = vmatpush1.bf16.msra.mxu0 %v1239
      %1246 = vmatprep.subr.bf16.mxu0 0
      %1247 = vmatpush1.bf16.msra.mxu0 0
      %1248 = vmatprep.subr.bf16.mxu0 0
      %1249 = vmatpush1.bf16.msra.mxu0 0
      %1250 = vmatprep.subr.bf16.mxu0 0
      %1251 = vmatpush1.bf16.msra.mxu0 0
      %1252 = vmatprep.subr.bf16.mxu0 0
      %1253 = vmatpush1.bf16.msra.mxu0 0
      %1254 = vmatprep.subr.bf16.mxu0 0
      %1255 = vmatpush1.bf16.msra.mxu0 0
      %1256 = vmatprep.subr.bf16.mxu0 0
      %1257 = vmatpush1.bf16.msra.mxu0 0
      %1258 = vmatprep.subr.bf16.mxu0 0
      %1259 = vmatpush1.bf16.msra.mxu0 0
      %1260 = vmatprep.subr.bf16.mxu0 0
      %1261 = vmatpush1.bf16.msra.mxu0 0
      %1262 = vmatprep.subr.bf16.mxu0 0
      %1263 = vmatpush1.bf16.msra.mxu0 0
      %1264 = vmatprep.subr.bf16.mxu0 0
      %1265 = vmatpush1.bf16.msra.mxu0 0
      %1266 = vmatprep.subr.bf16.mxu0 0
      %1267 = vmatpush1.bf16.msra.mxu0 0
      %1268 = vmatprep.subr.bf16.mxu0 0
      %1269 = vmatpush1.bf16.msra.mxu0 0
      %1270 = vmatprep.subr.bf16.mxu0 0
      %1271 = vmatpush1.bf16.msra.mxu0 0
      %1272 = vmatprep.subr.bf16.mxu0 0
      %1273 = vmatpush1.bf16.msra.mxu0 0
      %1274 = vmatprep.subr.bf16.mxu0 0
      %1275 = vmatpush1.bf16.msra.mxu0 0
      %1276 = vmatprep.mubr.bf16.mxu0 0
      %1277 = vmatmul.mubr.bf16.gmra.mrb[0].mxu0 %v1233
      %v1278 = vpop.f32.mrb[0].mxu0
      %v1279 = vadd.f32 0.0, %v1278
      %v1280 = vpop.f32.mrb[0].mxu0
      %v1281 = vadd.f32 0.0, %v1280
      %v1282 = vpop.f32.mrb[0].mxu0
      %v1283 = vadd.f32 0.0, %v1282
      %v1284 = vpop.f32.mrb[0].mxu0
      %v1285 = vadd.f32 0.0, %v1284
      %1286 = vmatprep.mubr.bf16.mxu0 0
      %1287 = vmatmul.mubr.bf16.gmra.mrb[0].mxu0 %v1236
      %v1288 = vpop.f32.mrb[0].mxu0
      %v1289 = vadd.f32 0.0, %v1288
      %v1290 = vpop.f32.mrb[0].mxu0
      %v1291 = vadd.f32 0.0, %v1290
      %v1292 = vpop.f32.mrb[0].mxu0
      %v1293 = vadd.f32 0.0, %v1292
      %v1294 = vpop.f32.mrb[0].mxu0
      %v1295 = vadd.f32 0.0, %v1294
      %1296 = vdwg.mxu0
      %v1297 = vadd.f32 %v1181, %v1279
      %v1298 = vadd.f32 %v1182, %v1281
      %v1299 = vadd.f32 %v1183, %v1283
      %v1300 = vadd.f32 %v1184, %v1285
      %v1301 = vadd.f32 %v1185, %v1289
      %v1302 = vadd.f32 %v1186, %v1291
      %v1303 = vadd.f32 %v1187, %v1293
      %v1304 = vadd.f32 %v1188, %v1295
      %1305 = vrot.lane.b32.xlu0 %v392, 111
      %v1306 = vpop.permute.xlu0 %1305
      %1307 = vrot.lane.b32.xlu0 %v393, 111
      %v1308 = vpop.permute.xlu0 %1307
      %vm1309 = vcmask 908288
      %v1310 = vsel %vm1309, %v1306, %v1308
      %vm1312 = vcmask 908288
      %v1315 = vsel %vm1312, %v1308, %v1306
      %v1317 = vld [vmem:[%s6 + $0x8] sm:$0x11]
      %v1319 = vunpack.c.l.b16 %v1317
      %v1320 = vunpack.c.h.b16 %v1317
      %v1321 = vpack.c.b16 %v1319, %v1319
      %v1322 = vpack.c.b16 %v1320, %v1320
      %v1324 = vpack.i.b16 %v1321, %v1321
      %v1326 = vlaneseq
      %v1327 = vshrl.u32 %v1326, 7
      %v1328 = vsub.s32 0, %v1327
      %v1329 = vrot.slane %v1324, %v1328
      %v1331 = vpack.i.b16 %v1322, %v1322
      %v1333 = vlaneseq
      %v1334 = vshrl.u32 %v1333, 7
      %v1335 = vsub.s32 0, %v1334
      %v1336 = vrot.slane %v1331, %v1335
      %v1337 = vmul.bf16 %v1310, %v1329
      %v1338 = vmul.bf16 %v1315, %v1336
      %s1339 = scalar_lea.vmem %s3, 128
      %v1340 = vld [vmem:[%s1339] sm:$0xf]
      %v1341 = vld [vmem:[%s1339 + $0x4] sm:$0xf]
      %v1342 = vld [vmem:[%s1339 + $0x8] sm:$0xf]
      %v1343 = vld [vmem:[%s1339 + $0xc] sm:$0xf]
      %v1348 = vunpack.c.l.b16 %v1340
      %v1349 = vunpack.c.l.b16 %v1341
      %v1350 = vunpack.c.l.b16 %v1342
      %v1351 = vunpack.c.l.b16 %v1343
      %v1352 = vpack.c.b16 %v1349, %v1348
      %v1353 = vpack.c.b16 %v1351, %v1350
      %v1355 = vsel %vm337, %v1352, 0
      %v1358 = vsel %vm337, %v1353, 0
      %v1361 = vand.u32 %v1337, %v344
      %v1364 = vand.u32 %v1338, %v344
      %1366 = vmatprep.subr.bf16.mxu0 %v1364
      %1367 = vmatpush1.bf16.msra.mxu0 %v1361
      %1368 = vmatprep.subr.bf16.mxu0 0
      %1369 = vmatpush1.bf16.msra.mxu0 0
      %1370 = vmatprep.subr.bf16.mxu0 0
      %1371 = vmatpush1.bf16.msra.mxu0 0
      %1372 = vmatprep.subr.bf16.mxu0 0
      %1373 = vmatpush1.bf16.msra.mxu0 0
      %1374 = vmatprep.subr.bf16.mxu0 0
      %1375 = vmatpush1.bf16.msra.mxu0 0
      %1376 = vmatprep.subr.bf16.mxu0 0
      %1377 = vmatpush1.bf16.msra.mxu0 0
      %1378 = vmatprep.subr.bf16.mxu0 0
      %1379 = vmatpush1.bf16.msra.mxu0 0
      %1380 = vmatprep.subr.bf16.mxu0 0
      %1381 = vmatpush1.bf16.msra.mxu0 0
      %1382 = vmatprep.subr.bf16.mxu0 0
      %1383 = vmatpush1.bf16.msra.mxu0 0
      %1384 = vmatprep.subr.bf16.mxu0 0
      %1385 = vmatpush1.bf16.msra.mxu0 0
      %1386 = vmatprep.subr.bf16.mxu0 0
      %1387 = vmatpush1.bf16.msra.mxu0 0
      %1388 = vmatprep.subr.bf16.mxu0 0
      %1389 = vmatpush1.bf16.msra.mxu0 0
      %1390 = vmatprep.subr.bf16.mxu0 0
      %1391 = vmatpush1.bf16.msra.mxu0 0
      %1392 = vmatprep.subr.bf16.mxu0 0
      %1393 = vmatpush1.bf16.msra.mxu0 0
      %1394 = vmatprep.subr.bf16.mxu0 0
      %1395 = vmatpush1.bf16.msra.mxu0 0
      %1396 = vmatprep.subr.bf16.mxu0 0
      %1397 = vmatpush1.bf16.msra.mxu0 0
      %1398 = vmatprep.mubr.bf16.mxu0 0
      %1399 = vmatmul.mubr.bf16.gmra.mrb[0].mxu0 %v1355
      %v1400 = vpop.f32.mrb[0].mxu0
      %v1401 = vadd.f32 0.0, %v1400
      %v1402 = vpop.f32.mrb[0].mxu0
      %v1403 = vadd.f32 0.0, %v1402
      %v1404 = vpop.f32.mrb[0].mxu0
      %v1405 = vadd.f32 0.0, %v1404
      %v1406 = vpop.f32.mrb[0].mxu0
      %v1407 = vadd.f32 0.0, %v1406
      %1408 = vmatprep.mubr.bf16.mxu0 0
      %1409 = vmatmul.mubr.bf16.gmra.mrb[0].mxu0 %v1358
      %v1410 = vpop.f32.mrb[0].mxu0
      %v1411 = vadd.f32 0.0, %v1410
      %v1412 = vpop.f32.mrb[0].mxu0
      %v1413 = vadd.f32 0.0, %v1412
      %v1414 = vpop.f32.mrb[0].mxu0
      %v1415 = vadd.f32 0.0, %v1414
      %v1416 = vpop.f32.mrb[0].mxu0
      %v1417 = vadd.f32 0.0, %v1416
      %1418 = vdwg.mxu0
      %v1419 = vadd.f32 %v1297, %v1401
      %v1420 = vadd.f32 %v1298, %v1403
      %v1421 = vadd.f32 %v1299, %v1405
      %v1422 = vadd.f32 %v1300, %v1407
      %v1423 = vadd.f32 %v1301, %v1411
      %v1424 = vadd.f32 %v1302, %v1413
      %v1425 = vadd.f32 %v1303, %v1415
      %v1426 = vadd.f32 %v1304, %v1417
      %v1427 = vld [vmem:[%s4] sm:$0xff]
      %v1428 = vld [vmem:[%s4 + $0x8] sm:$0xff]
      %v1429 = vld [vmem:[%s4 + $0x10] sm:$0xff]
      %v1430 = vld [vmem:[%s4 + $0x18] sm:$0xff]
      %1432 = vset.pattern.permute.xlu0 0
      %1433 = vperm.xlu0 %1432, %v1427
      %v1434 = vpop.permute.xlu0 %1433
      %1437 = vset.pattern.permute.xlu0 0
      %1438 = vperm.xlu0 %1437, %v1428
      %v1439 = vpop.permute.xlu0 %1438
      %1442 = vset.pattern.permute.xlu0 0
      %1443 = vperm.xlu0 %1442, %v1429
      %v1444 = vpop.permute.xlu0 %1443
      %1447 = vset.pattern.permute.xlu0 0
      %1448 = vperm.xlu0 %1447, %v1430
      %v1449 = vpop.permute.xlu0 %1448
      %v1451 = vadd.f32 %v1419, %v1434
      %v1452 = vadd.f32 %v1420, %v1434
      %v1453 = vadd.f32 %v1421, %v1439
      %v1454 = vadd.f32 %v1422, %v1439
      %v1455 = vadd.f32 %v1423, %v1444
      %v1456 = vadd.f32 %v1424, %v1444
      %v1457 = vadd.f32 %v1425, %v1449
      %v1458 = vadd.f32 %v1426, %v1449
      %v1459 = vmax.f32 %v1451, 0.0
      %v1460 = vmax.f32 %v1452, 0.0
      %v1461 = vmax.f32 %v1453, 0.0
      %v1462 = vmax.f32 %v1454, 0.0
      %v1463 = vmax.f32 %v1455, 0.0
      %v1464 = vmax.f32 %v1456, 0.0
      %v1465 = vmax.f32 %v1457, 0.0
      %v1466 = vmax.f32 %v1458, 0.0
      %v1467 = vpack.c.bf16 %v1461, %v1459
      %v1468 = vpack.c.bf16 %v1462, %v1460
      %v1469 = vpack.c.bf16 %v1465, %v1463
      %v1470 = vpack.c.bf16 %v1466, %v1464
      %v1475 = vunpack.c.l.b16 %v1467
      %v1476 = vunpack.c.l.b16 %v1468
      %v1477 = vunpack.c.h.b16 %v1467
      %v1478 = vunpack.c.h.b16 %v1468
      %v1479 = vunpack.c.l.b16 %v1469
      %v1480 = vunpack.c.l.b16 %v1470
      %v1481 = vunpack.c.h.b16 %v1469
      %v1482 = vunpack.c.h.b16 %v1470
      %v1483 = vpack.c.b16 %v1476, %v1475
      %v1484 = vpack.c.b16 %v1478, %v1477
      %v1485 = vpack.c.b16 %v1480, %v1479
      %v1486 = vpack.c.b16 %v1482, %v1481
      %1491 = vst [vmem:[%s313] sm:$0xff] %v1483
      %1492 = vst [vmem:[%s313 + $0x8] sm:$0xff] %v1484
      %1493 = vst [vmem:[%s313 + $0x10] sm:$0xff] %v1485
      %1494 = vst [vmem:[%s313 + $0x18] sm:$0xff] %v1486
      %v1495 = vunpack.c.l.bf16 %v1467
      %v1496 = vunpack.c.l.bf16 %v1468
      %v1497 = vunpack.c.h.bf16 %v1467
      %v1498 = vunpack.c.h.bf16 %v1468
      %v1499 = vunpack.c.l.bf16 %v1469
      %v1500 = vunpack.c.l.bf16 %v1470
      %v1501 = vunpack.c.h.bf16 %v1469
      %v1502 = vunpack.c.h.bf16 %v1470
      %v1503 = vadd.f32 %v1495, %v1496
      %1504 = vadd.xlane.f32.xlu0 %v1503
      %v1505 = vpop.xlane.xlu0 %1504
      %v1506 = vadd.f32 %v1497, %v1498
      %1507 = vadd.xlane.f32.xlu0 %v1506
      %v1508 = vpop.xlane.xlu0 %1507
      %v1509 = vadd.f32 %v1499, %v1500
      %1510 = vadd.xlane.f32.xlu0 %v1509
      %v1511 = vpop.xlane.xlu0 %1510
      %v1512 = vadd.f32 %v1501, %v1502
      %1513 = vadd.xlane.f32.xlu0 %v1512
      %v1514 = vpop.xlane.xlu0 %1513
      %1515 = vst.msk [vmem:[%s318] sm:$0xff] %vm746, %v1505
      %1516 = vst.msk [vmem:[%s318 + $0x8] sm:$0xff] %vm746, %v1508
      %1517 = vst.msk [vmem:[%s318 + $0x10] sm:$0xff] %vm746, %v1511
      %1518 = vst.msk [vmem:[%s318 + $0x18] sm:$0xff] %vm746, %v1514
      %v1519 = vmul.f32 %v1495, %v1495
      %v1520 = vmul.f32 %v1496, %v1496
      %v1521 = vmul.f32 %v1497, %v1497
      %v1522 = vmul.f32 %v1498, %v1498
      %v1523 = vmul.f32 %v1499, %v1499
      %v1524 = vmul.f32 %v1500, %v1500
      %v1525 = vmul.f32 %v1501, %v1501
      %v1526 = vmul.f32 %v1502, %v1502
      %v1527 = vadd.f32 %v1519, %v1520
      %1528 = vadd.xlane.f32.xlu0 %v1527
      %v1529 = vpop.xlane.xlu0 %1528
      %v1530 = vadd.f32 %v1521, %v1522
      %1531 = vadd.xlane.f32.xlu0 %v1530
      %v1532 = vpop.xlane.xlu0 %1531
      %v1533 = vadd.f32 %v1523, %v1524
      %1534 = vadd.xlane.f32.xlu0 %v1533
      %v1535 = vpop.xlane.xlu0 %1534
      %v1536 = vadd.f32 %v1525, %v1526
      %1537 = vadd.xlane.f32.xlu0 %v1536
      %v1538 = vpop.xlane.xlu0 %1537
      %vm1539 = vcmask 15368
      %1540 = vst.msk [vmem:[%s318] sm:$0xff] %vm1539, %v1529
      %1541 = vst.msk [vmem:[%s318 + $0x8] sm:$0xff] %vm1539, %v1532
      %1542 = vst.msk [vmem:[%s318 + $0x10] sm:$0xff] %vm1539, %v1535
      %1543 = vst.msk [vmem:[%s318 + $0x18] sm:$0xff] %vm1539, %v1538
      %p1544 = scmp.lt.s32.totalorder %s20, 1
      %s1545 = scalar_select %p1544, %s20, 1
      %s1546 = smul.addr %s1545, 8
      %s1547 = smul.addr %s1546, 4
      %s1548 = scalar_lea.vmem %s7, %s1547
      %p1549 = scmp.lt.s32.totalorder %s20, 1
      %s1550 = scalar_select %p1549, %s20, 1
      %s1551 = smul.addr %s1550, 4
      %s1552 = smul.addr %s1551, 8
      %s1553 = scalar_lea.vmem %s8, %s1552
      // Predicated region
      $region49: #{unet_forward.3} parent=47 // pred_check
        %p1554 = pneg %p190
      $region50: #{unet_forward.3} parent=47 // pred_check_branch
        %1556 = sbr.rel (%p1554) target = $region52
      $region51: #{unet_forward.3} parent=47 // pred_region
        _
      $region52: #{unet_forward.3} parent=47 // pred_fallthru
        _
      // Predicated region
      $region53: #{unet_forward.3} parent=47 // pred_check
        %p1557 = pneg %p216
      $region54: #{unet_forward.3} parent=47 // pred_check_branch
        %1559 = sbr.rel (%p1557) target = $region56
      $region55: #{unet_forward.3} parent=47 // pred_region
        _
      $region56: #{unet_forward.3} parent=47 // pred_fallthru
        _
    $region48: #{unet_forward.3} parent=5 // pred_fallthru
      _
    %p1560 = scmp.le.s32.totalorder 2, %s15
    // Predicated region
    $region57: #{unet_forward.3} parent=5 // pred_check
      %p1561 = pneg %p1560
    $region58: #{unet_forward.3} parent=5 // pred_check_branch
      %1563 = sbr.rel (%p1561) target = $region60
    $region59: #{unet_forward.3} parent=5 // pred_region
      %s1564 = ssub.s32 %s15, 2
      // Predicated region
      $region61: #{unet_forward.3} parent=59 // pred_check
        %p1565 = pneg %p196
      $region62: #{unet_forward.3} parent=59 // pred_check_branch
        %1567 = sbr.rel (%p1565) target = $region64
      $region63: #{unet_forward.3} parent=59 // pred_region
        %p1568 = scmp.lt.s32.totalorder %s21, 1
        %s1569 = scalar_select %p1568, %s21, 1
        %s1570 = smul.addr %s1569, 8
        %s1571 = smul.addr %s1570, 4
        %s1572 = scalar_lea.vmem %s7, %s1571
      $region64: #{unet_forward.3} parent=59 // pred_fallthru
        _
      // Predicated region
      $region65: #{unet_forward.3} parent=59 // pred_check
        %p1573 = pneg %p222
      $region66: #{unet_forward.3} parent=59 // pred_check_branch
        %1575 = sbr.rel (%p1573) target = $region68
      $region67: #{unet_forward.3} parent=59 // pred_region
        %p1576 = scmp.lt.s32.totalorder %s21, 1
        %s1577 = scalar_select %p1576, %s21, 1
        %s1578 = smul.addr %s1577, 4
        %s1579 = smul.addr %s1578, 8
        %s1580 = scalar_lea.vmem %s8, %s1579
      $region68: #{unet_forward.3} parent=59 // pred_fallthru
        _
    $region60: #{unet_forward.3} parent=5 // pred_fallthru
      _
  $region6: #{unet_forward.3} parent=0 // loop_footer
    %s19 = sadd.s32 1, %s15
  $region7: #{unet_forward.3} parent=0 // loop_footer_branch
    %14 = sbr.rel target = $region3
  $region8: #{unet_forward.3} parent=0 // loop_exit
    _

</llo_original>
